<compile_context>
chip_gen: v5e
topology: v5e:2x2
jax: 0.10.0
libtpu: 0.0.40
codegen_flags: <defaults>
</compile_context>

<pallas_src>
import functools

import numpy as np
import jax
import jax.numpy as jnp
from jax.experimental import pallas as pl
from jax.experimental.pallas import tpu as pltpu


def _round_up(n, m):
    return ((n + m - 1) // m) * m


def _elu(x):
    # nn.ELU with alpha=1.0 (exp lands in the EUP slot, select in the VPU).
    return jnp.where(x > 0, x, jnp.exp(x) - 1.0)


def vae_forward_kernel(scale_ref,                       # SMEM: (1,) = 1 - tanh(cv)
                       x_ref, eps_ref,                  # VMEM batch tiles
                       w1_ref, b1_ref, w2_ref, b2_ref,  # VMEM weights (bf16) / biases (f32)
                       w3_ref, b3_ref, w4_ref, b4_ref,
                       out_ref,                         # VMEM: [TB, 2*seg_enc] f32 slab
                       *, num_latent, seg_enc, elu_dtype):
    L = num_latent
    cdt = w1_ref.dtype

    def layer(h, w_ref, b_ref):
        pre = jnp.dot(h, w_ref[...], preferred_element_type=jnp.float32) + b_ref[...]
        # ELU in elu_dtype (bf16 on v6e/v7x); result feeds the next MXU op directly.
        return _elu(pre.astype(elu_dtype)).astype(cdt)

    h = layer(x_ref[...], w1_ref, b1_ref)
    h = layer(h, w2_ref, b2_ref)
    h = layer(h, w3_ref, b3_ref)
    enc = jnp.dot(h, w4_ref[...], preferred_element_type=jnp.float32) + b4_ref[...]

    # Clip only the variance columns ([L,2L) and [2L+3,2L+6)) with a lane mask
    # so the whole 128-lane segment can be stored unmasked.
    col = jax.lax.broadcasted_iota(jnp.int32, (1, seg_enc), 1)
    var_mask = ((col >= L) & (col < 2 * L)) | ((col >= 2 * L + 3) & (col < 2 * L + 6))
    enc = jnp.where(var_mask, jnp.clip(enc, -32767.0, 5.0), enc)

    # Segment 0: raw (clipped-where-needed) encoder output, lane-dense store.
    out_ref[:, 0:seg_enc] = enc

    # reparameterize: std = exp(0.5*logvar) * (1 - tanh(cv)); z = eps*std + mu
    latent_mu = enc[:, 0:L]
    latent_var = enc[:, L:2 * L]
    scale = scale_ref[0]
    std = jnp.exp(0.5 * latent_var) * scale
    z = eps_ref[...] * std + latent_mu

    # Segment 1: z (only L lanes are meaningful; small masked store).
    out_ref[:, seg_enc:seg_enc + L] = z


def prepare_vae_params(params, num_latent, compute_dtype=jnp.bfloat16):
    """One-time preparation of encoder weights (hoisted out of the hot path).

    Pads the last layer to one 128-lane segment and casts weights to the MXU
    compute dtype; biases stay f32.
    """
    (w1, b1), (w2, b2), (w3, b3), (w4, b4) = params
    L = num_latent
    out_dim = 2 * L + 6
    seg_enc = _round_up(out_dim, 128)
    h3 = w3.shape[1]

    w4p = jnp.zeros((h3, seg_enc), dtype=w4.dtype).at[:, :out_dim].set(w4)
    b4p = jnp.zeros((1, seg_enc), dtype=jnp.float32).at[:, :out_dim].set(
        b4.astype(jnp.float32))

    return dict(
        w1=w1.astype(compute_dtype), b1=b1.astype(jnp.float32),
        w2=w2.astype(compute_dtype), b2=b2.astype(jnp.float32),
        w3=w3.astype(compute_dtype), b3=b3.astype(jnp.float32),
        w4=w4p.astype(compute_dtype), b4=b4p,
        seg_enc=seg_enc, compute_dtype=compute_dtype)


def vae_forward(obs_history, cv, prepared, eps, *, num_latent,
                batch_tile=1024, elu_dtype=None):
    """Returns ([z, vel], [latent_mu, latent_var, vel_mu, vel_var]).

    `prepared` comes from prepare_vae_params.  On v5e pass elu_dtype=jnp.float32.
    """
    B = obs_history.shape[0]
    L = num_latent
    seg_enc = prepared["seg_enc"]
    cdt = prepared["compute_dtype"]
    if elu_dtype is None:
        elu_dtype = cdt

    w1, b1 = prepared["w1"], prepared["b1"]
    w2, b2 = prepared["w2"], prepared["b2"]
    w3, b3 = prepared["w3"], prepared["b3"]
    w4, b4 = prepared["w4"], prepared["b4"]
    in_dim = w1.shape[0]
    h1, h2, h3 = w1.shape[1], w2.shape[1], w3.shape[1]

    x = obs_history.reshape(B, -1).astype(cdt)          # encoder's reshape
    assert x.shape[1] == in_dim

    # --- batch tiling: big tiles to amortize per-step overhead, but always
    #     >= 2 tiles for large B so the parallel axis shards both v7x TCs.
    TB_MIN = 256
    TB = min(batch_tile, _round_up(max(1, -(-B // 2)), TB_MIN))
    TB = _round_up(TB, 8)
    num_tiles = -(-B // TB)
    B_pad = num_tiles * TB

    epsf = eps.astype(jnp.float32)
    if B_pad != B:
        x = jnp.pad(x, ((0, B_pad - B), (0, 0)))
        epsf = jnp.pad(epsf, ((0, B_pad - B), (0, 0)))

    # cv may be a python scalar or a traced jax value.
    scale = (1.0 - jnp.tanh(jnp.asarray(cv, dtype=jnp.float32))).reshape(1)

    batch_map = lambda i: (i, 0)
    fixed_map = lambda i: (0, 0)

    in_specs = [
        pl.BlockSpec(memory_space=pltpu.MemorySpace.SMEM),            # scale
        pl.BlockSpec((TB, in_dim), batch_map),                        # x tile
        pl.BlockSpec((TB, L), batch_map),                             # eps tile (full last dim)
        pl.BlockSpec((in_dim, h1), fixed_map), pl.BlockSpec((1, h1), fixed_map),
        pl.BlockSpec((h1, h2), fixed_map),     pl.BlockSpec((1, h2), fixed_map),
        pl.BlockSpec((h2, h3), fixed_map),     pl.BlockSpec((1, h3), fixed_map),
        pl.BlockSpec((h3, seg_enc), fixed_map), pl.BlockSpec((1, seg_enc), fixed_map),
    ]
    out_width = 2 * seg_enc
    out_spec = pl.BlockSpec((TB, out_width), batch_map)
    out_shape = jax.ShapeDtypeStruct((B_pad, out_width), jnp.float32)

    itemsize = jnp.dtype(cdt).itemsize
    weight_bytes = (w1.size + w2.size + w3.size + w4.size) * itemsize \
        + (b1.size + b2.size + b3.size + b4.size) * 4
    cost = pl.CostEstimate(
        flops=2 * B_pad * (in_dim * h1 + h1 * h2 + h2 * h3 + h3 * seg_enc),
        transcendentals=B_pad * (h1 + h2 + h3 + L),
        bytes_accessed=int(x.size * itemsize + epsf.size * 4
                           + weight_bytes + B_pad * out_width * 4),
    )

    kernel = functools.partial(vae_forward_kernel, num_latent=L,
                               seg_enc=seg_enc, elu_dtype=elu_dtype)

    slab = pl.pallas_call(
        kernel,
        grid=(num_tiles,),
        in_specs=in_specs,
        out_specs=out_spec,
        out_shape=out_shape,
        compiler_params=pltpu.CompilerParams(dimension_semantics=("parallel",)),
        cost_estimate=cost,
    )(scale, x, epsf, w1, b1, w2, b2, w3, b3, w4, b4)

    latent_mu = slab[:B, 0:L]
    latent_var = slab[:B, L:2 * L]
    vel_mu = slab[:B, 2 * L:2 * L + 3]
    vel_var = slab[:B, 2 * L + 3:2 * L + 6]
    z = slab[:B, seg_enc:seg_enc + L]
    vel = vel_mu                                         # vel = vel_mu.clone()
    return [z, vel], [latent_mu, latent_var, vel_mu, vel_var]


def init_vae_params(key, num_obs, num_history, num_latent,
                    encoder_hidden_dims=(512, 256, 256)):
    """Deterministic init of the encoder MLP parameters.

    Linear i: weight [in, out], bias [1, out] (bias kept 2-D for TPU layout).
    """
    in_dim = num_history * num_obs
    out_dim = num_latent * 2 + 6
    dims = [in_dim] + list(encoder_hidden_dims) + [out_dim]
    params = []
    for i in range(len(dims) - 1):
        key, kw, kb = jax.random.split(key, 3)
        bound = 1.0 / np.sqrt(dims[i])
        w = jax.random.uniform(kw, (dims[i], dims[i + 1]),
                               minval=-bound, maxval=bound, dtype=jnp.float32)
        b = jax.random.uniform(kb, (1, dims[i + 1]),
                               minval=-bound, maxval=bound, dtype=jnp.float32)
        params.append((w, b))
    return params


def _reference_forward(obs_history, cv, params, eps, num_latent,
                       compute_dtype=jnp.bfloat16, elu_dtype=jnp.bfloat16):
    """Pure-JAX reference using the same precision recipe as the kernel."""
    x = obs_history.reshape(obs_history.shape[0], -1)
    (w1, b1), (w2, b2), (w3, b3), (w4, b4) = params

    def lin(h, w, b):
        return jnp.dot(h.astype(compute_dtype), w.astype(compute_dtype),
                       preferred_element_type=jnp.float32) + b.astype(jnp.float32)

    h = _elu(lin(x, w1, b1).astype(elu_dtype)).astype(jnp.float32)
    h = _elu(lin(h, w2, b2).astype(elu_dtype)).astype(jnp.float32)
    h = _elu(lin(h, w3, b3).astype(elu_dtype)).astype(jnp.float32)
    enc = lin(h, w4, b4)
    L = num_latent
    lmu = enc[:, :L]
    lvar = jnp.clip(enc[:, L:2 * L], -32767.0, 5.0)
    vmu = enc[:, 2 * L:2 * L + 3]
    vvar = jnp.clip(enc[:, 2 * L + 3:2 * L + 6], -32767.0, 5.0)
    scale = (1.0 - jnp.tanh(jnp.asarray(cv, jnp.float32)))
    std = jnp.exp(0.5 * lvar) * scale
    z = eps.astype(jnp.float32) * std + lmu
    return [z, vmu], [lmu, lvar, vmu, vvar]


if __name__ == "__main__":
    # Small, module-consistent shapes.
    B = 2
    num_obs = 16
    num_history = 4
    num_latent = 8
    cv = 0.3

    key = jax.random.PRNGKey(0)
    key, k_obs, k_eps, k_par = jax.random.split(key, 4)

    obs_history = jax.random.normal(k_obs, (B, num_history, num_obs), dtype=jnp.float32)
    eps = jax.random.normal(k_eps, (B, num_latent), dtype=jnp.float32)
    params = init_vae_params(k_par, num_obs, num_history, num_latent)

    # One-time parameter preparation (padding / bf16 cast hoisted out of hot path).
    prepared = prepare_vae_params(params, num_latent)

    (est, dist) = vae_forward(obs_history, cv, prepared, eps, num_latent=num_latent)
    z, vel = est
    jax.block_until_ready(z)
    jax.block_until_ready(vel)

    # Correctness check against a pure-JAX reference with the same precision recipe.
    (est_ref, dist_ref) = _reference_forward(obs_history, cv, params, eps, num_latent)
    for a, b in zip(est + dist, est_ref + dist_ref):
        np.testing.assert_allclose(np.asarray(a), np.asarray(b), rtol=1e-2, atol=1e-2)

    print("KERNEL_OK")
</pallas_src>

<mosaic_0001>
module attributes {stable_mosaic.version = 11 : i64} {
  func.func @vae_forward_kernel(%arg0: i32, %arg1: memref<1xf32, #tpu.memory_space<smem>>, %arg2: memref<256x64xbf16, #tpu.memory_space<vmem>>, %arg3: memref<256x8xf32, #tpu.memory_space<vmem>>, %arg4: memref<64x512xbf16, #tpu.memory_space<vmem>>, %arg5: memref<1x512xf32, #tpu.memory_space<vmem>>, %arg6: memref<512x256xbf16, #tpu.memory_space<vmem>>, %arg7: memref<1x256xf32, #tpu.memory_space<vmem>>, %arg8: memref<256x256xbf16, #tpu.memory_space<vmem>>, %arg9: memref<1x256xf32, #tpu.memory_space<vmem>>, %arg10: memref<256x128xbf16, #tpu.memory_space<vmem>>, %arg11: memref<1x128xf32, #tpu.memory_space<vmem>>, %arg12: memref<256x256xf32, #tpu.memory_space<vmem>>) attributes {dimension_semantics = [#tpu.dimension_semantics<parallel>], iteration_bounds = array<i64: 1>, scalar_prefetch = 0 : i64, scratch_operands = 0 : i64, tpu.core_type = #tpu.core_type<tc>, window_params = [{transform_indices = @transform_0, window_bounds = array<i64: 1>}, {transform_indices = @transform_1, window_bounds = array<i64: 256, 64>}, {transform_indices = @transform_2, window_bounds = array<i64: 256, 8>}, {pipeline_mode = #tpu.pipeline_mode<synchronous>, transform_indices = @transform_3, window_bounds = array<i64: 64, 512>}, {pipeline_mode = #tpu.pipeline_mode<synchronous>, transform_indices = @transform_4, window_bounds = array<i64: 1, 512>}, {pipeline_mode = #tpu.pipeline_mode<synchronous>, transform_indices = @transform_5, window_bounds = array<i64: 512, 256>}, {pipeline_mode = #tpu.pipeline_mode<synchronous>, transform_indices = @transform_6, window_bounds = array<i64: 1, 256>}, {pipeline_mode = #tpu.pipeline_mode<synchronous>, transform_indices = @transform_7, window_bounds = array<i64: 256, 256>}, {pipeline_mode = #tpu.pipeline_mode<synchronous>, transform_indices = @transform_8, window_bounds = array<i64: 1, 256>}, {pipeline_mode = #tpu.pipeline_mode<synchronous>, transform_indices = @transform_9, window_bounds = array<i64: 256, 128>}, {pipeline_mode = #tpu.pipeline_mode<synchronous>, transform_indices = @transform_10, window_bounds = array<i64: 1, 128>}, {transform_indices = @transform_11, window_bounds = array<i64: 256, 256>}]} {
    %c0 = arith.constant 0 : index
    %c0_0 = arith.constant 0 : index
    %0 = vector.load %arg2[%c0, %c0_0] : memref<256x64xbf16, #tpu.memory_space<vmem>>, vector<256x64xbf16>
    %c0_1 = arith.constant 0 : index
    %c0_2 = arith.constant 0 : index
    %1 = vector.load %arg4[%c0_1, %c0_2] : memref<64x512xbf16, #tpu.memory_space<vmem>>, vector<64x512xbf16>
    %cst = arith.constant dense<0.000000e+00> : vector<256x512xf32>
    %2 = tpu.matmul %0, %1, %cst {dimension_numbers = #tpu.dot_dimension_numbers<[1], [0], [0], [1], [0, 0, 1, 1], [], []>} : vector<256x64xbf16>, vector<64x512xbf16>, vector<256x512xf32> -> vector<256x512xf32>
    %c0_3 = arith.constant 0 : index
    %c0_4 = arith.constant 0 : index
    %3 = vector.load %arg5[%c0_3, %c0_4] : memref<1x512xf32, #tpu.memory_space<vmem>>, vector<1x512xf32>
    %4 = vector.broadcast %3 : vector<1x512xf32> to vector<256x512xf32>
    %5 = arith.addf %2, %4 : vector<256x512xf32>
    %6 = arith.truncf %5 : vector<256x512xf32> to vector<256x512xbf16>
    %cst_5 = arith.constant 0.000000e+00 : bf16
    %7 = vector.broadcast %cst_5 : bf16 to vector<256x512xbf16>
    %8 = arith.cmpf ogt, %6, %7 : vector<256x512xbf16>
    %9 = math.exp %6 : vector<256x512xbf16>
    %cst_6 = arith.constant 1.000000e+00 : bf16
    %10 = vector.broadcast %cst_6 : bf16 to vector<256x512xbf16>
    %11 = arith.subf %9, %10 : vector<256x512xbf16>
    %12 = arith.select %8, %6, %11 : vector<256x512xi1>, vector<256x512xbf16>
    %c0_7 = arith.constant 0 : index
    %c0_8 = arith.constant 0 : index
    %13 = vector.load %arg6[%c0_7, %c0_8] : memref<512x256xbf16, #tpu.memory_space<vmem>>, vector<512x256xbf16>
    %cst_9 = arith.constant dense<0.000000e+00> : vector<256x256xf32>
    %14 = tpu.matmul %12, %13, %cst_9 {dimension_numbers = #tpu.dot_dimension_numbers<[1], [0], [0], [1], [0, 0, 1, 1], [], []>} : vector<256x512xbf16>, vector<512x256xbf16>, vector<256x256xf32> -> vector<256x256xf32>
    %c0_10 = arith.constant 0 : index
    %c0_11 = arith.constant 0 : index
    %15 = vector.load %arg7[%c0_10, %c0_11] : memref<1x256xf32, #tpu.memory_space<vmem>>, vector<1x256xf32>
    %16 = vector.broadcast %15 : vector<1x256xf32> to vector<256x256xf32>
    %17 = arith.addf %14, %16 : vector<256x256xf32>
    %18 = arith.truncf %17 : vector<256x256xf32> to vector<256x256xbf16>
    %cst_12 = arith.constant 0.000000e+00 : bf16
    %19 = vector.broadcast %cst_12 : bf16 to vector<256x256xbf16>
    %20 = arith.cmpf ogt, %18, %19 : vector<256x256xbf16>
    %21 = math.exp %18 : vector<256x256xbf16>
    %cst_13 = arith.constant 1.000000e+00 : bf16
    %22 = vector.broadcast %cst_13 : bf16 to vector<256x256xbf16>
    %23 = arith.subf %21, %22 : vector<256x256xbf16>
    %24 = arith.select %20, %18, %23 : vector<256x256xi1>, vector<256x256xbf16>
    %c0_14 = arith.constant 0 : index
    %c0_15 = arith.constant 0 : index
    %25 = vector.load %arg8[%c0_14, %c0_15] : memref<256x256xbf16, #tpu.memory_space<vmem>>, vector<256x256xbf16>
    %cst_16 = arith.constant dense<0.000000e+00> : vector<256x256xf32>
    %26 = tpu.matmul %24, %25, %cst_16 {dimension_numbers = #tpu.dot_dimension_numbers<[1], [0], [0], [1], [0, 0, 1, 1], [], []>} : vector<256x256xbf16>, vector<256x256xbf16>, vector<256x256xf32> -> vector<256x256xf32>
    %c0_17 = arith.constant 0 : index
    %c0_18 = arith.constant 0 : index
    %27 = vector.load %arg9[%c0_17, %c0_18] : memref<1x256xf32, #tpu.memory_space<vmem>>, vector<1x256xf32>
    %28 = vector.broadcast %27 : vector<1x256xf32> to vector<256x256xf32>
    %29 = arith.addf %26, %28 : vector<256x256xf32>
    %30 = arith.truncf %29 : vector<256x256xf32> to vector<256x256xbf16>
    %cst_19 = arith.constant 0.000000e+00 : bf16
    %31 = vector.broadcast %cst_19 : bf16 to vector<256x256xbf16>
    %32 = arith.cmpf ogt, %30, %31 : vector<256x256xbf16>
    %33 = math.exp %30 : vector<256x256xbf16>
    %cst_20 = arith.constant 1.000000e+00 : bf16
    %34 = vector.broadcast %cst_20 : bf16 to vector<256x256xbf16>
    %35 = arith.subf %33, %34 : vector<256x256xbf16>
    %36 = arith.select %32, %30, %35 : vector<256x256xi1>, vector<256x256xbf16>
    %c0_21 = arith.constant 0 : index
    %c0_22 = arith.constant 0 : index
    %37 = vector.load %arg10[%c0_21, %c0_22] : memref<256x128xbf16, #tpu.memory_space<vmem>>, vector<256x128xbf16>
    %cst_23 = arith.constant dense<0.000000e+00> : vector<256x128xf32>
    %38 = tpu.matmul %36, %37, %cst_23 {dimension_numbers = #tpu.dot_dimension_numbers<[1], [0], [0], [1], [0, 0, 1, 1], [], []>} : vector<256x256xbf16>, vector<256x128xbf16>, vector<256x128xf32> -> vector<256x128xf32>
    %c0_24 = arith.constant 0 : index
    %c0_25 = arith.constant 0 : index
    %39 = vector.load %arg11[%c0_24, %c0_25] : memref<1x128xf32, #tpu.memory_space<vmem>>, vector<1x128xf32>
    %40 = vector.broadcast %39 : vector<1x128xf32> to vector<256x128xf32>
    %41 = arith.addf %38, %40 : vector<256x128xf32>
    %42 = tpu.iota {dimensions = array<i32: 1>} : vector<1x128xi32>
    %c8_i32 = arith.constant 8 : i32
    %43 = vector.broadcast %c8_i32 : i32 to vector<1x128xi32>
    %44 = arith.cmpi sge, %42, %43 : vector<1x128xi32>
    %c16_i32 = arith.constant 16 : i32
    %45 = vector.broadcast %c16_i32 : i32 to vector<1x128xi32>
    %46 = arith.cmpi slt, %42, %45 : vector<1x128xi32>
    %47 = arith.andi %44, %46 : vector<1x128xi1>
    %c19_i32 = arith.constant 19 : i32
    %48 = vector.broadcast %c19_i32 : i32 to vector<1x128xi32>
    %49 = arith.cmpi sge, %42, %48 : vector<1x128xi32>
    %c22_i32 = arith.constant 22 : i32
    %50 = vector.broadcast %c22_i32 : i32 to vector<1x128xi32>
    %51 = arith.cmpi slt, %42, %50 : vector<1x128xi32>
    %52 = arith.andi %49, %51 : vector<1x128xi1>
    %53 = arith.ori %47, %52 : vector<1x128xi1>
    %cst_26 = arith.constant -3.276700e+04 : f32
    %cst_27 = arith.constant 5.000000e+00 : f32
    %54 = vector.broadcast %cst_26 : f32 to vector<256x128xf32>
    %55 = arith.maximumf %54, %41 : vector<256x128xf32>
    %56 = vector.broadcast %cst_27 : f32 to vector<256x128xf32>
    %57 = arith.minimumf %56, %55 : vector<256x128xf32>
    %58 = vector.shape_cast %53 : vector<1x128xi1> to vector<1x128xi1>
    %59 = vector.broadcast %58 : vector<1x128xi1> to vector<256x128xi1>
    %60 = arith.select %59, %57, %41 : vector<256x128xi1>, vector<256x128xf32>
    %c0_28 = arith.constant 0 : index
    %c0_29 = arith.constant 0 : index
    %61 = vector.load %arg12[%c0_28, %c0_29] : memref<256x256xf32, #tpu.memory_space<vmem>>, vector<256x128xf32>
    tpu.vector_store %arg12[%c0_28, %c0_29], %60 {strides = array<i32>} : memref<256x256xf32, #tpu.memory_space<vmem>>, vector<256x128xf32>,
    %62 = vector.extract_strided_slice %60 {offsets = [0, 0], sizes = [256, 8], strides = [1, 1]} : vector<256x128xf32> to vector<256x8xf32>
    %63 = vector.extract_strided_slice %60 {offsets = [0, 8], sizes = [256, 8], strides = [1, 1]} : vector<256x128xf32> to vector<256x8xf32>
    %c0_30 = arith.constant 0 : index
    %64 = memref.load %arg1[%c0_30] : memref<1xf32, #tpu.memory_space<smem>>
    %cst_31 = arith.constant 5.000000e-01 : f32
    %65 = vector.broadcast %cst_31 : f32 to vector<256x8xf32>
    %66 = arith.mulf %65, %63 : vector<256x8xf32>
    %67 = math.exp %66 : vector<256x8xf32>
    %68 = vector.broadcast %64 : f32 to vector<256x8xf32>
    %69 = arith.mulf %67, %68 : vector<256x8xf32>
    %c0_32 = arith.constant 0 : index
    %c0_33 = arith.constant 0 : index
    %70 = vector.load %arg3[%c0_32, %c0_33] : memref<256x8xf32, #tpu.memory_space<vmem>>, vector<256x8xf32>
    %71 = arith.mulf %70, %69 : vector<256x8xf32>
    %72 = arith.addf %71, %62 : vector<256x8xf32>
    %c0_34 = arith.constant 0 : index
    %c128 = arith.constant 128 : index
    %73 = vector.load %arg12[%c0_34, %c128] : memref<256x256xf32, #tpu.memory_space<vmem>>, vector<256x8xf32>
    tpu.vector_store %arg12[%c0_34, %c128], %72 {strides = array<i32>} : memref<256x256xf32, #tpu.memory_space<vmem>>, vector<256x8xf32>,
    return
  }
  func.func @transform_0(%arg0: i32) -> i32 {
    %c0_i32 = arith.constant 0 : i32
    %c0_i32_0 = arith.constant 0 : i32
    return %c0_i32 : i32
  }
  func.func @transform_1(%arg0: i32) -> (i32, i32) {
    %c0_i32 = arith.constant 0 : i32
    %c0_i32_0 = arith.constant 0 : i32
    return %arg0, %c0_i32 : i32, i32
  }
  func.func @transform_2(%arg0: i32) -> (i32, i32) {
    %c0_i32 = arith.constant 0 : i32
    %c0_i32_0 = arith.constant 0 : i32
    return %arg0, %c0_i32 : i32, i32
  }
  func.func @transform_3(%arg0: i32) -> (i32, i32) {
    %c0_i32 = arith.constant 0 : i32
    %c0_i32_0 = arith.constant 0 : i32
    %c0_i32_1 = arith.constant 0 : i32
    return %c0_i32, %c0_i32_0 : i32, i32
  }
  func.func @transform_4(%arg0: i32) -> (i32, i32) {
    %c0_i32 = arith.constant 0 : i32
    %c0_i32_0 = arith.constant 0 : i32
    %c0_i32_1 = arith.constant 0 : i32
    return %c0_i32, %c0_i32_0 : i32, i32
  }
  func.func @transform_5(%arg0: i32) -> (i32, i32) {
    %c0_i32 = arith.constant 0 : i32
    %c0_i32_0 = arith.constant 0 : i32
    %c0_i32_1 = arith.constant 0 : i32
    return %c0_i32, %c0_i32_0 : i32, i32
  }
  func.func @transform_6(%arg0: i32) -> (i32, i32) {
    %c0_i32 = arith.constant 0 : i32
    %c0_i32_0 = arith.constant 0 : i32
    %c0_i32_1 = arith.constant 0 : i32
    return %c0_i32, %c0_i32_0 : i32, i32
  }
  func.func @transform_7(%arg0: i32) -> (i32, i32) {
    %c0_i32 = arith.constant 0 : i32
    %c0_i32_0 = arith.constant 0 : i32
    %c0_i32_1 = arith.constant 0 : i32
    return %c0_i32, %c0_i32_0 : i32, i32
  }
  func.func @transform_8(%arg0: i32) -> (i32, i32) {
    %c0_i32 = arith.constant 0 : i32
    %c0_i32_0 = arith.constant 0 : i32
    %c0_i32_1 = arith.constant 0 : i32
    return %c0_i32, %c0_i32_0 : i32, i32
  }
  func.func @transform_9(%arg0: i32) -> (i32, i32) {
    %c0_i32 = arith.constant 0 : i32
    %c0_i32_0 = arith.constant 0 : i32
    %c0_i32_1 = arith.constant 0 : i32
    return %c0_i32, %c0_i32_0 : i32, i32
  }
  func.func @transform_10(%arg0: i32) -> (i32, i32) {
    %c0_i32 = arith.constant 0 : i32
    %c0_i32_0 = arith.constant 0 : i32
    %c0_i32_1 = arith.constant 0 : i32
    return %c0_i32, %c0_i32_0 : i32, i32
  }
  func.func @transform_11(%arg0: i32) -> (i32, i32) {
    %c0_i32 = arith.constant 0 : i32
    %c0_i32_0 = arith.constant 0 : i32
    return %arg0, %c0_i32 : i32, i32
  }
}

</mosaic_0001>

<llo_original>
// kernel: tpu_custom_call.1
$region0: #{tpu_custom_call.1}
  #allocation0 [shape = 'u32[]', space=smem, size = 0x4, offset = 0x4, fixed_abs, tag = 'smem constant byte address 0x4 - core index']
  #allocation1 [shape = 'u32[72,128]{1,0:T(1,128)}', space=vmem, size = 0x9000, scoped, tag = 'internal scratch']
  #allocation2 [shape = 'f32[1]{0:T(128)S(6)}', space=smem, size = 0x200, scoped, tag = 'scoped memory for tpu_custom_call.1']
  %s0 = inlined_call_operand.<no memory space> [shape: f32[1], index: 0, kind: input, shape index: {}]
  %s1 = inlined_call_operand.vmem [shape: bf16[256,64], index: 1, kind: input, shape index: {}]
  %s2 = inlined_call_operand.vmem [shape: f32[256,8], index: 2, kind: input, shape index: {}]
  %s3 = inlined_call_operand.vmem [shape: bf16[64,512], index: 3, kind: input, shape index: {}]
  %s4 = inlined_call_operand.vmem [shape: f32[1,512], index: 4, kind: input, shape index: {}]
  %s5 = inlined_call_operand.hbm [shape: bf16[512,256], index: 5, kind: input, shape index: {}]
  %s6 = inlined_call_operand.vmem [shape: f32[1,256], index: 6, kind: input, shape index: {}]
  %s7 = inlined_call_operand.vmem [shape: bf16[256,256], index: 7, kind: input, shape index: {}]
  %s8 = inlined_call_operand.vmem [shape: f32[1,256], index: 8, kind: input, shape index: {}]
  %s9 = inlined_call_operand.hbm [shape: bf16[256,128], index: 9, kind: input, shape index: {}]
  %s10 = inlined_call_operand.vmem [shape: f32[1,128], index: 10, kind: input, shape index: {}]
  %s11 = inlined_call_operand.hbm [shape: f32[256,256], index: 11, kind: output, shape index: {}]
  %s12 = sld [smem:[#allocation0]]
  $region62: #{tpu_custom_call.1} parent=0
    _
  %s14 = ssub.s32 1, %s12
  %s15 = scalar_select 0, %s14, %s12
  %16 = sst [smem:[#allocation2]] %s0
  $region1: #{tpu_custom_call.1} parent=0
    #allocation3 [shape = 'u8[262144]{0}', space=vmem, size = 0x40000, scoped, tag = 'input window, operand 5, single buffered']
    #allocation4 [shape = 's32[1]{0}', space=sflag, size = 0x4, scoped, tag = 'scoped memory for tpu_custom_call.1']
    #allocation5 [shape = 's32[1]{0}', space=sflag, size = 0x4, scoped, tag = 'scoped memory for tpu_custom_call.1']
    #allocation6 [shape = 'u8[65536]{0}', space=vmem, size = 0x10000, scoped, tag = 'input window, operand 9, single buffered']
    #allocation7 [shape = 's32[1]{0}', space=sflag, size = 0x4, scoped, tag = 'scoped memory for tpu_custom_call.1']
    #allocation8 [shape = 'u8[262144]{0}', space=vmem, size = 0x40000, scoped, tag = 'output window, operand 0, single buffered']
    %17 = vsyncpa [#allocation4], 0
    %18 = vsyncpa [#allocation7], 0
    %19 = vsyncpa [#allocation5], 0
    // Predicated region
    $region2: #{tpu_custom_call.1} parent=1 // pred_check
      _
    $region3: #{tpu_custom_call.1} parent=1 // pred_check_branch
      %21 = sbr.rel (0) target = $region5
    $region4: #{tpu_custom_call.1} parent=1 // pred_region
      _
    $region5: #{tpu_custom_call.1} parent=1 // pred_fallthru
      _
    // Predicated region
    $region6: #{tpu_custom_call.1} parent=1 // pred_check
      _
    $region7: #{tpu_custom_call.1} parent=1 // pred_check_branch
      %23 = sbr.rel (0) target = $region9
    $region8: #{tpu_custom_call.1} parent=1 // pred_region
      _
    $region9: #{tpu_custom_call.1} parent=1 // pred_fallthru
      _
    // Predicated region
    $region10: #{tpu_custom_call.1} parent=1 // pred_check
      _
    $region11: #{tpu_custom_call.1} parent=1 // pred_check_branch
      %25 = sbr.rel (0) target = $region13
    $region12: #{tpu_custom_call.1} parent=1 // pred_region
      _
    $region13: #{tpu_custom_call.1} parent=1 // pred_fallthru
      _
    // Predicated region
    $region14: #{tpu_custom_call.1} parent=1 // pred_check
      _
    $region15: #{tpu_custom_call.1} parent=1 // pred_check_branch
      %27 = sbr.rel (0) target = $region17
    $region16: #{tpu_custom_call.1} parent=1 // pred_region
      _
    $region17: #{tpu_custom_call.1} parent=1 // pred_fallthru
      _
    // Predicated region
    $region18: #{tpu_custom_call.1} parent=1 // pred_check
      _
    $region19: #{tpu_custom_call.1} parent=1 // pred_check_branch
      %29 = sbr.rel (0) target = $region21
    $region20: #{tpu_custom_call.1} parent=1 // pred_region
      _
    $region21: #{tpu_custom_call.1} parent=1 // pred_fallthru
      _
    // Predicated region
    $region22: #{tpu_custom_call.1} parent=1 // pred_check
      _
    $region23: #{tpu_custom_call.1} parent=1 // pred_check_branch
      %31 = sbr.rel (0) target = $region25
    $region24: #{tpu_custom_call.1} parent=1 // pred_region
      %33 = vsyncadd [#allocation4], 0
      %s34 = sshll.u32 %s5, 4
      %s35 = int_to_ptr.hbm [resolvable:$true] %s34
      %s36 = sshll.u32 [#allocation3], 4
      %s37 = int_to_ptr.vmem [resolvable:$true] %s36
      %42 = dma.hbm_to_vmem [thread:$0]  %s35, 8192, %s37, [#allocation4], 128, 128, 8
    $region25: #{tpu_custom_call.1} parent=1 // pred_fallthru
      _
    // Predicated region
    $region26: #{tpu_custom_call.1} parent=1 // pred_check
      _
    $region27: #{tpu_custom_call.1} parent=1 // pred_check_branch
      %44 = sbr.rel (0) target = $region29
    $region28: #{tpu_custom_call.1} parent=1 // pred_region
      _
    $region29: #{tpu_custom_call.1} parent=1 // pred_fallthru
      _
    // Predicated region
    $region30: #{tpu_custom_call.1} parent=1 // pred_check
      _
    $region31: #{tpu_custom_call.1} parent=1 // pred_check_branch
      %46 = sbr.rel (0) target = $region33
    $region32: #{tpu_custom_call.1} parent=1 // pred_region
      _
    $region33: #{tpu_custom_call.1} parent=1 // pred_fallthru
      _
    // Predicated region
    $region34: #{tpu_custom_call.1} parent=1 // pred_check
      _
    $region35: #{tpu_custom_call.1} parent=1 // pred_check_branch
      %48 = sbr.rel (0) target = $region37
    $region36: #{tpu_custom_call.1} parent=1 // pred_region
      _
    $region37: #{tpu_custom_call.1} parent=1 // pred_fallthru
      _
    // Predicated region
    $region38: #{tpu_custom_call.1} parent=1 // pred_check
      _
    $region39: #{tpu_custom_call.1} parent=1 // pred_check_branch
      %50 = sbr.rel (0) target = $region41
    $region40: #{tpu_custom_call.1} parent=1 // pred_region
      %52 = vsyncadd [#allocation7], 0
      %s53 = sshll.u32 %s9, 4
      %s54 = int_to_ptr.hbm [resolvable:$true] %s53
      %s55 = sshll.u32 [#allocation6], 4
      %s56 = int_to_ptr.vmem [resolvable:$true] %s55
      %61 = dma.hbm_to_vmem [thread:$0]  %s54, 2048, %s56, [#allocation7], 64, 64, 4
    $region41: #{tpu_custom_call.1} parent=1 // pred_fallthru
      _
    // Predicated region
    $region42: #{tpu_custom_call.1} parent=1 // pred_check
      _
    $region43: #{tpu_custom_call.1} parent=1 // pred_check_branch
      %63 = sbr.rel (0) target = $region45
    $region44: #{tpu_custom_call.1} parent=1 // pred_region
      _
    $region45: #{tpu_custom_call.1} parent=1 // pred_fallthru
      _
    // Predicated region
    $region46: #{tpu_custom_call.1} parent=1 // pred_check
      _
    $region47: #{tpu_custom_call.1} parent=1 // pred_check_branch
      %65 = sbr.rel (0) target = $region49
    $region48: #{tpu_custom_call.1} parent=1 // pred_region
      %67 = dma.done [#allocation4], 8192
    $region49: #{tpu_custom_call.1} parent=1 // pred_fallthru
      _
    // Predicated region
    $region50: #{tpu_custom_call.1} parent=1 // pred_check
      _
    $region51: #{tpu_custom_call.1} parent=1 // pred_check_branch
      %69 = sbr.rel (0) target = $region53
    $region52: #{tpu_custom_call.1} parent=1 // pred_region
      %71 = dma.done [#allocation7], 2048
    $region53: #{tpu_custom_call.1} parent=1 // pred_fallthru
      _
    %v73 = vld [vmem:[%s1] sm:$0xf]
    %v74 = vld [vmem:[%s1 + $0x4] sm:$0xf]
    %v75 = vld [vmem:[%s1 + $0x8] sm:$0xf]
    %v76 = vld [vmem:[%s1 + $0xc] sm:$0xf]
    %v77 = vld [vmem:[%s1 + $0x10] sm:$0xf]
    %v78 = vld [vmem:[%s1 + $0x14] sm:$0xf]
    %v79 = vld [vmem:[%s1 + $0x18] sm:$0xf]
    %v80 = vld [vmem:[%s1 + $0x1c] sm:$0xf]
    %v81 = vld [vmem:[%s1 + $0x20] sm:$0xf]
    %v82 = vld [vmem:[%s1 + $0x24] sm:$0xf]
    %v83 = vld [vmem:[%s1 + $0x28] sm:$0xf]
    %v84 = vld [vmem:[%s1 + $0x2c] sm:$0xf]
    %v85 = vld [vmem:[%s1 + $0x30] sm:$0xf]
    %v86 = vld [vmem:[%s1 + $0x34] sm:$0xf]
    %v87 = vld [vmem:[%s1 + $0x38] sm:$0xf]
    %v88 = vld [vmem:[%s1 + $0x3c] sm:$0xf]
    %v89 = vld [vmem:[%s1 + $0x40] sm:$0xf]
    %v90 = vld [vmem:[%s1 + $0x44] sm:$0xf]
    %v91 = vld [vmem:[%s1 + $0x48] sm:$0xf]
    %v92 = vld [vmem:[%s1 + $0x4c] sm:$0xf]
    %v93 = vld [vmem:[%s1 + $0x50] sm:$0xf]
    %v94 = vld [vmem:[%s1 + $0x54] sm:$0xf]
    %v95 = vld [vmem:[%s1 + $0x58] sm:$0xf]
    %v96 = vld [vmem:[%s1 + $0x5c] sm:$0xf]
    %v97 = vld [vmem:[%s1 + $0x60] sm:$0xf]
    %v98 = vld [vmem:[%s1 + $0x64] sm:$0xf]
    %v99 = vld [vmem:[%s1 + $0x68] sm:$0xf]
    %v100 = vld [vmem:[%s1 + $0x6c] sm:$0xf]
    %v101 = vld [vmem:[%s1 + $0x70] sm:$0xf]
    %v102 = vld [vmem:[%s1 + $0x74] sm:$0xf]
    %v103 = vld [vmem:[%s1 + $0x78] sm:$0xf]
    %v104 = vld [vmem:[%s1 + $0x7c] sm:$0xf]
    %v105 = vld [vmem:[%s3] sm:$0xff]
    %v106 = vld [vmem:[%s3 + $0x8] sm:$0xff]
    %v107 = vld [vmem:[%s3 + $0x10] sm:$0xff]
    %v108 = vld [vmem:[%s3 + $0x18] sm:$0xff]
    %v109 = vld [vmem:[%s3 + $0x20] sm:$0xff]
    %v110 = vld [vmem:[%s3 + $0x28] sm:$0xff]
    %v111 = vld [vmem:[%s3 + $0x30] sm:$0xff]
    %v112 = vld [vmem:[%s3 + $0x38] sm:$0xff]
    %v113 = vld [vmem:[%s3 + $0x40] sm:$0xff]
    %v114 = vld [vmem:[%s3 + $0x48] sm:$0xff]
    %v115 = vld [vmem:[%s3 + $0x50] sm:$0xff]
    %v116 = vld [vmem:[%s3 + $0x58] sm:$0xff]
    %v117 = vld [vmem:[%s3 + $0x60] sm:$0xff]
    %v118 = vld [vmem:[%s3 + $0x68] sm:$0xff]
    %v119 = vld [vmem:[%s3 + $0x70] sm:$0xff]
    %v120 = vld [vmem:[%s3 + $0x78] sm:$0xff]
    %v121 = vld [vmem:[%s4] sm:$0xf]
    %v123 = vperm.slane %v121, 0
    %v124 = vperm.slane %v121, 1
    %v125 = vperm.slane %v121, 2
    %v126 = vperm.slane %v121, 3
    %v163 = vunpack.c.l.b16 %v73
    %v164 = vunpack.c.l.b16 %v74
    %v165 = vunpack.c.l.b16 %v75
    %v166 = vunpack.c.l.b16 %v76
    %v167 = vunpack.c.l.b16 %v77
    %v168 = vunpack.c.l.b16 %v78
    %v169 = vunpack.c.l.b16 %v79
    %v170 = vunpack.c.l.b16 %v80
    %v171 = vunpack.c.l.b16 %v81
    %v172 = vunpack.c.l.b16 %v82
    %v173 = vunpack.c.l.b16 %v83
    %v174 = vunpack.c.l.b16 %v84
    %v175 = vunpack.c.l.b16 %v85
    %v176 = vunpack.c.l.b16 %v86
    %v177 = vunpack.c.l.b16 %v87
    %v178 = vunpack.c.l.b16 %v88
    %v179 = vunpack.c.l.b16 %v89
    %v180 = vunpack.c.l.b16 %v90
    %v181 = vunpack.c.l.b16 %v91
    %v182 = vunpack.c.l.b16 %v92
    %v183 = vunpack.c.l.b16 %v93
    %v184 = vunpack.c.l.b16 %v94
    %v185 = vunpack.c.l.b16 %v95
    %v186 = vunpack.c.l.b16 %v96
    %v187 = vunpack.c.l.b16 %v97
    %v188 = vunpack.c.l.b16 %v98
    %v189 = vunpack.c.l.b16 %v99
    %v190 = vunpack.c.l.b16 %v100
    %v191 = vunpack.c.l.b16 %v101
    %v192 = vunpack.c.l.b16 %v102
    %v193 = vunpack.c.l.b16 %v103
    %v194 = vunpack.c.l.b16 %v104
    %v195 = vpack.c.b16 %v164, %v163
    %v196 = vpack.c.b16 %v166, %v165
    %v197 = vpack.c.b16 %v168, %v167
    %v198 = vpack.c.b16 %v170, %v169
    %v199 = vpack.c.b16 %v172, %v171
    %v200 = vpack.c.b16 %v174, %v173
    %v201 = vpack.c.b16 %v176, %v175
    %v202 = vpack.c.b16 %v178, %v177
    %v203 = vpack.c.b16 %v180, %v179
    %v204 = vpack.c.b16 %v182, %v181
    %v205 = vpack.c.b16 %v184, %v183
    %v206 = vpack.c.b16 %v186, %v185
    %v207 = vpack.c.b16 %v188, %v187
    %v208 = vpack.c.b16 %v190, %v189
    %v209 = vpack.c.b16 %v192, %v191
    %v210 = vpack.c.b16 %v194, %v193
    %v227 = vunpack.c.l.b16 %v105
    %v228 = vunpack.c.h.b16 %v105
    %v229 = vunpack.c.l.b16 %v106
    %v230 = vunpack.c.h.b16 %v106
    %v231 = vunpack.c.l.b16 %v107
    %v232 = vunpack.c.h.b16 %v107
    %v233 = vunpack.c.l.b16 %v108
    %v234 = vunpack.c.h.b16 %v108
    %v235 = vunpack.c.l.b16 %v109
    %v236 = vunpack.c.h.b16 %v109
    %v237 = vunpack.c.l.b16 %v110
    %v238 = vunpack.c.h.b16 %v110
    %v239 = vunpack.c.l.b16 %v111
    %v240 = vunpack.c.h.b16 %v111
    %v241 = vunpack.c.l.b16 %v112
    %v242 = vunpack.c.h.b16 %v112
    %v243 = vunpack.c.l.b16 %v113
    %v244 = vunpack.c.h.b16 %v113
    %v245 = vunpack.c.l.b16 %v114
    %v246 = vunpack.c.h.b16 %v114
    %v247 = vunpack.c.l.b16 %v115
    %v248 = vunpack.c.h.b16 %v115
    %v249 = vunpack.c.l.b16 %v116
    %v250 = vunpack.c.h.b16 %v116
    %v251 = vunpack.c.l.b16 %v117
    %v252 = vunpack.c.h.b16 %v117
    %v253 = vunpack.c.l.b16 %v118
    %v254 = vunpack.c.h.b16 %v118
    %v255 = vunpack.c.l.b16 %v119
    %v256 = vunpack.c.h.b16 %v119
    %v257 = vunpack.c.l.b16 %v120
    %v258 = vunpack.c.h.b16 %v120
    %v259 = vpack.c.b16 %v231, %v227
    %v260 = vpack.c.b16 %v232, %v228
    %v261 = vpack.c.b16 %v233, %v229
    %v262 = vpack.c.b16 %v234, %v230
    %v263 = vpack.c.b16 %v239, %v235
    %v264 = vpack.c.b16 %v240, %v236
    %v265 = vpack.c.b16 %v241, %v237
    %v266 = vpack.c.b16 %v242, %v238
    %v267 = vpack.c.b16 %v247, %v243
    %v268 = vpack.c.b16 %v248, %v244
    %v269 = vpack.c.b16 %v249, %v245
    %v270 = vpack.c.b16 %v250, %v246
    %v271 = vpack.c.b16 %v255, %v251
    %v272 = vpack.c.b16 %v256, %v252
    %v273 = vpack.c.b16 %v257, %v253
    %v274 = vpack.c.b16 %v258, %v254
    %vm291 = vcmask 523264
    %v293 = vsel %vm291, %v195, 0
    %v296 = vsel %vm291, %v196, 0
    %v299 = vsel %vm291, %v197, 0
    %v302 = vsel %vm291, %v198, 0
    %v305 = vsel %vm291, %v199, 0
    %v308 = vsel %vm291, %v200, 0
    %v311 = vsel %vm291, %v201, 0
    %v314 = vsel %vm291, %v202, 0
    %v317 = vsel %vm291, %v203, 0
    %v320 = vsel %vm291, %v204, 0
    %v323 = vsel %vm291, %v205, 0
    %v326 = vsel %vm291, %v206, 0
    %v329 = vsel %vm291, %v207, 0
    %v332 = vsel %vm291, %v208, 0
    %v335 = vsel %vm291, %v209, 0
    %v338 = vsel %vm291, %v210, 0
    %340 = vmatpush.bf16.msra.mxu0 0
    %341 = vmatpush.bf16.msra.mxu0 0
    %342 = vmatpush.bf16.msra.mxu0 0
    %343 = vmatpush.bf16.msra.mxu0 0
    %344 = vmatpush.bf16.msra.mxu0 %v271
    %345 = vmatpush.bf16.msra.mxu0 %v267
    %346 = vmatpush.bf16.msra.mxu0 %v263
    %347 = vmatpush.bf16.msra.mxu0 %v259
    %348 = vmatmul.bf16.gmra.mxu0 %v293
    %v349 = vpop.f32.mrf.mxu0
    %v350 = vadd.f32 %v123, %v349
    %v351 = vpop.f32.mrf.mxu0
    %v352 = vadd.f32 %v123, %v351
    %353 = vmatmul.bf16.gmra.mxu0 %v296
    %v354 = vpop.f32.mrf.mxu0
    %v355 = vadd.f32 %v123, %v354
    %v356 = vpop.f32.mrf.mxu0
    %v357 = vadd.f32 %v123, %v356
    %358 = vmatmul.bf16.gmra.mxu0 %v299
    %v359 = vpop.f32.mrf.mxu0
    %v360 = vadd.f32 %v123, %v359
    %v361 = vpop.f32.mrf.mxu0
    %v362 = vadd.f32 %v123, %v361
    %363 = vmatmul.bf16.gmra.mxu0 %v302
    %v364 = vpop.f32.mrf.mxu0
    %v365 = vadd.f32 %v123, %v364
    %v366 = vpop.f32.mrf.mxu0
    %v367 = vadd.f32 %v123, %v366
    %368 = vmatmul.bf16.gmra.mxu0 %v305
    %v369 = vpop.f32.mrf.mxu0
    %v370 = vadd.f32 %v123, %v369
    %v371 = vpop.f32.mrf.mxu0
    %v372 = vadd.f32 %v123, %v371
    %373 = vmatmul.bf16.gmra.mxu0 %v308
    %v374 = vpop.f32.mrf.mxu0
    %v375 = vadd.f32 %v123, %v374
    %v376 = vpop.f32.mrf.mxu0
    %v377 = vadd.f32 %v123, %v376
    %378 = vmatmul.bf16.gmra.mxu0 %v311
    %v379 = vpop.f32.mrf.mxu0
    %v380 = vadd.f32 %v123, %v379
    %v381 = vpop.f32.mrf.mxu0
    %v382 = vadd.f32 %v123, %v381
    %383 = vmatmul.bf16.gmra.mxu0 %v314
    %v384 = vpop.f32.mrf.mxu0
    %v385 = vadd.f32 %v123, %v384
    %v386 = vpop.f32.mrf.mxu0
    %v387 = vadd.f32 %v123, %v386
    %388 = vmatmul.bf16.gmra.mxu0 %v317
    %v389 = vpop.f32.mrf.mxu0
    %v390 = vadd.f32 %v123, %v389
    %v391 = vpop.f32.mrf.mxu0
    %v392 = vadd.f32 %v123, %v391
    %393 = vmatmul.bf16.gmra.mxu0 %v320
    %v394 = vpop.f32.mrf.mxu0
    %v395 = vadd.f32 %v123, %v394
    %v396 = vpop.f32.mrf.mxu0
    %v397 = vadd.f32 %v123, %v396
    %398 = vmatmul.bf16.gmra.mxu0 %v323
    %v399 = vpop.f32.mrf.mxu0
    %v400 = vadd.f32 %v123, %v399
    %v401 = vpop.f32.mrf.mxu0
    %v402 = vadd.f32 %v123, %v401
    %403 = vmatmul.bf16.gmra.mxu0 %v326
    %v404 = vpop.f32.mrf.mxu0
    %v405 = vadd.f32 %v123, %v404
    %v406 = vpop.f32.mrf.mxu0
    %v407 = vadd.f32 %v123, %v406
    %408 = vmatmul.bf16.gmra.mxu0 %v329
    %v409 = vpop.f32.mrf.mxu0
    %v410 = vadd.f32 %v123, %v409
    %v411 = vpop.f32.mrf.mxu0
    %v412 = vadd.f32 %v123, %v411
    %413 = vmatmul.bf16.gmra.mxu0 %v332
    %v414 = vpop.f32.mrf.mxu0
    %v415 = vadd.f32 %v123, %v414
    %v416 = vpop.f32.mrf.mxu0
    %v417 = vadd.f32 %v123, %v416
    %418 = vmatmul.bf16.gmra.mxu0 %v335
    %v419 = vpop.f32.mrf.mxu0
    %v420 = vadd.f32 %v123, %v419
    %v421 = vpop.f32.mrf.mxu0
    %v422 = vadd.f32 %v123, %v421
    %423 = vmatmul.bf16.gmra.mxu0 %v338
    %v424 = vpop.f32.mrf.mxu0
    %v425 = vadd.f32 %v123, %v424
    %v426 = vpop.f32.mrf.mxu0
    %v427 = vadd.f32 %v123, %v426
    %428 = vdwg.mxu0
    %429 = vmatpush.bf16.msra.mxu0 0
    %430 = vmatpush.bf16.msra.mxu0 0
    %431 = vmatpush.bf16.msra.mxu0 0
    %432 = vmatpush.bf16.msra.mxu0 0
    %433 = vmatpush.bf16.msra.mxu0 %v272
    %434 = vmatpush.bf16.msra.mxu0 %v268
    %435 = vmatpush.bf16.msra.mxu0 %v264
    %436 = vmatpush.bf16.msra.mxu0 %v260
    %437 = vmatmul.bf16.gmra.mxu0 %v293
    %v438 = vpop.f32.mrf.mxu0
    %v439 = vadd.f32 %v124, %v438
    %v440 = vpop.f32.mrf.mxu0
    %v441 = vadd.f32 %v124, %v440
    %442 = vmatmul.bf16.gmra.mxu0 %v296
    %v443 = vpop.f32.mrf.mxu0
    %v444 = vadd.f32 %v124, %v443
    %v445 = vpop.f32.mrf.mxu0
    %v446 = vadd.f32 %v124, %v445
    %447 = vmatmul.bf16.gmra.mxu0 %v299
    %v448 = vpop.f32.mrf.mxu0
    %v449 = vadd.f32 %v124, %v448
    %v450 = vpop.f32.mrf.mxu0
    %v451 = vadd.f32 %v124, %v450
    %452 = vmatmul.bf16.gmra.mxu0 %v302
    %v453 = vpop.f32.mrf.mxu0
    %v454 = vadd.f32 %v124, %v453
    %v455 = vpop.f32.mrf.mxu0
    %v456 = vadd.f32 %v124, %v455
    %457 = vmatmul.bf16.gmra.mxu0 %v305
    %v458 = vpop.f32.mrf.mxu0
    %v459 = vadd.f32 %v124, %v458
    %v460 = vpop.f32.mrf.mxu0
    %v461 = vadd.f32 %v124, %v460
    %462 = vmatmul.bf16.gmra.mxu0 %v308
    %v463 = vpop.f32.mrf.mxu0
    %v464 = vadd.f32 %v124, %v463
    %v465 = vpop.f32.mrf.mxu0
    %v466 = vadd.f32 %v124, %v465
    %467 = vmatmul.bf16.gmra.mxu0 %v311
    %v468 = vpop.f32.mrf.mxu0
    %v469 = vadd.f32 %v124, %v468
    %v470 = vpop.f32.mrf.mxu0
    %v471 = vadd.f32 %v124, %v470
    %472 = vmatmul.bf16.gmra.mxu0 %v314
    %v473 = vpop.f32.mrf.mxu0
    %v474 = vadd.f32 %v124, %v473
    %v475 = vpop.f32.mrf.mxu0
    %v476 = vadd.f32 %v124, %v475
    %477 = vmatmul.bf16.gmra.mxu0 %v317
    %v478 = vpop.f32.mrf.mxu0
    %v479 = vadd.f32 %v124, %v478
    %v480 = vpop.f32.mrf.mxu0
    %v481 = vadd.f32 %v124, %v480
    %482 = vmatmul.bf16.gmra.mxu0 %v320
    %v483 = vpop.f32.mrf.mxu0
    %v484 = vadd.f32 %v124, %v483
    %v485 = vpop.f32.mrf.mxu0
    %v486 = vadd.f32 %v124, %v485
    %487 = vmatmul.bf16.gmra.mxu0 %v323
    %v488 = vpop.f32.mrf.mxu0
    %v489 = vadd.f32 %v124, %v488
    %v490 = vpop.f32.mrf.mxu0
    %v491 = vadd.f32 %v124, %v490
    %492 = vmatmul.bf16.gmra.mxu0 %v326
    %v493 = vpop.f32.mrf.mxu0
    %v494 = vadd.f32 %v124, %v493
    %v495 = vpop.f32.mrf.mxu0
    %v496 = vadd.f32 %v124, %v495
    %497 = vmatmul.bf16.gmra.mxu0 %v329
    %v498 = vpop.f32.mrf.mxu0
    %v499 = vadd.f32 %v124, %v498
    %v500 = vpop.f32.mrf.mxu0
    %v501 = vadd.f32 %v124, %v500
    %502 = vmatmul.bf16.gmra.mxu0 %v332
    %v503 = vpop.f32.mrf.mxu0
    %v504 = vadd.f32 %v124, %v503
    %v505 = vpop.f32.mrf.mxu0
    %v506 = vadd.f32 %v124, %v505
    %507 = vmatmul.bf16.gmra.mxu0 %v335
    %v508 = vpop.f32.mrf.mxu0
    %v509 = vadd.f32 %v124, %v508
    %v510 = vpop.f32.mrf.mxu0
    %v511 = vadd.f32 %v124, %v510
    %512 = vmatmul.bf16.gmra.mxu0 %v338
    %v513 = vpop.f32.mrf.mxu0
    %v514 = vadd.f32 %v124, %v513
    %v515 = vpop.f32.mrf.mxu0
    %v516 = vadd.f32 %v124, %v515
    %517 = vdwg.mxu0
    %518 = vmatpush.bf16.msra.mxu0 0
    %519 = vmatpush.bf16.msra.mxu0 0
    %520 = vmatpush.bf16.msra.mxu0 0
    %521 = vmatpush.bf16.msra.mxu0 0
    %522 = vmatpush.bf16.msra.mxu0 %v273
    %523 = vmatpush.bf16.msra.mxu0 %v269
    %524 = vmatpush.bf16.msra.mxu0 %v265
    %525 = vmatpush.bf16.msra.mxu0 %v261
    %526 = vmatmul.bf16.gmra.mxu0 %v293
    %v527 = vpop.f32.mrf.mxu0
    %v528 = vadd.f32 %v125, %v527
    %v529 = vpop.f32.mrf.mxu0
    %v530 = vadd.f32 %v125, %v529
    %531 = vmatmul.bf16.gmra.mxu0 %v296
    %v532 = vpop.f32.mrf.mxu0
    %v533 = vadd.f32 %v125, %v532
    %v534 = vpop.f32.mrf.mxu0
    %v535 = vadd.f32 %v125, %v534
    %536 = vmatmul.bf16.gmra.mxu0 %v299
    %v537 = vpop.f32.mrf.mxu0
    %v538 = vadd.f32 %v125, %v537
    %v539 = vpop.f32.mrf.mxu0
    %v540 = vadd.f32 %v125, %v539
    %541 = vmatmul.bf16.gmra.mxu0 %v302
    %v542 = vpop.f32.mrf.mxu0
    %v543 = vadd.f32 %v125, %v542
    %v544 = vpop.f32.mrf.mxu0
    %v545 = vadd.f32 %v125, %v544
    %546 = vmatmul.bf16.gmra.mxu0 %v305
    %v547 = vpop.f32.mrf.mxu0
    %v548 = vadd.f32 %v125, %v547
    %v549 = vpop.f32.mrf.mxu0
    %v550 = vadd.f32 %v125, %v549
    %551 = vmatmul.bf16.gmra.mxu0 %v308
    %v552 = vpop.f32.mrf.mxu0
    %v553 = vadd.f32 %v125, %v552
    %v554 = vpop.f32.mrf.mxu0
    %v555 = vadd.f32 %v125, %v554
    %556 = vmatmul.bf16.gmra.mxu0 %v311
    %v557 = vpop.f32.mrf.mxu0
    %v558 = vadd.f32 %v125, %v557
    %v559 = vpop.f32.mrf.mxu0
    %v560 = vadd.f32 %v125, %v559
    %561 = vmatmul.bf16.gmra.mxu0 %v314
    %v562 = vpop.f32.mrf.mxu0
    %v563 = vadd.f32 %v125, %v562
    %v564 = vpop.f32.mrf.mxu0
    %v565 = vadd.f32 %v125, %v564
    %566 = vmatmul.bf16.gmra.mxu0 %v317
    %v567 = vpop.f32.mrf.mxu0
    %v568 = vadd.f32 %v125, %v567
    %v569 = vpop.f32.mrf.mxu0
    %v570 = vadd.f32 %v125, %v569
    %571 = vmatmul.bf16.gmra.mxu0 %v320
    %v572 = vpop.f32.mrf.mxu0
    %v573 = vadd.f32 %v125, %v572
    %v574 = vpop.f32.mrf.mxu0
    %v575 = vadd.f32 %v125, %v574
    %576 = vmatmul.bf16.gmra.mxu0 %v323
    %v577 = vpop.f32.mrf.mxu0
    %v578 = vadd.f32 %v125, %v577
    %v579 = vpop.f32.mrf.mxu0
    %v580 = vadd.f32 %v125, %v579
    %581 = vmatmul.bf16.gmra.mxu0 %v326
    %v582 = vpop.f32.mrf.mxu0
    %v583 = vadd.f32 %v125, %v582
    %v584 = vpop.f32.mrf.mxu0
    %v585 = vadd.f32 %v125, %v584
    %586 = vmatmul.bf16.gmra.mxu0 %v329
    %v587 = vpop.f32.mrf.mxu0
    %v588 = vadd.f32 %v125, %v587
    %v589 = vpop.f32.mrf.mxu0
    %v590 = vadd.f32 %v125, %v589
    %591 = vmatmul.bf16.gmra.mxu0 %v332
    %v592 = vpop.f32.mrf.mxu0
    %v593 = vadd.f32 %v125, %v592
    %v594 = vpop.f32.mrf.mxu0
    %v595 = vadd.f32 %v125, %v594
    %596 = vmatmul.bf16.gmra.mxu0 %v335
    %v597 = vpop.f32.mrf.mxu0
    %v598 = vadd.f32 %v125, %v597
    %v599 = vpop.f32.mrf.mxu0
    %v600 = vadd.f32 %v125, %v599
    %601 = vmatmul.bf16.gmra.mxu0 %v338
    %v602 = vpop.f32.mrf.mxu0
    %v603 = vadd.f32 %v125, %v602
    %v604 = vpop.f32.mrf.mxu0
    %v605 = vadd.f32 %v125, %v604
    %606 = vdwg.mxu0
    %607 = vmatpush.bf16.msra.mxu0 0
    %608 = vmatpush.bf16.msra.mxu0 0
    %609 = vmatpush.bf16.msra.mxu0 0
    %610 = vmatpush.bf16.msra.mxu0 0
    %611 = vmatpush.bf16.msra.mxu0 %v274
    %612 = vmatpush.bf16.msra.mxu0 %v270
    %613 = vmatpush.bf16.msra.mxu0 %v266
    %614 = vmatpush.bf16.msra.mxu0 %v262
    %615 = vmatmul.bf16.gmra.mxu0 %v293
    %v616 = vpop.f32.mrf.mxu0
    %v617 = vadd.f32 %v126, %v616
    %v618 = vpop.f32.mrf.mxu0
    %v619 = vadd.f32 %v126, %v618
    %620 = vmatmul.bf16.gmra.mxu0 %v296
    %v621 = vpop.f32.mrf.mxu0
    %v622 = vadd.f32 %v126, %v621
    %v623 = vpop.f32.mrf.mxu0
    %v624 = vadd.f32 %v126, %v623
    %625 = vmatmul.bf16.gmra.mxu0 %v299
    %v626 = vpop.f32.mrf.mxu0
    %v627 = vadd.f32 %v126, %v626
    %v628 = vpop.f32.mrf.mxu0
    %v629 = vadd.f32 %v126, %v628
    %630 = vmatmul.bf16.gmra.mxu0 %v302
    %v631 = vpop.f32.mrf.mxu0
    %v632 = vadd.f32 %v126, %v631
    %v633 = vpop.f32.mrf.mxu0
    %v634 = vadd.f32 %v126, %v633
    %635 = vmatmul.bf16.gmra.mxu0 %v305
    %v636 = vpop.f32.mrf.mxu0
    %v637 = vadd.f32 %v126, %v636
    %v638 = vpop.f32.mrf.mxu0
    %v639 = vadd.f32 %v126, %v638
    %640 = vmatmul.bf16.gmra.mxu0 %v308
    %v641 = vpop.f32.mrf.mxu0
    %v642 = vadd.f32 %v126, %v641
    %v643 = vpop.f32.mrf.mxu0
    %v644 = vadd.f32 %v126, %v643
    %645 = vmatmul.bf16.gmra.mxu0 %v311
    %v646 = vpop.f32.mrf.mxu0
    %v647 = vadd.f32 %v126, %v646
    %v648 = vpop.f32.mrf.mxu0
    %v649 = vadd.f32 %v126, %v648
    %650 = vmatmul.bf16.gmra.mxu0 %v314
    %v651 = vpop.f32.mrf.mxu0
    %v652 = vadd.f32 %v126, %v651
    %v653 = vpop.f32.mrf.mxu0
    %v654 = vadd.f32 %v126, %v653
    %655 = vmatmul.bf16.gmra.mxu0 %v317
    %v656 = vpop.f32.mrf.mxu0
    %v657 = vadd.f32 %v126, %v656
    %v658 = vpop.f32.mrf.mxu0
    %v659 = vadd.f32 %v126, %v658
    %660 = vmatmul.bf16.gmra.mxu0 %v320
    %v661 = vpop.f32.mrf.mxu0
    %v662 = vadd.f32 %v126, %v661
    %v663 = vpop.f32.mrf.mxu0
    %v664 = vadd.f32 %v126, %v663
    %665 = vmatmul.bf16.gmra.mxu0 %v323
    %v666 = vpop.f32.mrf.mxu0
    %v667 = vadd.f32 %v126, %v666
    %v668 = vpop.f32.mrf.mxu0
    %v669 = vadd.f32 %v126, %v668
    %670 = vmatmul.bf16.gmra.mxu0 %v326
    %v671 = vpop.f32.mrf.mxu0
    %v672 = vadd.f32 %v126, %v671
    %v673 = vpop.f32.mrf.mxu0
    %v674 = vadd.f32 %v126, %v673
    %675 = vmatmul.bf16.gmra.mxu0 %v329
    %v676 = vpop.f32.mrf.mxu0
    %v677 = vadd.f32 %v126, %v676
    %v678 = vpop.f32.mrf.mxu0
    %v679 = vadd.f32 %v126, %v678
    %680 = vmatmul.bf16.gmra.mxu0 %v332
    %v681 = vpop.f32.mrf.mxu0
    %v682 = vadd.f32 %v126, %v681
    %v683 = vpop.f32.mrf.mxu0
    %v684 = vadd.f32 %v126, %v683
    %685 = vmatmul.bf16.gmra.mxu0 %v335
    %v686 = vpop.f32.mrf.mxu0
    %v687 = vadd.f32 %v126, %v686
    %v688 = vpop.f32.mrf.mxu0
    %v689 = vadd.f32 %v126, %v688
    %690 = vmatmul.bf16.gmra.mxu0 %v338
    %v691 = vpop.f32.mrf.mxu0
    %v692 = vadd.f32 %v126, %v691
    %v693 = vpop.f32.mrf.mxu0
    %v694 = vadd.f32 %v126, %v693
    %695 = vdwg.mxu0
    %v696 = vpack.c.bf16 %v439, %v350
    %v697 = vpack.c.bf16 %v617, %v528
    %v698 = vpack.c.bf16 %v441, %v352
    %v699 = vpack.c.bf16 %v619, %v530
    %v700 = vpack.c.bf16 %v444, %v355
    %v701 = vpack.c.bf16 %v622, %v533
    %v702 = vpack.c.bf16 %v446, %v357
    %v703 = vpack.c.bf16 %v624, %v535
    %v704 = vpack.c.bf16 %v449, %v360
    %v705 = vpack.c.bf16 %v627, %v538
    %v706 = vpack.c.bf16 %v451, %v362
    %v707 = vpack.c.bf16 %v629, %v540
    %v708 = vpack.c.bf16 %v454, %v365
    %v709 = vpack.c.bf16 %v632, %v543
    %v710 = vpack.c.bf16 %v456, %v367
    %v711 = vpack.c.bf16 %v634, %v545
    %v712 = vpack.c.bf16 %v459, %v370
    %v713 = vpack.c.bf16 %v637, %v548
    %v714 = vpack.c.bf16 %v461, %v372
    %v715 = vpack.c.bf16 %v639, %v550
    %v716 = vpack.c.bf16 %v464, %v375
    %v717 = vpack.c.bf16 %v642, %v553
    %v718 = vpack.c.bf16 %v466, %v377
    %v719 = vpack.c.bf16 %v644, %v555
    %v720 = vpack.c.bf16 %v469, %v380
    %v721 = vpack.c.bf16 %v647, %v558
    %v722 = vpack.c.bf16 %v471, %v382
    %v723 = vpack.c.bf16 %v649, %v560
    %v724 = vpack.c.bf16 %v474, %v385
    %v725 = vpack.c.bf16 %v652, %v563
    %v726 = vpack.c.bf16 %v476, %v387
    %v727 = vpack.c.bf16 %v654, %v565
    %v728 = vpack.c.bf16 %v479, %v390
    %v729 = vpack.c.bf16 %v657, %v568
    %v730 = vpack.c.bf16 %v481, %v392
    %v731 = vpack.c.bf16 %v659, %v570
    %v732 = vpack.c.bf16 %v484, %v395
    %v733 = vpack.c.bf16 %v662, %v573
    %v734 = vpack.c.bf16 %v486, %v397
    %v735 = vpack.c.bf16 %v664, %v575
    %v736 = vpack.c.bf16 %v489, %v400
    %v737 = vpack.c.bf16 %v667, %v578
    %v738 = vpack.c.bf16 %v491, %v402
    %v739 = vpack.c.bf16 %v669, %v580
    %v740 = vpack.c.bf16 %v494, %v405
    %v741 = vpack.c.bf16 %v672, %v583
    %v742 = vpack.c.bf16 %v496, %v407
    %v743 = vpack.c.bf16 %v674, %v585
    %v744 = vpack.c.bf16 %v499, %v410
    %v745 = vpack.c.bf16 %v677, %v588
    %v746 = vpack.c.bf16 %v501, %v412
    %v747 = vpack.c.bf16 %v679, %v590
    %v748 = vpack.c.bf16 %v504, %v415
    %v749 = vpack.c.bf16 %v682, %v593
    %v750 = vpack.c.bf16 %v506, %v417
    %v751 = vpack.c.bf16 %v684, %v595
    %v752 = vpack.c.bf16 %v509, %v420
    %v753 = vpack.c.bf16 %v687, %v598
    %v754 = vpack.c.bf16 %v511, %v422
    %v755 = vpack.c.bf16 %v689, %v600
    %v756 = vpack.c.bf16 %v514, %v425
    %v757 = vpack.c.bf16 %v692, %v603
    %v758 = vpack.c.bf16 %v516, %v427
    %v759 = vpack.c.bf16 %v694, %v605
    %v760 = vunpack.c.l.bf16 %v696
    %v761 = vunpack.c.h.bf16 %v696
    %v762 = vunpack.c.l.bf16 %v697
    %v763 = vunpack.c.h.bf16 %v697
    %v764 = vunpack.c.l.bf16 %v698
    %v765 = vunpack.c.h.bf16 %v698
    %v766 = vunpack.c.l.bf16 %v699
    %v767 = vunpack.c.h.bf16 %v699
    %v768 = vunpack.c.l.bf16 %v700
    %v769 = vunpack.c.h.bf16 %v700
    %v770 = vunpack.c.l.bf16 %v701
    %v771 = vunpack.c.h.bf16 %v701
    %v772 = vunpack.c.l.bf16 %v702
    %v773 = vunpack.c.h.bf16 %v702
    %v774 = vunpack.c.l.bf16 %v703
    %v775 = vunpack.c.h.bf16 %v703
    %v776 = vunpack.c.l.bf16 %v704
    %v777 = vunpack.c.h.bf16 %v704
    %v778 = vunpack.c.l.bf16 %v705
    %v779 = vunpack.c.h.bf16 %v705
    %v780 = vunpack.c.l.bf16 %v706
    %v781 = vunpack.c.h.bf16 %v706
    %v782 = vunpack.c.l.bf16 %v707
    %v783 = vunpack.c.h.bf16 %v707
    %v784 = vunpack.c.l.bf16 %v708
    %v785 = vunpack.c.h.bf16 %v708
    %v786 = vunpack.c.l.bf16 %v709
    %v787 = vunpack.c.h.bf16 %v709
    %v788 = vunpack.c.l.bf16 %v710
    %v789 = vunpack.c.h.bf16 %v710
    %v790 = vunpack.c.l.bf16 %v711
    %v791 = vunpack.c.h.bf16 %v711
    %v792 = vunpack.c.l.bf16 %v712
    %v793 = vunpack.c.h.bf16 %v712
    %v794 = vunpack.c.l.bf16 %v713
    %v795 = vunpack.c.h.bf16 %v713
    %v796 = vunpack.c.l.bf16 %v714
    %v797 = vunpack.c.h.bf16 %v714
    %v798 = vunpack.c.l.bf16 %v715
    %v799 = vunpack.c.h.bf16 %v715
    %v800 = vunpack.c.l.bf16 %v716
    %v801 = vunpack.c.h.bf16 %v716
    %v802 = vunpack.c.l.bf16 %v717
    %v803 = vunpack.c.h.bf16 %v717
    %v804 = vunpack.c.l.bf16 %v718
    %v805 = vunpack.c.h.bf16 %v718
    %v806 = vunpack.c.l.bf16 %v719
    %v807 = vunpack.c.h.bf16 %v719
    %v808 = vunpack.c.l.bf16 %v720
    %v809 = vunpack.c.h.bf16 %v720
    %v810 = vunpack.c.l.bf16 %v721
    %v811 = vunpack.c.h.bf16 %v721
    %v812 = vunpack.c.l.bf16 %v722
    %v813 = vunpack.c.h.bf16 %v722
    %v814 = vunpack.c.l.bf16 %v723
    %v815 = vunpack.c.h.bf16 %v723
    %v816 = vunpack.c.l.bf16 %v724
    %v817 = vunpack.c.h.bf16 %v724
    %v818 = vunpack.c.l.bf16 %v725
    %v819 = vunpack.c.h.bf16 %v725
    %v820 = vunpack.c.l.bf16 %v726
    %v821 = vunpack.c.h.bf16 %v726
    %v822 = vunpack.c.l.bf16 %v727
    %v823 = vunpack.c.h.bf16 %v727
    %v824 = vunpack.c.l.bf16 %v728
    %v825 = vunpack.c.h.bf16 %v728
    %v826 = vunpack.c.l.bf16 %v729
    %v827 = vunpack.c.h.bf16 %v729
    %v828 = vunpack.c.l.bf16 %v730
    %v829 = vunpack.c.h.bf16 %v730
    %v830 = vunpack.c.l.bf16 %v731
    %v831 = vunpack.c.h.bf16 %v731
    %v832 = vunpack.c.l.bf16 %v732
    %v833 = vunpack.c.h.bf16 %v732
    %v834 = vunpack.c.l.bf16 %v733
    %v835 = vunpack.c.h.bf16 %v733
    %v836 = vunpack.c.l.bf16 %v734
    %v837 = vunpack.c.h.bf16 %v734
    %v838 = vunpack.c.l.bf16 %v735
    %v839 = vunpack.c.h.bf16 %v735
    %v840 = vunpack.c.l.bf16 %v736
    %v841 = vunpack.c.h.bf16 %v736
    %v842 = vunpack.c.l.bf16 %v737
    %v843 = vunpack.c.h.bf16 %v737
    %v844 = vunpack.c.l.bf16 %v738
    %v845 = vunpack.c.h.bf16 %v738
    %v846 = vunpack.c.l.bf16 %v739
    %v847 = vunpack.c.h.bf16 %v739
    %v848 = vunpack.c.l.bf16 %v740
    %v849 = vunpack.c.h.bf16 %v740
    %v850 = vunpack.c.l.bf16 %v741
    %v851 = vunpack.c.h.bf16 %v741
    %v852 = vunpack.c.l.bf16 %v742
    %v853 = vunpack.c.h.bf16 %v742
    %v854 = vunpack.c.l.bf16 %v743
    %v855 = vunpack.c.h.bf16 %v743
    %v856 = vunpack.c.l.bf16 %v744
    %v857 = vunpack.c.h.bf16 %v744
    %v858 = vunpack.c.l.bf16 %v745
    %v859 = vunpack.c.h.bf16 %v745
    %v860 = vunpack.c.l.bf16 %v746
    %v861 = vunpack.c.h.bf16 %v746
    %v862 = vunpack.c.l.bf16 %v747
    %v863 = vunpack.c.h.bf16 %v747
    %v864 = vunpack.c.l.bf16 %v748
    %v865 = vunpack.c.h.bf16 %v748
    %v866 = vunpack.c.l.bf16 %v749
    %v867 = vunpack.c.h.bf16 %v749
    %v868 = vunpack.c.l.bf16 %v750
    %v869 = vunpack.c.h.bf16 %v750
    %v870 = vunpack.c.l.bf16 %v751
    %v871 = vunpack.c.h.bf16 %v751
    %v872 = vunpack.c.l.bf16 %v752
    %v873 = vunpack.c.h.bf16 %v752
    %v874 = vunpack.c.l.bf16 %v753
    %v875 = vunpack.c.h.bf16 %v753
    %v876 = vunpack.c.l.bf16 %v754
    %v877 = vunpack.c.h.bf16 %v754
    %v878 = vunpack.c.l.bf16 %v755
    %v879 = vunpack.c.h.bf16 %v755
    %v880 = vunpack.c.l.bf16 %v756
    %v881 = vunpack.c.h.bf16 %v756
    %v882 = vunpack.c.l.bf16 %v757
    %v883 = vunpack.c.h.bf16 %v757
    %v884 = vunpack.c.l.bf16 %v758
    %v885 = vunpack.c.h.bf16 %v758
    %v886 = vunpack.c.l.bf16 %v759
    %v887 = vunpack.c.h.bf16 %v759
    %vm888 = vcmp.gt.f32.partialorder %v760, 0.0
    %vm889 = vcmp.gt.f32.partialorder %v761, 0.0
    %vm890 = vcmp.gt.f32.partialorder %v762, 0.0
    %vm891 = vcmp.gt.f32.partialorder %v763, 0.0
    %vm892 = vcmp.gt.f32.partialorder %v764, 0.0
    %vm893 = vcmp.gt.f32.partialorder %v765, 0.0
    %vm894 = vcmp.gt.f32.partialorder %v766, 0.0
    %vm895 = vcmp.gt.f32.partialorder %v767, 0.0
    %vm896 = vcmp.gt.f32.partialorder %v768, 0.0
    %vm897 = vcmp.gt.f32.partialorder %v769, 0.0
    %vm898 = vcmp.gt.f32.partialorder %v770, 0.0
    %vm899 = vcmp.gt.f32.partialorder %v771, 0.0
    %vm900 = vcmp.gt.f32.partialorder %v772, 0.0
    %vm901 = vcmp.gt.f32.partialorder %v773, 0.0
    %vm902 = vcmp.gt.f32.partialorder %v774, 0.0
    %vm903 = vcmp.gt.f32.partialorder %v775, 0.0
    %vm904 = vcmp.gt.f32.partialorder %v776, 0.0
    %vm905 = vcmp.gt.f32.partialorder %v777, 0.0
    %vm906 = vcmp.gt.f32.partialorder %v778, 0.0
    %vm907 = vcmp.gt.f32.partialorder %v779, 0.0
    %vm908 = vcmp.gt.f32.partialorder %v780, 0.0
    %vm909 = vcmp.gt.f32.partialorder %v781, 0.0
    %vm910 = vcmp.gt.f32.partialorder %v782, 0.0
    %vm911 = vcmp.gt.f32.partialorder %v783, 0.0
    %vm912 = vcmp.gt.f32.partialorder %v784, 0.0
    %vm913 = vcmp.gt.f32.partialorder %v785, 0.0
    %vm914 = vcmp.gt.f32.partialorder %v786, 0.0
    %vm915 = vcmp.gt.f32.partialorder %v787, 0.0
    %vm916 = vcmp.gt.f32.partialorder %v788, 0.0
    %vm917 = vcmp.gt.f32.partialorder %v789, 0.0
    %vm918 = vcmp.gt.f32.partialorder %v790, 0.0
    %vm919 = vcmp.gt.f32.partialorder %v791, 0.0
    %vm920 = vcmp.gt.f32.partialorder %v792, 0.0
    %vm921 = vcmp.gt.f32.partialorder %v793, 0.0
    %vm922 = vcmp.gt.f32.partialorder %v794, 0.0
    %vm923 = vcmp.gt.f32.partialorder %v795, 0.0
    %vm924 = vcmp.gt.f32.partialorder %v796, 0.0
    %vm925 = vcmp.gt.f32.partialorder %v797, 0.0
    %vm926 = vcmp.gt.f32.partialorder %v798, 0.0
    %vm927 = vcmp.gt.f32.partialorder %v799, 0.0
    %vm928 = vcmp.gt.f32.partialorder %v800, 0.0
    %vm929 = vcmp.gt.f32.partialorder %v801, 0.0
    %vm930 = vcmp.gt.f32.partialorder %v802, 0.0
    %vm931 = vcmp.gt.f32.partialorder %v803, 0.0
    %vm932 = vcmp.gt.f32.partialorder %v804, 0.0
    %vm933 = vcmp.gt.f32.partialorder %v805, 0.0
    %vm934 = vcmp.gt.f32.partialorder %v806, 0.0
    %vm935 = vcmp.gt.f32.partialorder %v807, 0.0
    %vm936 = vcmp.gt.f32.partialorder %v808, 0.0
    %vm937 = vcmp.gt.f32.partialorder %v809, 0.0
    %vm938 = vcmp.gt.f32.partialorder %v810, 0.0
    %vm939 = vcmp.gt.f32.partialorder %v811, 0.0
    %vm940 = vcmp.gt.f32.partialorder %v812, 0.0
    %vm941 = vcmp.gt.f32.partialorder %v813, 0.0
    %vm942 = vcmp.gt.f32.partialorder %v814, 0.0
    %vm943 = vcmp.gt.f32.partialorder %v815, 0.0
    %vm944 = vcmp.gt.f32.partialorder %v816, 0.0
    %vm945 = vcmp.gt.f32.partialorder %v817, 0.0
    %vm946 = vcmp.gt.f32.partialorder %v818, 0.0
    %vm947 = vcmp.gt.f32.partialorder %v819, 0.0
    %vm948 = vcmp.gt.f32.partialorder %v820, 0.0
    %vm949 = vcmp.gt.f32.partialorder %v821, 0.0
    %vm950 = vcmp.gt.f32.partialorder %v822, 0.0
    %vm951 = vcmp.gt.f32.partialorder %v823, 0.0
    %vm952 = vcmp.gt.f32.partialorder %v824, 0.0
    %vm953 = vcmp.gt.f32.partialorder %v825, 0.0
    %vm954 = vcmp.gt.f32.partialorder %v826, 0.0
    %vm955 = vcmp.gt.f32.partialorder %v827, 0.0
    %vm956 = vcmp.gt.f32.partialorder %v828, 0.0
    %vm957 = vcmp.gt.f32.partialorder %v829, 0.0
    %vm958 = vcmp.gt.f32.partialorder %v830, 0.0
    %vm959 = vcmp.gt.f32.partialorder %v831, 0.0
    %vm960 = vcmp.gt.f32.partialorder %v832, 0.0
    %vm961 = vcmp.gt.f32.partialorder %v833, 0.0
    %vm962 = vcmp.gt.f32.partialorder %v834, 0.0
    %vm963 = vcmp.gt.f32.partialorder %v835, 0.0
    %vm964 = vcmp.gt.f32.partialorder %v836, 0.0
    %vm965 = vcmp.gt.f32.partialorder %v837, 0.0
    %vm966 = vcmp.gt.f32.partialorder %v838, 0.0
    %vm967 = vcmp.gt.f32.partialorder %v839, 0.0
    %vm968 = vcmp.gt.f32.partialorder %v840, 0.0
    %vm969 = vcmp.gt.f32.partialorder %v841, 0.0
    %vm970 = vcmp.gt.f32.partialorder %v842, 0.0
    %vm971 = vcmp.gt.f32.partialorder %v843, 0.0
    %vm972 = vcmp.gt.f32.partialorder %v844, 0.0
    %vm973 = vcmp.gt.f32.partialorder %v845, 0.0
    %vm974 = vcmp.gt.f32.partialorder %v846, 0.0
    %vm975 = vcmp.gt.f32.partialorder %v847, 0.0
    %vm976 = vcmp.gt.f32.partialorder %v848, 0.0
    %vm977 = vcmp.gt.f32.partialorder %v849, 0.0
    %vm978 = vcmp.gt.f32.partialorder %v850, 0.0
    %vm979 = vcmp.gt.f32.partialorder %v851, 0.0
    %vm980 = vcmp.gt.f32.partialorder %v852, 0.0
    %vm981 = vcmp.gt.f32.partialorder %v853, 0.0
    %vm982 = vcmp.gt.f32.partialorder %v854, 0.0
    %vm983 = vcmp.gt.f32.partialorder %v855, 0.0
    %vm984 = vcmp.gt.f32.partialorder %v856, 0.0
    %vm985 = vcmp.gt.f32.partialorder %v857, 0.0
    %vm986 = vcmp.gt.f32.partialorder %v858, 0.0
    %vm987 = vcmp.gt.f32.partialorder %v859, 0.0
    %vm988 = vcmp.gt.f32.partialorder %v860, 0.0
    %vm989 = vcmp.gt.f32.partialorder %v861, 0.0
    %vm990 = vcmp.gt.f32.partialorder %v862, 0.0
    %vm991 = vcmp.gt.f32.partialorder %v863, 0.0
    %vm992 = vcmp.gt.f32.partialorder %v864, 0.0
    %vm993 = vcmp.gt.f32.partialorder %v865, 0.0
    %vm994 = vcmp.gt.f32.partialorder %v866, 0.0
    %vm995 = vcmp.gt.f32.partialorder %v867, 0.0
    %vm996 = vcmp.gt.f32.partialorder %v868, 0.0
    %vm997 = vcmp.gt.f32.partialorder %v869, 0.0
    %vm998 = vcmp.gt.f32.partialorder %v870, 0.0
    %vm999 = vcmp.gt.f32.partialorder %v871, 0.0
    %vm1000 = vcmp.gt.f32.partialorder %v872, 0.0
    %vm1001 = vcmp.gt.f32.partialorder %v873, 0.0
    %vm1002 = vcmp.gt.f32.partialorder %v874, 0.0
    %vm1003 = vcmp.gt.f32.partialorder %v875, 0.0
    %vm1004 = vcmp.gt.f32.partialorder %v876, 0.0
    %vm1005 = vcmp.gt.f32.partialorder %v877, 0.0
    %vm1006 = vcmp.gt.f32.partialorder %v878, 0.0
    %vm1007 = vcmp.gt.f32.partialorder %v879, 0.0
    %vm1008 = vcmp.gt.f32.partialorder %v880, 0.0
    %vm1009 = vcmp.gt.f32.partialorder %v881, 0.0
    %vm1010 = vcmp.gt.f32.partialorder %v882, 0.0
    %vm1011 = vcmp.gt.f32.partialorder %v883, 0.0
    %vm1012 = vcmp.gt.f32.partialorder %v884, 0.0
    %vm1013 = vcmp.gt.f32.partialorder %v885, 0.0
    %vm1014 = vcmp.gt.f32.partialorder %v886, 0.0
    %vm1015 = vcmp.gt.f32.partialorder %v887, 0.0
    %v1016 = vmul.f32 %v760, 1.442695
    %v1017 = vpow.pop %v1016
    %v1018 = vmul.f32 %v761, 1.442695
    %v1019 = vpow.pop %v1018
    %v1020 = vmul.f32 %v762, 1.442695
    %v1021 = vpow.pop %v1020
    %v1022 = vmul.f32 %v763, 1.442695
    %v1023 = vpow.pop %v1022
    %v1024 = vmul.f32 %v764, 1.442695
    %v1025 = vpow.pop %v1024
    %v1026 = vmul.f32 %v765, 1.442695
    %v1027 = vpow.pop %v1026
    %v1028 = vmul.f32 %v766, 1.442695
    %v1029 = vpow.pop %v1028
    %v1030 = vmul.f32 %v767, 1.442695
    %v1031 = vpow.pop %v1030
    %v1032 = vmul.f32 %v768, 1.442695
    %v1033 = vpow.pop %v1032
    %v1034 = vmul.f32 %v769, 1.442695
    %v1035 = vpow.pop %v1034
    %v1036 = vmul.f32 %v770, 1.442695
    %v1037 = vpow.pop %v1036
    %v1038 = vmul.f32 %v771, 1.442695
    %v1039 = vpow.pop %v1038
    %v1040 = vmul.f32 %v772, 1.442695
    %v1041 = vpow.pop %v1040
    %v1042 = vmul.f32 %v773, 1.442695
    %v1043 = vpow.pop %v1042
    %v1044 = vmul.f32 %v774, 1.442695
    %v1045 = vpow.pop %v1044
    %v1046 = vmul.f32 %v775, 1.442695
    %v1047 = vpow.pop %v1046
    %v1048 = vmul.f32 %v776, 1.442695
    %v1049 = vpow.pop %v1048
    %v1050 = vmul.f32 %v777, 1.442695
    %v1051 = vpow.pop %v1050
    %v1052 = vmul.f32 %v778, 1.442695
    %v1053 = vpow.pop %v1052
    %v1054 = vmul.f32 %v779, 1.442695
    %v1055 = vpow.pop %v1054
    %v1056 = vmul.f32 %v780, 1.442695
    %v1057 = vpow.pop %v1056
    %v1058 = vmul.f32 %v781, 1.442695
    %v1059 = vpow.pop %v1058
    %v1060 = vmul.f32 %v782, 1.442695
    %v1061 = vpow.pop %v1060
    %v1062 = vmul.f32 %v783, 1.442695
    %v1063 = vpow.pop %v1062
    %v1064 = vmul.f32 %v784, 1.442695
    %v1065 = vpow.pop %v1064
    %v1066 = vmul.f32 %v785, 1.442695
    %v1067 = vpow.pop %v1066
    %v1068 = vmul.f32 %v786, 1.442695
    %v1069 = vpow.pop %v1068
    %v1070 = vmul.f32 %v787, 1.442695
    %v1071 = vpow.pop %v1070
    %v1072 = vmul.f32 %v788, 1.442695
    %v1073 = vpow.pop %v1072
    %v1074 = vmul.f32 %v789, 1.442695
    %v1075 = vpow.pop %v1074
    %v1076 = vmul.f32 %v790, 1.442695
    %v1077 = vpow.pop %v1076
    %v1078 = vmul.f32 %v791, 1.442695
    %v1079 = vpow.pop %v1078
    %v1080 = vmul.f32 %v792, 1.442695
    %v1081 = vpow.pop %v1080
    %v1082 = vmul.f32 %v793, 1.442695
    %v1083 = vpow.pop %v1082
    %v1084 = vmul.f32 %v794, 1.442695
    %v1085 = vpow.pop %v1084
    %v1086 = vmul.f32 %v795, 1.442695
    %v1087 = vpow.pop %v1086
    %v1088 = vmul.f32 %v796, 1.442695
    %v1089 = vpow.pop %v1088
    %v1090 = vmul.f32 %v797, 1.442695
    %v1091 = vpow.pop %v1090
    %v1092 = vmul.f32 %v798, 1.442695
    %v1093 = vpow.pop %v1092
    %v1094 = vmul.f32 %v799, 1.442695
    %v1095 = vpow.pop %v1094
    %v1096 = vmul.f32 %v800, 1.442695
    %v1097 = vpow.pop %v1096
    %v1098 = vmul.f32 %v801, 1.442695
    %v1099 = vpow.pop %v1098
    %v1100 = vmul.f32 %v802, 1.442695
    %v1101 = vpow.pop %v1100
    %v1102 = vmul.f32 %v803, 1.442695
    %v1103 = vpow.pop %v1102
    %v1104 = vmul.f32 %v804, 1.442695
    %v1105 = vpow.pop %v1104
    %v1106 = vmul.f32 %v805, 1.442695
    %v1107 = vpow.pop %v1106
    %v1108 = vmul.f32 %v806, 1.442695
    %v1109 = vpow.pop %v1108
    %v1110 = vmul.f32 %v807, 1.442695
    %v1111 = vpow.pop %v1110
    %v1112 = vmul.f32 %v808, 1.442695
    %v1113 = vpow.pop %v1112
    %v1114 = vmul.f32 %v809, 1.442695
    %v1115 = vpow.pop %v1114
    %v1116 = vmul.f32 %v810, 1.442695
    %v1117 = vpow.pop %v1116
    %v1118 = vmul.f32 %v811, 1.442695
    %v1119 = vpow.pop %v1118
    %v1120 = vmul.f32 %v812, 1.442695
    %v1121 = vpow.pop %v1120
    %v1122 = vmul.f32 %v813, 1.442695
    %v1123 = vpow.pop %v1122
    %v1124 = vmul.f32 %v814, 1.442695
    %v1125 = vpow.pop %v1124
    %v1126 = vmul.f32 %v815, 1.442695
    %v1127 = vpow.pop %v1126
    %v1128 = vmul.f32 %v816, 1.442695
    %v1129 = vpow.pop %v1128
    %v1130 = vmul.f32 %v817, 1.442695
    %v1131 = vpow.pop %v1130
    %v1132 = vmul.f32 %v818, 1.442695
    %v1133 = vpow.pop %v1132
    %v1134 = vmul.f32 %v819, 1.442695
    %v1135 = vpow.pop %v1134
    %v1136 = vmul.f32 %v820, 1.442695
    %v1137 = vpow.pop %v1136
    %v1138 = vmul.f32 %v821, 1.442695
    %v1139 = vpow.pop %v1138
    %v1140 = vmul.f32 %v822, 1.442695
    %v1141 = vpow.pop %v1140
    %v1142 = vmul.f32 %v823, 1.442695
    %v1143 = vpow.pop %v1142
    %v1144 = vmul.f32 %v824, 1.442695
    %v1145 = vpow.pop %v1144
    %v1146 = vmul.f32 %v825, 1.442695
    %v1147 = vpow.pop %v1146
    %v1148 = vmul.f32 %v826, 1.442695
    %v1149 = vpow.pop %v1148
    %v1150 = vmul.f32 %v827, 1.442695
    %v1151 = vpow.pop %v1150
    %v1152 = vmul.f32 %v828, 1.442695
    %v1153 = vpow.pop %v1152
    %v1154 = vmul.f32 %v829, 1.442695
    %v1155 = vpow.pop %v1154
    %v1156 = vmul.f32 %v830, 1.442695
    %v1157 = vpow.pop %v1156
    %v1158 = vmul.f32 %v831, 1.442695
    %v1159 = vpow.pop %v1158
    %v1160 = vmul.f32 %v832, 1.442695
    %v1161 = vpow.pop %v1160
    %v1162 = vmul.f32 %v833, 1.442695
    %v1163 = vpow.pop %v1162
    %v1164 = vmul.f32 %v834, 1.442695
    %v1165 = vpow.pop %v1164
    %v1166 = vmul.f32 %v835, 1.442695
    %v1167 = vpow.pop %v1166
    %v1168 = vmul.f32 %v836, 1.442695
    %v1169 = vpow.pop %v1168
    %v1170 = vmul.f32 %v837, 1.442695
    %v1171 = vpow.pop %v1170
    %v1172 = vmul.f32 %v838, 1.442695
    %v1173 = vpow.pop %v1172
    %v1174 = vmul.f32 %v839, 1.442695
    %v1175 = vpow.pop %v1174
    %v1176 = vmul.f32 %v840, 1.442695
    %v1177 = vpow.pop %v1176
    %v1178 = vmul.f32 %v841, 1.442695
    %v1179 = vpow.pop %v1178
    %v1180 = vmul.f32 %v842, 1.442695
    %v1181 = vpow.pop %v1180
    %v1182 = vmul.f32 %v843, 1.442695
    %v1183 = vpow.pop %v1182
    %v1184 = vmul.f32 %v844, 1.442695
    %v1185 = vpow.pop %v1184
    %v1186 = vmul.f32 %v845, 1.442695
    %v1187 = vpow.pop %v1186
    %v1188 = vmul.f32 %v846, 1.442695
    %v1189 = vpow.pop %v1188
    %v1190 = vmul.f32 %v847, 1.442695
    %v1191 = vpow.pop %v1190
    %v1192 = vmul.f32 %v848, 1.442695
    %v1193 = vpow.pop %v1192
    %v1194 = vmul.f32 %v849, 1.442695
    %v1195 = vpow.pop %v1194
    %v1196 = vmul.f32 %v850, 1.442695
    %v1197 = vpow.pop %v1196
    %v1198 = vmul.f32 %v851, 1.442695
    %v1199 = vpow.pop %v1198
    %v1200 = vmul.f32 %v852, 1.442695
    %v1201 = vpow.pop %v1200
    %v1202 = vmul.f32 %v853, 1.442695
    %v1203 = vpow.pop %v1202
    %v1204 = vmul.f32 %v854, 1.442695
    %v1205 = vpow.pop %v1204
    %v1206 = vmul.f32 %v855, 1.442695
    %v1207 = vpow.pop %v1206
    %v1208 = vmul.f32 %v856, 1.442695
    %v1209 = vpow.pop %v1208
    %v1210 = vmul.f32 %v857, 1.442695
    %v1211 = vpow.pop %v1210
    %v1212 = vmul.f32 %v858, 1.442695
    %v1213 = vpow.pop %v1212
    %v1214 = vmul.f32 %v859, 1.442695
    %v1215 = vpow.pop %v1214
    %v1216 = vmul.f32 %v860, 1.442695
    %v1217 = vpow.pop %v1216
    %v1218 = vmul.f32 %v861, 1.442695
    %v1219 = vpow.pop %v1218
    %v1220 = vmul.f32 %v862, 1.442695
    %v1221 = vpow.pop %v1220
    %v1222 = vmul.f32 %v863, 1.442695
    %v1223 = vpow.pop %v1222
    %v1224 = vmul.f32 %v864, 1.442695
    %v1225 = vpow.pop %v1224
    %v1226 = vmul.f32 %v865, 1.442695
    %v1227 = vpow.pop %v1226
    %v1228 = vmul.f32 %v866, 1.442695
    %v1229 = vpow.pop %v1228
    %v1230 = vmul.f32 %v867, 1.442695
    %v1231 = vpow.pop %v1230
    %v1232 = vmul.f32 %v868, 1.442695
    %v1233 = vpow.pop %v1232
    %v1234 = vmul.f32 %v869, 1.442695
    %v1235 = vpow.pop %v1234
    %v1236 = vmul.f32 %v870, 1.442695
    %v1237 = vpow.pop %v1236
    %v1238 = vmul.f32 %v871, 1.442695
    %v1239 = vpow.pop %v1238
    %v1240 = vmul.f32 %v872, 1.442695
    %v1241 = vpow.pop %v1240
    %v1242 = vmul.f32 %v873, 1.442695
    %v1243 = vpow.pop %v1242
    %v1244 = vmul.f32 %v874, 1.442695
    %v1245 = vpow.pop %v1244
    %v1246 = vmul.f32 %v875, 1.442695
    %v1247 = vpow.pop %v1246
    %v1248 = vmul.f32 %v876, 1.442695
    %v1249 = vpow.pop %v1248
    %v1250 = vmul.f32 %v877, 1.442695
    %v1251 = vpow.pop %v1250
    %v1252 = vmul.f32 %v878, 1.442695
    %v1253 = vpow.pop %v1252
    %v1254 = vmul.f32 %v879, 1.442695
    %v1255 = vpow.pop %v1254
    %v1256 = vmul.f32 %v880, 1.442695
    %v1257 = vpow.pop %v1256
    %v1258 = vmul.f32 %v881, 1.442695
    %v1259 = vpow.pop %v1258
    %v1260 = vmul.f32 %v882, 1.442695
    %v1261 = vpow.pop %v1260
    %v1262 = vmul.f32 %v883, 1.442695
    %v1263 = vpow.pop %v1262
    %v1264 = vmul.f32 %v884, 1.442695
    %v1265 = vpow.pop %v1264
    %v1266 = vmul.f32 %v885, 1.442695
    %v1267 = vpow.pop %v1266
    %v1268 = vmul.f32 %v886, 1.442695
    %v1269 = vpow.pop %v1268
    %v1270 = vmul.f32 %v887, 1.442695
    %v1271 = vpow.pop %v1270
    %v1272 = vpack.c.bf16 %v1019, %v1017
    %v1273 = vpack.c.bf16 %v1023, %v1021
    %v1274 = vpack.c.bf16 %v1027, %v1025
    %v1275 = vpack.c.bf16 %v1031, %v1029
    %v1276 = vpack.c.bf16 %v1035, %v1033
    %v1277 = vpack.c.bf16 %v1039, %v1037
    %v1278 = vpack.c.bf16 %v1043, %v1041
    %v1279 = vpack.c.bf16 %v1047, %v1045
    %v1280 = vpack.c.bf16 %v1051, %v1049
    %v1281 = vpack.c.bf16 %v1055, %v1053
    %v1282 = vpack.c.bf16 %v1059, %v1057
    %v1283 = vpack.c.bf16 %v1063, %v1061
    %v1284 = vpack.c.bf16 %v1067, %v1065
    %v1285 = vpack.c.bf16 %v1071, %v1069
    %v1286 = vpack.c.bf16 %v1075, %v1073
    %v1287 = vpack.c.bf16 %v1079, %v1077
    %v1288 = vpack.c.bf16 %v1083, %v1081
    %v1289 = vpack.c.bf16 %v1087, %v1085
    %v1290 = vpack.c.bf16 %v1091, %v1089
    %v1291 = vpack.c.bf16 %v1095, %v1093
    %v1292 = vpack.c.bf16 %v1099, %v1097
    %v1293 = vpack.c.bf16 %v1103, %v1101
    %v1294 = vpack.c.bf16 %v1107, %v1105
    %v1295 = vpack.c.bf16 %v1111, %v1109
    %v1296 = vpack.c.bf16 %v1115, %v1113
    %v1297 = vpack.c.bf16 %v1119, %v1117
    %v1298 = vpack.c.bf16 %v1123, %v1121
    %v1299 = vpack.c.bf16 %v1127, %v1125
    %v1300 = vpack.c.bf16 %v1131, %v1129
    %v1301 = vpack.c.bf16 %v1135, %v1133
    %v1302 = vpack.c.bf16 %v1139, %v1137
    %v1303 = vpack.c.bf16 %v1143, %v1141
    %v1304 = vpack.c.bf16 %v1147, %v1145
    %v1305 = vpack.c.bf16 %v1151, %v1149
    %v1306 = vpack.c.bf16 %v1155, %v1153
    %v1307 = vpack.c.bf16 %v1159, %v1157
    %v1308 = vpack.c.bf16 %v1163, %v1161
    %v1309 = vpack.c.bf16 %v1167, %v1165
    %v1310 = vpack.c.bf16 %v1171, %v1169
    %v1311 = vpack.c.bf16 %v1175, %v1173
    %v1312 = vpack.c.bf16 %v1179, %v1177
    %v1313 = vpack.c.bf16 %v1183, %v1181
    %v1314 = vpack.c.bf16 %v1187, %v1185
    %v1315 = vpack.c.bf16 %v1191, %v1189
    %v1316 = vpack.c.bf16 %v1195, %v1193
    %v1317 = vpack.c.bf16 %v1199, %v1197
    %v1318 = vpack.c.bf16 %v1203, %v1201
    %v1319 = vpack.c.bf16 %v1207, %v1205
    %v1320 = vpack.c.bf16 %v1211, %v1209
    %v1321 = vpack.c.bf16 %v1215, %v1213
    %v1322 = vpack.c.bf16 %v1219, %v1217
    %v1323 = vpack.c.bf16 %v1223, %v1221
    %v1324 = vpack.c.bf16 %v1227, %v1225
    %v1325 = vpack.c.bf16 %v1231, %v1229
    %v1326 = vpack.c.bf16 %v1235, %v1233
    %v1327 = vpack.c.bf16 %v1239, %v1237
    %v1328 = vpack.c.bf16 %v1243, %v1241
    %v1329 = vpack.c.bf16 %v1247, %v1245
    %v1330 = vpack.c.bf16 %v1251, %v1249
    %v1331 = vpack.c.bf16 %v1255, %v1253
    %v1332 = vpack.c.bf16 %v1259, %v1257
    %v1333 = vpack.c.bf16 %v1263, %v1261
    %v1334 = vpack.c.bf16 %v1267, %v1265
    %v1335 = vpack.c.bf16 %v1271, %v1269
    %v1336 = vunpack.c.l.bf16 %v1272
    %v1337 = vunpack.c.h.bf16 %v1272
    %v1338 = vunpack.c.l.bf16 %v1273
    %v1339 = vunpack.c.h.bf16 %v1273
    %v1340 = vunpack.c.l.bf16 %v1274
    %v1341 = vunpack.c.h.bf16 %v1274
    %v1342 = vunpack.c.l.bf16 %v1275
    %v1343 = vunpack.c.h.bf16 %v1275
    %v1344 = vunpack.c.l.bf16 %v1276
    %v1345 = vunpack.c.h.bf16 %v1276
    %v1346 = vunpack.c.l.bf16 %v1277
    %v1347 = vunpack.c.h.bf16 %v1277
    %v1348 = vunpack.c.l.bf16 %v1278
    %v1349 = vunpack.c.h.bf16 %v1278
    %v1350 = vunpack.c.l.bf16 %v1279
    %v1351 = vunpack.c.h.bf16 %v1279
    %v1352 = vunpack.c.l.bf16 %v1280
    %v1353 = vunpack.c.h.bf16 %v1280
    %v1354 = vunpack.c.l.bf16 %v1281
    %v1355 = vunpack.c.h.bf16 %v1281
    %v1356 = vunpack.c.l.bf16 %v1282
    %v1357 = vunpack.c.h.bf16 %v1282
    %v1358 = vunpack.c.l.bf16 %v1283
    %v1359 = vunpack.c.h.bf16 %v1283
    %v1360 = vunpack.c.l.bf16 %v1284
    %v1361 = vunpack.c.h.bf16 %v1284
    %v1362 = vunpack.c.l.bf16 %v1285
    %v1363 = vunpack.c.h.bf16 %v1285
    %v1364 = vunpack.c.l.bf16 %v1286
    %v1365 = vunpack.c.h.bf16 %v1286
    %v1366 = vunpack.c.l.bf16 %v1287
    %v1367 = vunpack.c.h.bf16 %v1287
    %v1368 = vunpack.c.l.bf16 %v1288
    %v1369 = vunpack.c.h.bf16 %v1288
    %v1370 = vunpack.c.l.bf16 %v1289
    %v1371 = vunpack.c.h.bf16 %v1289
    %v1372 = vunpack.c.l.bf16 %v1290
    %v1373 = vunpack.c.h.bf16 %v1290
    %v1374 = vunpack.c.l.bf16 %v1291
    %v1375 = vunpack.c.h.bf16 %v1291
    %v1376 = vunpack.c.l.bf16 %v1292
    %v1377 = vunpack.c.h.bf16 %v1292
    %v1378 = vunpack.c.l.bf16 %v1293
    %v1379 = vunpack.c.h.bf16 %v1293
    %v1380 = vunpack.c.l.bf16 %v1294
    %v1381 = vunpack.c.h.bf16 %v1294
    %v1382 = vunpack.c.l.bf16 %v1295
    %v1383 = vunpack.c.h.bf16 %v1295
    %v1384 = vunpack.c.l.bf16 %v1296
    %v1385 = vunpack.c.h.bf16 %v1296
    %v1386 = vunpack.c.l.bf16 %v1297
    %v1387 = vunpack.c.h.bf16 %v1297
    %v1388 = vunpack.c.l.bf16 %v1298
    %v1389 = vunpack.c.h.bf16 %v1298
    %v1390 = vunpack.c.l.bf16 %v1299
    %v1391 = vunpack.c.h.bf16 %v1299
    %v1392 = vunpack.c.l.bf16 %v1300
    %v1393 = vunpack.c.h.bf16 %v1300
    %v1394 = vunpack.c.l.bf16 %v1301
    %v1395 = vunpack.c.h.bf16 %v1301
    %v1396 = vunpack.c.l.bf16 %v1302
    %v1397 = vunpack.c.h.bf16 %v1302
    %v1398 = vunpack.c.l.bf16 %v1303
    %v1399 = vunpack.c.h.bf16 %v1303
    %v1400 = vunpack.c.l.bf16 %v1304
    %v1401 = vunpack.c.h.bf16 %v1304
    %v1402 = vunpack.c.l.bf16 %v1305
    %v1403 = vunpack.c.h.bf16 %v1305
    %v1404 = vunpack.c.l.bf16 %v1306
    %v1405 = vunpack.c.h.bf16 %v1306
    %v1406 = vunpack.c.l.bf16 %v1307
    %v1407 = vunpack.c.h.bf16 %v1307
    %v1408 = vunpack.c.l.bf16 %v1308
    %v1409 = vunpack.c.h.bf16 %v1308
    %v1410 = vunpack.c.l.bf16 %v1309
    %v1411 = vunpack.c.h.bf16 %v1309
    %v1412 = vunpack.c.l.bf16 %v1310
    %v1413 = vunpack.c.h.bf16 %v1310
    %v1414 = vunpack.c.l.bf16 %v1311
    %v1415 = vunpack.c.h.bf16 %v1311
    %v1416 = vunpack.c.l.bf16 %v1312
    %v1417 = vunpack.c.h.bf16 %v1312
    %v1418 = vunpack.c.l.bf16 %v1313
    %v1419 = vunpack.c.h.bf16 %v1313
    %v1420 = vunpack.c.l.bf16 %v1314
    %v1421 = vunpack.c.h.bf16 %v1314
    %v1422 = vunpack.c.l.bf16 %v1315
    %v1423 = vunpack.c.h.bf16 %v1315
    %v1424 = vunpack.c.l.bf16 %v1316
    %v1425 = vunpack.c.h.bf16 %v1316
    %v1426 = vunpack.c.l.bf16 %v1317
    %v1427 = vunpack.c.h.bf16 %v1317
    %v1428 = vunpack.c.l.bf16 %v1318
    %v1429 = vunpack.c.h.bf16 %v1318
    %v1430 = vunpack.c.l.bf16 %v1319
    %v1431 = vunpack.c.h.bf16 %v1319
    %v1432 = vunpack.c.l.bf16 %v1320
    %v1433 = vunpack.c.h.bf16 %v1320
    %v1434 = vunpack.c.l.bf16 %v1321
    %v1435 = vunpack.c.h.bf16 %v1321
    %v1436 = vunpack.c.l.bf16 %v1322
    %v1437 = vunpack.c.h.bf16 %v1322
    %v1438 = vunpack.c.l.bf16 %v1323
    %v1439 = vunpack.c.h.bf16 %v1323
    %v1440 = vunpack.c.l.bf16 %v1324
    %v1441 = vunpack.c.h.bf16 %v1324
    %v1442 = vunpack.c.l.bf16 %v1325
    %v1443 = vunpack.c.h.bf16 %v1325
    %v1444 = vunpack.c.l.bf16 %v1326
    %v1445 = vunpack.c.h.bf16 %v1326
    %v1446 = vunpack.c.l.bf16 %v1327
    %v1447 = vunpack.c.h.bf16 %v1327
    %v1448 = vunpack.c.l.bf16 %v1328
    %v1449 = vunpack.c.h.bf16 %v1328
    %v1450 = vunpack.c.l.bf16 %v1329
    %v1451 = vunpack.c.h.bf16 %v1329
    %v1452 = vunpack.c.l.bf16 %v1330
    %v1453 = vunpack.c.h.bf16 %v1330
    %v1454 = vunpack.c.l.bf16 %v1331
    %v1455 = vunpack.c.h.bf16 %v1331
    %v1456 = vunpack.c.l.bf16 %v1332
    %v1457 = vunpack.c.h.bf16 %v1332
    %v1458 = vunpack.c.l.bf16 %v1333
    %v1459 = vunpack.c.h.bf16 %v1333
    %v1460 = vunpack.c.l.bf16 %v1334
    %v1461 = vunpack.c.h.bf16 %v1334
    %v1462 = vunpack.c.l.bf16 %v1335
    %v1463 = vunpack.c.h.bf16 %v1335
    %v1464 = vsub.f32 %v1336, 1.0
    %v1465 = vsub.f32 %v1337, 1.0
    %v1466 = vsub.f32 %v1338, 1.0
    %v1467 = vsub.f32 %v1339, 1.0
    %v1468 = vsub.f32 %v1340, 1.0
    %v1469 = vsub.f32 %v1341, 1.0
    %v1470 = vsub.f32 %v1342, 1.0
    %v1471 = vsub.f32 %v1343, 1.0
    %v1472 = vsub.f32 %v1344, 1.0
    %v1473 = vsub.f32 %v1345, 1.0
    %v1474 = vsub.f32 %v1346, 1.0
    %v1475 = vsub.f32 %v1347, 1.0
    %v1476 = vsub.f32 %v1348, 1.0
    %v1477 = vsub.f32 %v1349, 1.0
    %v1478 = vsub.f32 %v1350, 1.0
    %v1479 = vsub.f32 %v1351, 1.0
    %v1480 = vsub.f32 %v1352, 1.0
    %v1481 = vsub.f32 %v1353, 1.0
    %v1482 = vsub.f32 %v1354, 1.0
    %v1483 = vsub.f32 %v1355, 1.0
    %v1484 = vsub.f32 %v1356, 1.0
    %v1485 = vsub.f32 %v1357, 1.0
    %v1486 = vsub.f32 %v1358, 1.0
    %v1487 = vsub.f32 %v1359, 1.0
    %v1488 = vsub.f32 %v1360, 1.0
    %v1489 = vsub.f32 %v1361, 1.0
    %v1490 = vsub.f32 %v1362, 1.0
    %v1491 = vsub.f32 %v1363, 1.0
    %v1492 = vsub.f32 %v1364, 1.0
    %v1493 = vsub.f32 %v1365, 1.0
    %v1494 = vsub.f32 %v1366, 1.0
    %v1495 = vsub.f32 %v1367, 1.0
    %v1496 = vsub.f32 %v1368, 1.0
    %v1497 = vsub.f32 %v1369, 1.0
    %v1498 = vsub.f32 %v1370, 1.0
    %v1499 = vsub.f32 %v1371, 1.0
    %v1500 = vsub.f32 %v1372, 1.0
    %v1501 = vsub.f32 %v1373, 1.0
    %v1502 = vsub.f32 %v1374, 1.0
    %v1503 = vsub.f32 %v1375, 1.0
    %v1504 = vsub.f32 %v1376, 1.0
    %v1505 = vsub.f32 %v1377, 1.0
    %v1506 = vsub.f32 %v1378, 1.0
    %v1507 = vsub.f32 %v1379, 1.0
    %v1508 = vsub.f32 %v1380, 1.0
    %v1509 = vsub.f32 %v1381, 1.0
    %v1510 = vsub.f32 %v1382, 1.0
    %v1511 = vsub.f32 %v1383, 1.0
    %v1512 = vsub.f32 %v1384, 1.0
    %v1513 = vsub.f32 %v1385, 1.0
    %v1514 = vsub.f32 %v1386, 1.0
    %v1515 = vsub.f32 %v1387, 1.0
    %v1516 = vsub.f32 %v1388, 1.0
    %v1517 = vsub.f32 %v1389, 1.0
    %v1518 = vsub.f32 %v1390, 1.0
    %v1519 = vsub.f32 %v1391, 1.0
    %v1520 = vsub.f32 %v1392, 1.0
    %v1521 = vsub.f32 %v1393, 1.0
    %v1522 = vsub.f32 %v1394, 1.0
    %v1523 = vsub.f32 %v1395, 1.0
    %v1524 = vsub.f32 %v1396, 1.0
    %v1525 = vsub.f32 %v1397, 1.0
    %v1526 = vsub.f32 %v1398, 1.0
    %v1527 = vsub.f32 %v1399, 1.0
    %v1528 = vsub.f32 %v1400, 1.0
    %v1529 = vsub.f32 %v1401, 1.0
    %v1530 = vsub.f32 %v1402, 1.0
    %v1531 = vsub.f32 %v1403, 1.0
    %v1532 = vsub.f32 %v1404, 1.0
    %v1533 = vsub.f32 %v1405, 1.0
    %v1534 = vsub.f32 %v1406, 1.0
    %v1535 = vsub.f32 %v1407, 1.0
    %v1536 = vsub.f32 %v1408, 1.0
    %v1537 = vsub.f32 %v1409, 1.0
    %v1538 = vsub.f32 %v1410, 1.0
    %v1539 = vsub.f32 %v1411, 1.0
    %v1540 = vsub.f32 %v1412, 1.0
    %v1541 = vsub.f32 %v1413, 1.0
    %v1542 = vsub.f32 %v1414, 1.0
    %v1543 = vsub.f32 %v1415, 1.0
    %v1544 = vsub.f32 %v1416, 1.0
    %v1545 = vsub.f32 %v1417, 1.0
    %v1546 = vsub.f32 %v1418, 1.0
    %v1547 = vsub.f32 %v1419, 1.0
    %v1548 = vsub.f32 %v1420, 1.0
    %v1549 = vsub.f32 %v1421, 1.0
    %v1550 = vsub.f32 %v1422, 1.0
    %v1551 = vsub.f32 %v1423, 1.0
    %v1552 = vsub.f32 %v1424, 1.0
    %v1553 = vsub.f32 %v1425, 1.0
    %v1554 = vsub.f32 %v1426, 1.0
    %v1555 = vsub.f32 %v1427, 1.0
    %v1556 = vsub.f32 %v1428, 1.0
    %v1557 = vsub.f32 %v1429, 1.0
    %v1558 = vsub.f32 %v1430, 1.0
    %v1559 = vsub.f32 %v1431, 1.0
    %v1560 = vsub.f32 %v1432, 1.0
    %v1561 = vsub.f32 %v1433, 1.0
    %v1562 = vsub.f32 %v1434, 1.0
    %v1563 = vsub.f32 %v1435, 1.0
    %v1564 = vsub.f32 %v1436, 1.0
    %v1565 = vsub.f32 %v1437, 1.0
    %v1566 = vsub.f32 %v1438, 1.0
    %v1567 = vsub.f32 %v1439, 1.0
    %v1568 = vsub.f32 %v1440, 1.0
    %v1569 = vsub.f32 %v1441, 1.0
    %v1570 = vsub.f32 %v1442, 1.0
    %v1571 = vsub.f32 %v1443, 1.0
    %v1572 = vsub.f32 %v1444, 1.0
    %v1573 = vsub.f32 %v1445, 1.0
    %v1574 = vsub.f32 %v1446, 1.0
    %v1575 = vsub.f32 %v1447, 1.0
    %v1576 = vsub.f32 %v1448, 1.0
    %v1577 = vsub.f32 %v1449, 1.0
    %v1578 = vsub.f32 %v1450, 1.0
    %v1579 = vsub.f32 %v1451, 1.0
    %v1580 = vsub.f32 %v1452, 1.0
    %v1581 = vsub.f32 %v1453, 1.0
    %v1582 = vsub.f32 %v1454, 1.0
    %v1583 = vsub.f32 %v1455, 1.0
    %v1584 = vsub.f32 %v1456, 1.0
    %v1585 = vsub.f32 %v1457, 1.0
    %v1586 = vsub.f32 %v1458, 1.0
    %v1587 = vsub.f32 %v1459, 1.0
    %v1588 = vsub.f32 %v1460, 1.0
    %v1589 = vsub.f32 %v1461, 1.0
    %v1590 = vsub.f32 %v1462, 1.0
    %v1591 = vsub.f32 %v1463, 1.0
    %v1592 = vpack.c.bf16 %v1465, %v1464
    %v1593 = vpack.c.bf16 %v1467, %v1466
    %v1594 = vpack.c.bf16 %v1469, %v1468
    %v1595 = vpack.c.bf16 %v1471, %v1470
    %v1596 = vpack.c.bf16 %v1473, %v1472
    %v1597 = vpack.c.bf16 %v1475, %v1474
    %v1598 = vpack.c.bf16 %v1477, %v1476
    %v1599 = vpack.c.bf16 %v1479, %v1478
    %v1600 = vpack.c.bf16 %v1481, %v1480
    %v1601 = vpack.c.bf16 %v1483, %v1482
    %v1602 = vpack.c.bf16 %v1485, %v1484
    %v1603 = vpack.c.bf16 %v1487, %v1486
    %v1604 = vpack.c.bf16 %v1489, %v1488
    %v1605 = vpack.c.bf16 %v1491, %v1490
    %v1606 = vpack.c.bf16 %v1493, %v1492
    %v1607 = vpack.c.bf16 %v1495, %v1494
    %v1608 = vpack.c.bf16 %v1497, %v1496
    %v1609 = vpack.c.bf16 %v1499, %v1498
    %v1610 = vpack.c.bf16 %v1501, %v1500
    %v1611 = vpack.c.bf16 %v1503, %v1502
    %v1612 = vpack.c.bf16 %v1505, %v1504
    %v1613 = vpack.c.bf16 %v1507, %v1506
    %v1614 = vpack.c.bf16 %v1509, %v1508
    %v1615 = vpack.c.bf16 %v1511, %v1510
    %v1616 = vpack.c.bf16 %v1513, %v1512
    %v1617 = vpack.c.bf16 %v1515, %v1514
    %v1618 = vpack.c.bf16 %v1517, %v1516
    %v1619 = vpack.c.bf16 %v1519, %v1518
    %v1620 = vpack.c.bf16 %v1521, %v1520
    %v1621 = vpack.c.bf16 %v1523, %v1522
    %v1622 = vpack.c.bf16 %v1525, %v1524
    %v1623 = vpack.c.bf16 %v1527, %v1526
    %v1624 = vpack.c.bf16 %v1529, %v1528
    %v1625 = vpack.c.bf16 %v1531, %v1530
    %v1626 = vpack.c.bf16 %v1533, %v1532
    %v1627 = vpack.c.bf16 %v1535, %v1534
    %v1628 = vpack.c.bf16 %v1537, %v1536
    %v1629 = vpack.c.bf16 %v1539, %v1538
    %v1630 = vpack.c.bf16 %v1541, %v1540
    %v1631 = vpack.c.bf16 %v1543, %v1542
    %v1632 = vpack.c.bf16 %v1545, %v1544
    %v1633 = vpack.c.bf16 %v1547, %v1546
    %v1634 = vpack.c.bf16 %v1549, %v1548
    %v1635 = vpack.c.bf16 %v1551, %v1550
    %v1636 = vpack.c.bf16 %v1553, %v1552
    %v1637 = vpack.c.bf16 %v1555, %v1554
    %v1638 = vpack.c.bf16 %v1557, %v1556
    %v1639 = vpack.c.bf16 %v1559, %v1558
    %v1640 = vpack.c.bf16 %v1561, %v1560
    %v1641 = vpack.c.bf16 %v1563, %v1562
    %v1642 = vpack.c.bf16 %v1565, %v1564
    %v1643 = vpack.c.bf16 %v1567, %v1566
    %v1644 = vpack.c.bf16 %v1569, %v1568
    %v1645 = vpack.c.bf16 %v1571, %v1570
    %v1646 = vpack.c.bf16 %v1573, %v1572
    %v1647 = vpack.c.bf16 %v1575, %v1574
    %v1648 = vpack.c.bf16 %v1577, %v1576
    %v1649 = vpack.c.bf16 %v1579, %v1578
    %v1650 = vpack.c.bf16 %v1581, %v1580
    %v1651 = vpack.c.bf16 %v1583, %v1582
    %v1652 = vpack.c.bf16 %v1585, %v1584
    %v1653 = vpack.c.bf16 %v1587, %v1586
    %v1654 = vpack.c.bf16 %v1589, %v1588
    %v1655 = vpack.c.bf16 %v1591, %v1590
    %vm1656 = vmpackc.low %vm889, %vm888
    %vm1657 = vmpackc.low %vm891, %vm890
    %vm1658 = vmpackc.low %vm893, %vm892
    %vm1659 = vmpackc.low %vm895, %vm894
    %vm1660 = vmpackc.low %vm897, %vm896
    %vm1661 = vmpackc.low %vm899, %vm898
    %vm1662 = vmpackc.low %vm901, %vm900
    %vm1663 = vmpackc.low %vm903, %vm902
    %vm1664 = vmpackc.low %vm905, %vm904
    %vm1665 = vmpackc.low %vm907, %vm906
    %vm1666 = vmpackc.low %vm909, %vm908
    %vm1667 = vmpackc.low %vm911, %vm910
    %vm1668 = vmpackc.low %vm913, %vm912
    %vm1669 = vmpackc.low %vm915, %vm914
    %vm1670 = vmpackc.low %vm917, %vm916
    %vm1671 = vmpackc.low %vm919, %vm918
    %vm1672 = vmpackc.low %vm921, %vm920
    %vm1673 = vmpackc.low %vm923, %vm922
    %vm1674 = vmpackc.low %vm925, %vm924
    %vm1675 = vmpackc.low %vm927, %vm926
    %vm1676 = vmpackc.low %vm929, %vm928
    %vm1677 = vmpackc.low %vm931, %vm930
    %vm1678 = vmpackc.low %vm933, %vm932
    %vm1679 = vmpackc.low %vm935, %vm934
    %vm1680 = vmpackc.low %vm937, %vm936
    %vm1681 = vmpackc.low %vm939, %vm938
    %vm1682 = vmpackc.low %vm941, %vm940
    %vm1683 = vmpackc.low %vm943, %vm942
    %vm1684 = vmpackc.low %vm945, %vm944
    %vm1685 = vmpackc.low %vm947, %vm946
    %vm1686 = vmpackc.low %vm949, %vm948
    %vm1687 = vmpackc.low %vm951, %vm950
    %vm1688 = vmpackc.low %vm953, %vm952
    %vm1689 = vmpackc.low %vm955, %vm954
    %vm1690 = vmpackc.low %vm957, %vm956
    %vm1691 = vmpackc.low %vm959, %vm958
    %vm1692 = vmpackc.low %vm961, %vm960
    %vm1693 = vmpackc.low %vm963, %vm962
    %vm1694 = vmpackc.low %vm965, %vm964
    %vm1695 = vmpackc.low %vm967, %vm966
    %vm1696 = vmpackc.low %vm969, %vm968
    %vm1697 = vmpackc.low %vm971, %vm970
    %vm1698 = vmpackc.low %vm973, %vm972
    %vm1699 = vmpackc.low %vm975, %vm974
    %vm1700 = vmpackc.low %vm977, %vm976
    %vm1701 = vmpackc.low %vm979, %vm978
    %vm1702 = vmpackc.low %vm981, %vm980
    %vm1703 = vmpackc.low %vm983, %vm982
    %vm1704 = vmpackc.low %vm985, %vm984
    %vm1705 = vmpackc.low %vm987, %vm986
    %vm1706 = vmpackc.low %vm989, %vm988
    %vm1707 = vmpackc.low %vm991, %vm990
    %vm1708 = vmpackc.low %vm993, %vm992
    %vm1709 = vmpackc.low %vm995, %vm994
    %vm1710 = vmpackc.low %vm997, %vm996
    %vm1711 = vmpackc.low %vm999, %vm998
    %vm1712 = vmpackc.low %vm1001, %vm1000
    %vm1713 = vmpackc.low %vm1003, %vm1002
    %vm1714 = vmpackc.low %vm1005, %vm1004
    %vm1715 = vmpackc.low %vm1007, %vm1006
    %vm1716 = vmpackc.low %vm1009, %vm1008
    %vm1717 = vmpackc.low %vm1011, %vm1010
    %vm1718 = vmpackc.low %vm1013, %vm1012
    %vm1719 = vmpackc.low %vm1015, %vm1014
    %v1720 = vsel %vm1656, %v696, %v1592
    %v1721 = vsel %vm1657, %v697, %v1593
    %v1722 = vsel %vm1658, %v698, %v1594
    %v1723 = vsel %vm1659, %v699, %v1595
    %v1724 = vsel %vm1660, %v700, %v1596
    %v1725 = vsel %vm1661, %v701, %v1597
    %v1726 = vsel %vm1662, %v702, %v1598
    %v1727 = vsel %vm1663, %v703, %v1599
    %v1728 = vsel %vm1664, %v704, %v1600
    %v1729 = vsel %vm1665, %v705, %v1601
    %v1730 = vsel %vm1666, %v706, %v1602
    %v1731 = vsel %vm1667, %v707, %v1603
    %v1732 = vsel %vm1668, %v708, %v1604
    %v1733 = vsel %vm1669, %v709, %v1605
    %v1734 = vsel %vm1670, %v710, %v1606
    %v1735 = vsel %vm1671, %v711, %v1607
    %v1736 = vsel %vm1672, %v712, %v1608
    %v1737 = vsel %vm1673, %v713, %v1609
    %v1738 = vsel %vm1674, %v714, %v1610
    %v1739 = vsel %vm1675, %v715, %v1611
    %v1740 = vsel %vm1676, %v716, %v1612
    %v1741 = vsel %vm1677, %v717, %v1613
    %v1742 = vsel %vm1678, %v718, %v1614
    %v1743 = vsel %vm1679, %v719, %v1615
    %v1744 = vsel %vm1680, %v720, %v1616
    %v1745 = vsel %vm1681, %v721, %v1617
    %v1746 = vsel %vm1682, %v722, %v1618
    %v1747 = vsel %vm1683, %v723, %v1619
    %v1748 = vsel %vm1684, %v724, %v1620
    %v1749 = vsel %vm1685, %v725, %v1621
    %v1750 = vsel %vm1686, %v726, %v1622
    %v1751 = vsel %vm1687, %v727, %v1623
    %v1752 = vsel %vm1688, %v728, %v1624
    %v1753 = vsel %vm1689, %v729, %v1625
    %v1754 = vsel %vm1690, %v730, %v1626
    %v1755 = vsel %vm1691, %v731, %v1627
    %v1756 = vsel %vm1692, %v732, %v1628
    %v1757 = vsel %vm1693, %v733, %v1629
    %v1758 = vsel %vm1694, %v734, %v1630
    %v1759 = vsel %vm1695, %v735, %v1631
    %v1760 = vsel %vm1696, %v736, %v1632
    %v1761 = vsel %vm1697, %v737, %v1633
    %v1762 = vsel %vm1698, %v738, %v1634
    %v1763 = vsel %vm1699, %v739, %v1635
    %v1764 = vsel %vm1700, %v740, %v1636
    %v1765 = vsel %vm1701, %v741, %v1637
    %v1766 = vsel %vm1702, %v742, %v1638
    %v1767 = vsel %vm1703, %v743, %v1639
    %v1768 = vsel %vm1704, %v744, %v1640
    %v1769 = vsel %vm1705, %v745, %v1641
    %v1770 = vsel %vm1706, %v746, %v1642
    %v1771 = vsel %vm1707, %v747, %v1643
    %v1772 = vsel %vm1708, %v748, %v1644
    %v1773 = vsel %vm1709, %v749, %v1645
    %v1774 = vsel %vm1710, %v750, %v1646
    %v1775 = vsel %vm1711, %v751, %v1647
    %v1776 = vsel %vm1712, %v752, %v1648
    %v1777 = vsel %vm1713, %v753, %v1649
    %v1778 = vsel %vm1714, %v754, %v1650
    %v1779 = vsel %vm1715, %v755, %v1651
    %v1780 = vsel %vm1716, %v756, %v1652
    %v1781 = vsel %vm1717, %v757, %v1653
    %v1782 = vsel %vm1718, %v758, %v1654
    %v1783 = vsel %vm1719, %v759, %v1655
    %v1784 = vld [vmem:[#allocation3] sm:$0xff]
    %v1785 = vld [vmem:[#allocation3 + $0x8] sm:$0xff]
    %v1786 = vld [vmem:[#allocation3 + $0x10] sm:$0xff]
    %v1787 = vld [vmem:[#allocation3 + $0x18] sm:$0xff]
    %v1788 = vld [vmem:[#allocation3 + $0x20] sm:$0xff]
    %v1789 = vld [vmem:[#allocation3 + $0x28] sm:$0xff]
    %v1790 = vld [vmem:[#allocation3 + $0x30] sm:$0xff]
    %v1791 = vld [vmem:[#allocation3 + $0x38] sm:$0xff]
    %v1792 = vld [vmem:[#allocation3 + $0x40] sm:$0xff]
    %v1793 = vld [vmem:[#allocation3 + $0x48] sm:$0xff]
    %v1794 = vld [vmem:[#allocation3 + $0x50] sm:$0xff]
    %v1795 = vld [vmem:[#allocation3 + $0x58] sm:$0xff]
    %v1796 = vld [vmem:[#allocation3 + $0x60] sm:$0xff]
    %v1797 = vld [vmem:[#allocation3 + $0x68] sm:$0xff]
    %v1798 = vld [vmem:[#allocation3 + $0x70] sm:$0xff]
    %v1799 = vld [vmem:[#allocation3 + $0x78] sm:$0xff]
    %v1800 = vld [vmem:[#allocation3 + $0x80] sm:$0xff]
    %v1801 = vld [vmem:[#allocation3 + $0x88] sm:$0xff]
    %v1802 = vld [vmem:[#allocation3 + $0x90] sm:$0xff]
    %v1803 = vld [vmem:[#allocation3 + $0x98] sm:$0xff]
    %v1804 = vld [vmem:[#allocation3 + $0xa0] sm:$0xff]
    %v1805 = vld [vmem:[#allocation3 + $0xa8] sm:$0xff]
    %v1806 = vld [vmem:[#allocation3 + $0xb0] sm:$0xff]
    %v1807 = vld [vmem:[#allocation3 + $0xb8] sm:$0xff]
    %v1808 = vld [vmem:[#allocation3 + $0xc0] sm:$0xff]
    %v1809 = vld [vmem:[#allocation3 + $0xc8] sm:$0xff]
    %v1810 = vld [vmem:[#allocation3 + $0xd0] sm:$0xff]
    %v1811 = vld [vmem:[#allocation3 + $0xd8] sm:$0xff]
    %v1812 = vld [vmem:[#allocation3 + $0xe0] sm:$0xff]
    %v1813 = vld [vmem:[#allocation3 + $0xe8] sm:$0xff]
    %v1814 = vld [vmem:[#allocation3 + $0xf0] sm:$0xff]
    %v1815 = vld [vmem:[#allocation3 + $0xf8] sm:$0xff]
    %v1816 = vld [vmem:[#allocation3 + $0x100] sm:$0xff]
    %v1817 = vld [vmem:[#allocation3 + $0x108] sm:$0xff]
    %v1818 = vld [vmem:[#allocation3 + $0x110] sm:$0xff]
    %v1819 = vld [vmem:[#allocation3 + $0x118] sm:$0xff]
    %v1820 = vld [vmem:[#allocation3 + $0x120] sm:$0xff]
    %v1821 = vld [vmem:[#allocation3 + $0x128] sm:$0xff]
    %v1822 = vld [vmem:[#allocation3 + $0x130] sm:$0xff]
    %v1823 = vld [vmem:[#allocation3 + $0x138] sm:$0xff]
    %v1824 = vld [vmem:[#allocation3 + $0x140] sm:$0xff]
    %v1825 = vld [vmem:[#allocation3 + $0x148] sm:$0xff]
    %v1826 = vld [vmem:[#allocation3 + $0x150] sm:$0xff]
    %v1827 = vld [vmem:[#allocation3 + $0x158] sm:$0xff]
    %v1828 = vld [vmem:[#allocation3 + $0x160] sm:$0xff]
    %v1829 = vld [vmem:[#allocation3 + $0x168] sm:$0xff]
    %v1830 = vld [vmem:[#allocation3 + $0x170] sm:$0xff]
    %v1831 = vld [vmem:[#allocation3 + $0x178] sm:$0xff]
    %v1832 = vld [vmem:[#allocation3 + $0x180] sm:$0xff]
    %v1833 = vld [vmem:[#allocation3 + $0x188] sm:$0xff]
    %v1834 = vld [vmem:[#allocation3 + $0x190] sm:$0xff]
    %v1835 = vld [vmem:[#allocation3 + $0x198] sm:$0xff]
    %v1836 = vld [vmem:[#allocation3 + $0x1a0] sm:$0xff]
    %v1837 = vld [vmem:[#allocation3 + $0x1a8] sm:$0xff]
    %v1838 = vld [vmem:[#allocation3 + $0x1b0] sm:$0xff]
    %v1839 = vld [vmem:[#allocation3 + $0x1b8] sm:$0xff]
    %v1840 = vld [vmem:[#allocation3 + $0x1c0] sm:$0xff]
    %v1841 = vld [vmem:[#allocation3 + $0x1c8] sm:$0xff]
    %v1842 = vld [vmem:[#allocation3 + $0x1d0] sm:$0xff]
    %v1843 = vld [vmem:[#allocation3 + $0x1d8] sm:$0xff]
    %v1844 = vld [vmem:[#allocation3 + $0x1e0] sm:$0xff]
    %v1845 = vld [vmem:[#allocation3 + $0x1e8] sm:$0xff]
    %v1846 = vld [vmem:[#allocation3 + $0x1f0] sm:$0xff]
    %v1847 = vld [vmem:[#allocation3 + $0x1f8] sm:$0xff]
    %v1848 = vld [vmem:[%s6] sm:$0x3]
    %v1850 = vperm.slane %v1848, 0
    %v1851 = vperm.slane %v1848, 1
    %v1918 = vunpack.c.l.b16 %v1720
    %v1919 = vunpack.c.h.b16 %v1720
    %v1920 = vunpack.c.l.b16 %v1721
    %v1921 = vunpack.c.h.b16 %v1721
    %v1922 = vunpack.c.l.b16 %v1722
    %v1923 = vunpack.c.h.b16 %v1722
    %v1924 = vunpack.c.l.b16 %v1723
    %v1925 = vunpack.c.h.b16 %v1723
    %v1926 = vunpack.c.l.b16 %v1724
    %v1927 = vunpack.c.h.b16 %v1724
    %v1928 = vunpack.c.l.b16 %v1725
    %v1929 = vunpack.c.h.b16 %v1725
    %v1930 = vunpack.c.l.b16 %v1726
    %v1931 = vunpack.c.h.b16 %v1726
    %v1932 = vunpack.c.l.b16 %v1727
    %v1933 = vunpack.c.h.b16 %v1727
    %v1934 = vunpack.c.l.b16 %v1728
    %v1935 = vunpack.c.h.b16 %v1728
    %v1936 = vunpack.c.l.b16 %v1729
    %v1937 = vunpack.c.h.b16 %v1729
    %v1938 = vunpack.c.l.b16 %v1730
    %v1939 = vunpack.c.h.b16 %v1730
    %v1940 = vunpack.c.l.b16 %v1731
    %v1941 = vunpack.c.h.b16 %v1731
    %v1942 = vunpack.c.l.b16 %v1732
    %v1943 = vunpack.c.h.b16 %v1732
    %v1944 = vunpack.c.l.b16 %v1733
    %v1945 = vunpack.c.h.b16 %v1733
    %v1946 = vunpack.c.l.b16 %v1734
    %v1947 = vunpack.c.h.b16 %v1734
    %v1948 = vunpack.c.l.b16 %v1735
    %v1949 = vunpack.c.h.b16 %v1735
    %v1950 = vunpack.c.l.b16 %v1736
    %v1951 = vunpack.c.h.b16 %v1736
    %v1952 = vunpack.c.l.b16 %v1737
    %v1953 = vunpack.c.h.b16 %v1737
    %v1954 = vunpack.c.l.b16 %v1738
    %v1955 = vunpack.c.h.b16 %v1738
    %v1956 = vunpack.c.l.b16 %v1739
    %v1957 = vunpack.c.h.b16 %v1739
    %v1958 = vunpack.c.l.b16 %v1740
    %v1959 = vunpack.c.h.b16 %v1740
    %v1960 = vunpack.c.l.b16 %v1741
    %v1961 = vunpack.c.h.b16 %v1741
    %v1962 = vunpack.c.l.b16 %v1742
    %v1963 = vunpack.c.h.b16 %v1742
    %v1964 = vunpack.c.l.b16 %v1743
    %v1965 = vunpack.c.h.b16 %v1743
    %v1966 = vunpack.c.l.b16 %v1744
    %v1967 = vunpack.c.h.b16 %v1744
    %v1968 = vunpack.c.l.b16 %v1745
    %v1969 = vunpack.c.h.b16 %v1745
    %v1970 = vunpack.c.l.b16 %v1746
    %v1971 = vunpack.c.h.b16 %v1746
    %v1972 = vunpack.c.l.b16 %v1747
    %v1973 = vunpack.c.h.b16 %v1747
    %v1974 = vunpack.c.l.b16 %v1748
    %v1975 = vunpack.c.h.b16 %v1748
    %v1976 = vunpack.c.l.b16 %v1749
    %v1977 = vunpack.c.h.b16 %v1749
    %v1978 = vunpack.c.l.b16 %v1750
    %v1979 = vunpack.c.h.b16 %v1750
    %v1980 = vunpack.c.l.b16 %v1751
    %v1981 = vunpack.c.h.b16 %v1751
    %v1982 = vunpack.c.l.b16 %v1752
    %v1983 = vunpack.c.h.b16 %v1752
    %v1984 = vunpack.c.l.b16 %v1753
    %v1985 = vunpack.c.h.b16 %v1753
    %v1986 = vunpack.c.l.b16 %v1754
    %v1987 = vunpack.c.h.b16 %v1754
    %v1988 = vunpack.c.l.b16 %v1755
    %v1989 = vunpack.c.h.b16 %v1755
    %v1990 = vunpack.c.l.b16 %v1756
    %v1991 = vunpack.c.h.b16 %v1756
    %v1992 = vunpack.c.l.b16 %v1757
    %v1993 = vunpack.c.h.b16 %v1757
    %v1994 = vunpack.c.l.b16 %v1758
    %v1995 = vunpack.c.h.b16 %v1758
    %v1996 = vunpack.c.l.b16 %v1759
    %v1997 = vunpack.c.h.b16 %v1759
    %v1998 = vunpack.c.l.b16 %v1760
    %v1999 = vunpack.c.h.b16 %v1760
    %v2000 = vunpack.c.l.b16 %v1761
    %v2001 = vunpack.c.h.b16 %v1761
    %v2002 = vunpack.c.l.b16 %v1762
    %v2003 = vunpack.c.h.b16 %v1762
    %v2004 = vunpack.c.l.b16 %v1763
    %v2005 = vunpack.c.h.b16 %v1763
    %v2006 = vunpack.c.l.b16 %v1764
    %v2007 = vunpack.c.h.b16 %v1764
    %v2008 = vunpack.c.l.b16 %v1765
    %v2009 = vunpack.c.h.b16 %v1765
    %v2010 = vunpack.c.l.b16 %v1766
    %v2011 = vunpack.c.h.b16 %v1766
    %v2012 = vunpack.c.l.b16 %v1767
    %v2013 = vunpack.c.h.b16 %v1767
    %v2014 = vunpack.c.l.b16 %v1768
    %v2015 = vunpack.c.h.b16 %v1768
    %v2016 = vunpack.c.l.b16 %v1769
    %v2017 = vunpack.c.h.b16 %v1769
    %v2018 = vunpack.c.l.b16 %v1770
    %v2019 = vunpack.c.h.b16 %v1770
    %v2020 = vunpack.c.l.b16 %v1771
    %v2021 = vunpack.c.h.b16 %v1771
    %v2022 = vunpack.c.l.b16 %v1772
    %v2023 = vunpack.c.h.b16 %v1772
    %v2024 = vunpack.c.l.b16 %v1773
    %v2025 = vunpack.c.h.b16 %v1773
    %v2026 = vunpack.c.l.b16 %v1774
    %v2027 = vunpack.c.h.b16 %v1774
    %v2028 = vunpack.c.l.b16 %v1775
    %v2029 = vunpack.c.h.b16 %v1775
    %v2030 = vunpack.c.l.b16 %v1776
    %v2031 = vunpack.c.h.b16 %v1776
    %v2032 = vunpack.c.l.b16 %v1777
    %v2033 = vunpack.c.h.b16 %v1777
    %v2034 = vunpack.c.l.b16 %v1778
    %v2035 = vunpack.c.h.b16 %v1778
    %v2036 = vunpack.c.l.b16 %v1779
    %v2037 = vunpack.c.h.b16 %v1779
    %v2038 = vunpack.c.l.b16 %v1780
    %v2039 = vunpack.c.h.b16 %v1780
    %v2040 = vunpack.c.l.b16 %v1781
    %v2041 = vunpack.c.h.b16 %v1781
    %v2042 = vunpack.c.l.b16 %v1782
    %v2043 = vunpack.c.h.b16 %v1782
    %v2044 = vunpack.c.l.b16 %v1783
    %v2045 = vunpack.c.h.b16 %v1783
    %v2046 = vpack.c.b16 %v1922, %v1918
    %v2047 = vpack.c.b16 %v1923, %v1919
    %v2048 = vpack.c.b16 %v1924, %v1920
    %v2049 = vpack.c.b16 %v1925, %v1921
    %v2050 = vpack.c.b16 %v1930, %v1926
    %v2051 = vpack.c.b16 %v1931, %v1927
    %v2052 = vpack.c.b16 %v1932, %v1928
    %v2053 = vpack.c.b16 %v1933, %v1929
    %v2054 = vpack.c.b16 %v1938, %v1934
    %v2055 = vpack.c.b16 %v1939, %v1935
    %v2056 = vpack.c.b16 %v1940, %v1936
    %v2057 = vpack.c.b16 %v1941, %v1937
    %v2058 = vpack.c.b16 %v1946, %v1942
    %v2059 = vpack.c.b16 %v1947, %v1943
    %v2060 = vpack.c.b16 %v1948, %v1944
    %v2061 = vpack.c.b16 %v1949, %v1945
    %v2062 = vpack.c.b16 %v1954, %v1950
    %v2063 = vpack.c.b16 %v1955, %v1951
    %v2064 = vpack.c.b16 %v1956, %v1952
    %v2065 = vpack.c.b16 %v1957, %v1953
    %v2066 = vpack.c.b16 %v1962, %v1958
    %v2067 = vpack.c.b16 %v1963, %v1959
    %v2068 = vpack.c.b16 %v1964, %v1960
    %v2069 = vpack.c.b16 %v1965, %v1961
    %v2070 = vpack.c.b16 %v1970, %v1966
    %v2071 = vpack.c.b16 %v1971, %v1967
    %v2072 = vpack.c.b16 %v1972, %v1968
    %v2073 = vpack.c.b16 %v1973, %v1969
    %v2074 = vpack.c.b16 %v1978, %v1974
    %v2075 = vpack.c.b16 %v1979, %v1975
    %v2076 = vpack.c.b16 %v1980, %v1976
    %v2077 = vpack.c.b16 %v1981, %v1977
    %v2078 = vpack.c.b16 %v1986, %v1982
    %v2079 = vpack.c.b16 %v1987, %v1983
    %v2080 = vpack.c.b16 %v1988, %v1984
    %v2081 = vpack.c.b16 %v1989, %v1985
    %v2082 = vpack.c.b16 %v1994, %v1990
    %v2083 = vpack.c.b16 %v1995, %v1991
    %v2084 = vpack.c.b16 %v1996, %v1992
    %v2085 = vpack.c.b16 %v1997, %v1993
    %v2086 = vpack.c.b16 %v2002, %v1998
    %v2087 = vpack.c.b16 %v2003, %v1999
    %v2088 = vpack.c.b16 %v2004, %v2000
    %v2089 = vpack.c.b16 %v2005, %v2001
    %v2090 = vpack.c.b16 %v2010, %v2006
    %v2091 = vpack.c.b16 %v2011, %v2007
    %v2092 = vpack.c.b16 %v2012, %v2008
    %v2093 = vpack.c.b16 %v2013, %v2009
    %v2094 = vpack.c.b16 %v2018, %v2014
    %v2095 = vpack.c.b16 %v2019, %v2015
    %v2096 = vpack.c.b16 %v2020, %v2016
    %v2097 = vpack.c.b16 %v2021, %v2017
    %v2098 = vpack.c.b16 %v2026, %v2022
    %v2099 = vpack.c.b16 %v2027, %v2023
    %v2100 = vpack.c.b16 %v2028, %v2024
    %v2101 = vpack.c.b16 %v2029, %v2025
    %v2102 = vpack.c.b16 %v2034, %v2030
    %v2103 = vpack.c.b16 %v2035, %v2031
    %v2104 = vpack.c.b16 %v2036, %v2032
    %v2105 = vpack.c.b16 %v2037, %v2033
    %v2106 = vpack.c.b16 %v2042, %v2038
    %v2107 = vpack.c.b16 %v2043, %v2039
    %v2108 = vpack.c.b16 %v2044, %v2040
    %v2109 = vpack.c.b16 %v2045, %v2041
    %v2238 = vunpack.c.l.b16 %v1784
    %v2239 = vunpack.c.h.b16 %v1784
    %v2240 = vunpack.c.l.b16 %v1785
    %v2241 = vunpack.c.h.b16 %v1785
    %v2242 = vunpack.c.l.b16 %v1786
    %v2243 = vunpack.c.h.b16 %v1786
    %v2244 = vunpack.c.l.b16 %v1787
    %v2245 = vunpack.c.h.b16 %v1787
    %v2246 = vunpack.c.l.b16 %v1788
    %v2247 = vunpack.c.h.b16 %v1788
    %v2248 = vunpack.c.l.b16 %v1789
    %v2249 = vunpack.c.h.b16 %v1789
    %v2250 = vunpack.c.l.b16 %v1790
    %v2251 = vunpack.c.h.b16 %v1790
    %v2252 = vunpack.c.l.b16 %v1791
    %v2253 = vunpack.c.h.b16 %v1791
    %v2254 = vunpack.c.l.b16 %v1792
    %v2255 = vunpack.c.h.b16 %v1792
    %v2256 = vunpack.c.l.b16 %v1793
    %v2257 = vunpack.c.h.b16 %v1793
    %v2258 = vunpack.c.l.b16 %v1794
    %v2259 = vunpack.c.h.b16 %v1794
    %v2260 = vunpack.c.l.b16 %v1795
    %v2261 = vunpack.c.h.b16 %v1795
    %v2262 = vunpack.c.l.b16 %v1796
    %v2263 = vunpack.c.h.b16 %v1796
    %v2264 = vunpack.c.l.b16 %v1797
    %v2265 = vunpack.c.h.b16 %v1797
    %v2266 = vunpack.c.l.b16 %v1798
    %v2267 = vunpack.c.h.b16 %v1798
    %v2268 = vunpack.c.l.b16 %v1799
    %v2269 = vunpack.c.h.b16 %v1799
    %v2270 = vunpack.c.l.b16 %v1800
    %v2271 = vunpack.c.h.b16 %v1800
    %v2272 = vunpack.c.l.b16 %v1801
    %v2273 = vunpack.c.h.b16 %v1801
    %v2274 = vunpack.c.l.b16 %v1802
    %v2275 = vunpack.c.h.b16 %v1802
    %v2276 = vunpack.c.l.b16 %v1803
    %v2277 = vunpack.c.h.b16 %v1803
    %v2278 = vunpack.c.l.b16 %v1804
    %v2279 = vunpack.c.h.b16 %v1804
    %v2280 = vunpack.c.l.b16 %v1805
    %v2281 = vunpack.c.h.b16 %v1805
    %v2282 = vunpack.c.l.b16 %v1806
    %v2283 = vunpack.c.h.b16 %v1806
    %v2284 = vunpack.c.l.b16 %v1807
    %v2285 = vunpack.c.h.b16 %v1807
    %v2286 = vunpack.c.l.b16 %v1808
    %v2287 = vunpack.c.h.b16 %v1808
    %v2288 = vunpack.c.l.b16 %v1809
    %v2289 = vunpack.c.h.b16 %v1809
    %v2290 = vunpack.c.l.b16 %v1810
    %v2291 = vunpack.c.h.b16 %v1810
    %v2292 = vunpack.c.l.b16 %v1811
    %v2293 = vunpack.c.h.b16 %v1811
    %v2294 = vunpack.c.l.b16 %v1812
    %v2295 = vunpack.c.h.b16 %v1812
    %v2296 = vunpack.c.l.b16 %v1813
    %v2297 = vunpack.c.h.b16 %v1813
    %v2298 = vunpack.c.l.b16 %v1814
    %v2299 = vunpack.c.h.b16 %v1814
    %v2300 = vunpack.c.l.b16 %v1815
    %v2301 = vunpack.c.h.b16 %v1815
    %v2302 = vunpack.c.l.b16 %v1816
    %v2303 = vunpack.c.h.b16 %v1816
    %v2304 = vunpack.c.l.b16 %v1817
    %v2305 = vunpack.c.h.b16 %v1817
    %v2306 = vunpack.c.l.b16 %v1818
    %v2307 = vunpack.c.h.b16 %v1818
    %v2308 = vunpack.c.l.b16 %v1819
    %v2309 = vunpack.c.h.b16 %v1819
    %v2310 = vunpack.c.l.b16 %v1820
    %v2311 = vunpack.c.h.b16 %v1820
    %v2312 = vunpack.c.l.b16 %v1821
    %v2313 = vunpack.c.h.b16 %v1821
    %v2314 = vunpack.c.l.b16 %v1822
    %v2315 = vunpack.c.h.b16 %v1822
    %v2316 = vunpack.c.l.b16 %v1823
    %v2317 = vunpack.c.h.b16 %v1823
    %v2318 = vunpack.c.l.b16 %v1824
    %v2319 = vunpack.c.h.b16 %v1824
    %v2320 = vunpack.c.l.b16 %v1825
    %v2321 = vunpack.c.h.b16 %v1825
    %v2322 = vunpack.c.l.b16 %v1826
    %v2323 = vunpack.c.h.b16 %v1826
    %v2324 = vunpack.c.l.b16 %v1827
    %v2325 = vunpack.c.h.b16 %v1827
    %v2326 = vunpack.c.l.b16 %v1828
    %v2327 = vunpack.c.h.b16 %v1828
    %v2328 = vunpack.c.l.b16 %v1829
    %v2329 = vunpack.c.h.b16 %v1829
    %v2330 = vunpack.c.l.b16 %v1830
    %v2331 = vunpack.c.h.b16 %v1830
    %v2332 = vunpack.c.l.b16 %v1831
    %v2333 = vunpack.c.h.b16 %v1831
    %v2334 = vunpack.c.l.b16 %v1832
    %v2335 = vunpack.c.h.b16 %v1832
    %v2336 = vunpack.c.l.b16 %v1833
    %v2337 = vunpack.c.h.b16 %v1833
    %v2338 = vunpack.c.l.b16 %v1834
    %v2339 = vunpack.c.h.b16 %v1834
    %v2340 = vunpack.c.l.b16 %v1835
    %v2341 = vunpack.c.h.b16 %v1835
    %v2342 = vunpack.c.l.b16 %v1836
    %v2343 = vunpack.c.h.b16 %v1836
    %v2344 = vunpack.c.l.b16 %v1837
    %v2345 = vunpack.c.h.b16 %v1837
    %v2346 = vunpack.c.l.b16 %v1838
    %v2347 = vunpack.c.h.b16 %v1838
    %v2348 = vunpack.c.l.b16 %v1839
    %v2349 = vunpack.c.h.b16 %v1839
    %v2350 = vunpack.c.l.b16 %v1840
    %v2351 = vunpack.c.h.b16 %v1840
    %v2352 = vunpack.c.l.b16 %v1841
    %v2353 = vunpack.c.h.b16 %v1841
    %v2354 = vunpack.c.l.b16 %v1842
    %v2355 = vunpack.c.h.b16 %v1842
    %v2356 = vunpack.c.l.b16 %v1843
    %v2357 = vunpack.c.h.b16 %v1843
    %v2358 = vunpack.c.l.b16 %v1844
    %v2359 = vunpack.c.h.b16 %v1844
    %v2360 = vunpack.c.l.b16 %v1845
    %v2361 = vunpack.c.h.b16 %v1845
    %v2362 = vunpack.c.l.b16 %v1846
    %v2363 = vunpack.c.h.b16 %v1846
    %v2364 = vunpack.c.l.b16 %v1847
    %v2365 = vunpack.c.h.b16 %v1847
    %v2366 = vpack.c.b16 %v2240, %v2238
    %v2367 = vpack.c.b16 %v2241, %v2239
    %v2368 = vpack.c.b16 %v2244, %v2242
    %v2369 = vpack.c.b16 %v2245, %v2243
    %v2370 = vpack.c.b16 %v2248, %v2246
    %v2371 = vpack.c.b16 %v2249, %v2247
    %v2372 = vpack.c.b16 %v2252, %v2250
    %v2373 = vpack.c.b16 %v2253, %v2251
    %v2374 = vpack.c.b16 %v2256, %v2254
    %v2375 = vpack.c.b16 %v2257, %v2255
    %v2376 = vpack.c.b16 %v2260, %v2258
    %v2377 = vpack.c.b16 %v2261, %v2259
    %v2378 = vpack.c.b16 %v2264, %v2262
    %v2379 = vpack.c.b16 %v2265, %v2263
    %v2380 = vpack.c.b16 %v2268, %v2266
    %v2381 = vpack.c.b16 %v2269, %v2267
    %v2382 = vpack.c.b16 %v2272, %v2270
    %v2383 = vpack.c.b16 %v2273, %v2271
    %v2384 = vpack.c.b16 %v2276, %v2274
    %v2385 = vpack.c.b16 %v2277, %v2275
    %v2386 = vpack.c.b16 %v2280, %v2278
    %v2387 = vpack.c.b16 %v2281, %v2279
    %v2388 = vpack.c.b16 %v2284, %v2282
    %v2389 = vpack.c.b16 %v2285, %v2283
    %v2390 = vpack.c.b16 %v2288, %v2286
    %v2391 = vpack.c.b16 %v2289, %v2287
    %v2392 = vpack.c.b16 %v2292, %v2290
    %v2393 = vpack.c.b16 %v2293, %v2291
    %v2394 = vpack.c.b16 %v2296, %v2294
    %v2395 = vpack.c.b16 %v2297, %v2295
    %v2396 = vpack.c.b16 %v2300, %v2298
    %v2397 = vpack.c.b16 %v2301, %v2299
    %v2398 = vpack.c.b16 %v2304, %v2302
    %v2399 = vpack.c.b16 %v2305, %v2303
    %v2400 = vpack.c.b16 %v2308, %v2306
    %v2401 = vpack.c.b16 %v2309, %v2307
    %v2402 = vpack.c.b16 %v2312, %v2310
    %v2403 = vpack.c.b16 %v2313, %v2311
    %v2404 = vpack.c.b16 %v2316, %v2314
    %v2405 = vpack.c.b16 %v2317, %v2315
    %v2406 = vpack.c.b16 %v2320, %v2318
    %v2407 = vpack.c.b16 %v2321, %v2319
    %v2408 = vpack.c.b16 %v2324, %v2322
    %v2409 = vpack.c.b16 %v2325, %v2323
    %v2410 = vpack.c.b16 %v2328, %v2326
    %v2411 = vpack.c.b16 %v2329, %v2327
    %v2412 = vpack.c.b16 %v2332, %v2330
    %v2413 = vpack.c.b16 %v2333, %v2331
    %v2414 = vpack.c.b16 %v2336, %v2334
    %v2415 = vpack.c.b16 %v2337, %v2335
    %v2416 = vpack.c.b16 %v2340, %v2338
    %v2417 = vpack.c.b16 %v2341, %v2339
    %v2418 = vpack.c.b16 %v2344, %v2342
    %v2419 = vpack.c.b16 %v2345, %v2343
    %v2420 = vpack.c.b16 %v2348, %v2346
    %v2421 = vpack.c.b16 %v2349, %v2347
    %v2422 = vpack.c.b16 %v2352, %v2350
    %v2423 = vpack.c.b16 %v2353, %v2351
    %v2424 = vpack.c.b16 %v2356, %v2354
    %v2425 = vpack.c.b16 %v2357, %v2355
    %v2426 = vpack.c.b16 %v2360, %v2358
    %v2427 = vpack.c.b16 %v2361, %v2359
    %v2428 = vpack.c.b16 %v2364, %v2362
    %v2429 = vpack.c.b16 %v2365, %v2363
    %2494 = vmatpush.bf16.msra.mxu0 %v2380
    %2495 = vmatpush.bf16.msra.mxu0 %v2378
    %2496 = vmatpush.bf16.msra.mxu0 %v2376
    %2497 = vmatpush.bf16.msra.mxu0 %v2374
    %2498 = vmatpush.bf16.msra.mxu0 %v2372
    %2499 = vmatpush.bf16.msra.mxu0 %v2370
    %2500 = vmatpush.bf16.msra.mxu0 %v2368
    %2501 = vmatpush.bf16.msra.mxu0 %v2366
    %2502 = vmatmul.bf16.gmra.mxu0 %v2046
    %v2503 = vpop.f32.mrf.mxu0
    %v2504 = vadd.f32 %v1850, %v2503
    %v2505 = vpop.f32.mrf.mxu0
    %v2506 = vadd.f32 %v1850, %v2505
    %2507 = vmatmul.bf16.gmra.mxu0 %v2050
    %v2508 = vpop.f32.mrf.mxu0
    %v2509 = vadd.f32 %v1850, %v2508
    %v2510 = vpop.f32.mrf.mxu0
    %v2511 = vadd.f32 %v1850, %v2510
    %2512 = vmatmul.bf16.gmra.mxu0 %v2054
    %v2513 = vpop.f32.mrf.mxu0
    %v2514 = vadd.f32 %v1850, %v2513
    %v2515 = vpop.f32.mrf.mxu0
    %v2516 = vadd.f32 %v1850, %v2515
    %2517 = vmatmul.bf16.gmra.mxu0 %v2058
    %v2518 = vpop.f32.mrf.mxu0
    %v2519 = vadd.f32 %v1850, %v2518
    %v2520 = vpop.f32.mrf.mxu0
    %v2521 = vadd.f32 %v1850, %v2520
    %2522 = vmatmul.bf16.gmra.mxu0 %v2062
    %v2523 = vpop.f32.mrf.mxu0
    %v2524 = vadd.f32 %v1850, %v2523
    %v2525 = vpop.f32.mrf.mxu0
    %v2526 = vadd.f32 %v1850, %v2525
    %2527 = vmatmul.bf16.gmra.mxu0 %v2066
    %v2528 = vpop.f32.mrf.mxu0
    %v2529 = vadd.f32 %v1850, %v2528
    %v2530 = vpop.f32.mrf.mxu0
    %v2531 = vadd.f32 %v1850, %v2530
    %2532 = vmatmul.bf16.gmra.mxu0 %v2070
    %v2533 = vpop.f32.mrf.mxu0
    %v2534 = vadd.f32 %v1850, %v2533
    %v2535 = vpop.f32.mrf.mxu0
    %v2536 = vadd.f32 %v1850, %v2535
    %2537 = vmatmul.bf16.gmra.mxu0 %v2074
    %v2538 = vpop.f32.mrf.mxu0
    %v2539 = vadd.f32 %v1850, %v2538
    %v2540 = vpop.f32.mrf.mxu0
    %v2541 = vadd.f32 %v1850, %v2540
    %2542 = vmatmul.bf16.gmra.mxu0 %v2078
    %v2543 = vpop.f32.mrf.mxu0
    %v2544 = vadd.f32 %v1850, %v2543
    %v2545 = vpop.f32.mrf.mxu0
    %v2546 = vadd.f32 %v1850, %v2545
    %2547 = vmatmul.bf16.gmra.mxu0 %v2082
    %v2548 = vpop.f32.mrf.mxu0
    %v2549 = vadd.f32 %v1850, %v2548
    %v2550 = vpop.f32.mrf.mxu0
    %v2551 = vadd.f32 %v1850, %v2550
    %2552 = vmatmul.bf16.gmra.mxu0 %v2086
    %v2553 = vpop.f32.mrf.mxu0
    %v2554 = vadd.f32 %v1850, %v2553
    %v2555 = vpop.f32.mrf.mxu0
    %v2556 = vadd.f32 %v1850, %v2555
    %2557 = vmatmul.bf16.gmra.mxu0 %v2090
    %v2558 = vpop.f32.mrf.mxu0
    %v2559 = vadd.f32 %v1850, %v2558
    %v2560 = vpop.f32.mrf.mxu0
    %v2561 = vadd.f32 %v1850, %v2560
    %2562 = vmatmul.bf16.gmra.mxu0 %v2094
    %v2563 = vpop.f32.mrf.mxu0
    %v2564 = vadd.f32 %v1850, %v2563
    %v2565 = vpop.f32.mrf.mxu0
    %v2566 = vadd.f32 %v1850, %v2565
    %2567 = vmatmul.bf16.gmra.mxu0 %v2098
    %v2568 = vpop.f32.mrf.mxu0
    %v2569 = vadd.f32 %v1850, %v2568
    %v2570 = vpop.f32.mrf.mxu0
    %v2571 = vadd.f32 %v1850, %v2570
    %2572 = vmatmul.bf16.gmra.mxu0 %v2102
    %v2573 = vpop.f32.mrf.mxu0
    %v2574 = vadd.f32 %v1850, %v2573
    %v2575 = vpop.f32.mrf.mxu0
    %v2576 = vadd.f32 %v1850, %v2575
    %2577 = vmatmul.bf16.gmra.mxu0 %v2106
    %v2578 = vpop.f32.mrf.mxu0
    %v2579 = vadd.f32 %v1850, %v2578
    %v2580 = vpop.f32.mrf.mxu0
    %v2581 = vadd.f32 %v1850, %v2580
    %2582 = vdwg.mxu0
    %2583 = vmatpush.bf16.msra.mxu0 %v2396
    %2584 = vmatpush.bf16.msra.mxu0 %v2394
    %2585 = vmatpush.bf16.msra.mxu0 %v2392
    %2586 = vmatpush.bf16.msra.mxu0 %v2390
    %2587 = vmatpush.bf16.msra.mxu0 %v2388
    %2588 = vmatpush.bf16.msra.mxu0 %v2386
    %2589 = vmatpush.bf16.msra.mxu0 %v2384
    %2590 = vmatpush.bf16.msra.mxu0 %v2382
    %2591 = vmatmul.bf16.gmra.mxu0 %v2047
    %v2592 = vpop.f32.mrf.mxu0
    %v2593 = vadd.f32 %v2504, %v2592
    %v2594 = vpop.f32.mrf.mxu0
    %v2595 = vadd.f32 %v2506, %v2594
    %2596 = vmatmul.bf16.gmra.mxu0 %v2051
    %v2597 = vpop.f32.mrf.mxu0
    %v2598 = vadd.f32 %v2509, %v2597
    %v2599 = vpop.f32.mrf.mxu0
    %v2600 = vadd.f32 %v2511, %v2599
    %2601 = vmatmul.bf16.gmra.mxu0 %v2055
    %v2602 = vpop.f32.mrf.mxu0
    %v2603 = vadd.f32 %v2514, %v2602
    %v2604 = vpop.f32.mrf.mxu0
    %v2605 = vadd.f32 %v2516, %v2604
    %2606 = vmatmul.bf16.gmra.mxu0 %v2059
    %v2607 = vpop.f32.mrf.mxu0
    %v2608 = vadd.f32 %v2519, %v2607
    %v2609 = vpop.f32.mrf.mxu0
    %v2610 = vadd.f32 %v2521, %v2609
    %2611 = vmatmul.bf16.gmra.mxu0 %v2063
    %v2612 = vpop.f32.mrf.mxu0
    %v2613 = vadd.f32 %v2524, %v2612
    %v2614 = vpop.f32.mrf.mxu0
    %v2615 = vadd.f32 %v2526, %v2614
    %2616 = vmatmul.bf16.gmra.mxu0 %v2067
    %v2617 = vpop.f32.mrf.mxu0
    %v2618 = vadd.f32 %v2529, %v2617
    %v2619 = vpop.f32.mrf.mxu0
    %v2620 = vadd.f32 %v2531, %v2619
    %2621 = vmatmul.bf16.gmra.mxu0 %v2071
    %v2622 = vpop.f32.mrf.mxu0
    %v2623 = vadd.f32 %v2534, %v2622
    %v2624 = vpop.f32.mrf.mxu0
    %v2625 = vadd.f32 %v2536, %v2624
    %2626 = vmatmul.bf16.gmra.mxu0 %v2075
    %v2627 = vpop.f32.mrf.mxu0
    %v2628 = vadd.f32 %v2539, %v2627
    %v2629 = vpop.f32.mrf.mxu0
    %v2630 = vadd.f32 %v2541, %v2629
    %2631 = vmatmul.bf16.gmra.mxu0 %v2079
    %v2632 = vpop.f32.mrf.mxu0
    %v2633 = vadd.f32 %v2544, %v2632
    %v2634 = vpop.f32.mrf.mxu0
    %v2635 = vadd.f32 %v2546, %v2634
    %2636 = vmatmul.bf16.gmra.mxu0 %v2083
    %v2637 = vpop.f32.mrf.mxu0
    %v2638 = vadd.f32 %v2549, %v2637
    %v2639 = vpop.f32.mrf.mxu0
    %v2640 = vadd.f32 %v2551, %v2639
    %2641 = vmatmul.bf16.gmra.mxu0 %v2087
    %v2642 = vpop.f32.mrf.mxu0
    %v2643 = vadd.f32 %v2554, %v2642
    %v2644 = vpop.f32.mrf.mxu0
    %v2645 = vadd.f32 %v2556, %v2644
    %2646 = vmatmul.bf16.gmra.mxu0 %v2091
    %v2647 = vpop.f32.mrf.mxu0
    %v2648 = vadd.f32 %v2559, %v2647
    %v2649 = vpop.f32.mrf.mxu0
    %v2650 = vadd.f32 %v2561, %v2649
    %2651 = vmatmul.bf16.gmra.mxu0 %v2095
    %v2652 = vpop.f32.mrf.mxu0
    %v2653 = vadd.f32 %v2564, %v2652
    %v2654 = vpop.f32.mrf.mxu0
    %v2655 = vadd.f32 %v2566, %v2654
    %2656 = vmatmul.bf16.gmra.mxu0 %v2099
    %v2657 = vpop.f32.mrf.mxu0
    %v2658 = vadd.f32 %v2569, %v2657
    %v2659 = vpop.f32.mrf.mxu0
    %v2660 = vadd.f32 %v2571, %v2659
    %2661 = vmatmul.bf16.gmra.mxu0 %v2103
    %v2662 = vpop.f32.mrf.mxu0
    %v2663 = vadd.f32 %v2574, %v2662
    %v2664 = vpop.f32.mrf.mxu0
    %v2665 = vadd.f32 %v2576, %v2664
    %2666 = vmatmul.bf16.gmra.mxu0 %v2107
    %v2667 = vpop.f32.mrf.mxu0
    %v2668 = vadd.f32 %v2579, %v2667
    %v2669 = vpop.f32.mrf.mxu0
    %v2670 = vadd.f32 %v2581, %v2669
    %2671 = vdwg.mxu0
    %2672 = vmatpush.bf16.msra.mxu0 %v2412
    %2673 = vmatpush.bf16.msra.mxu0 %v2410
    %2674 = vmatpush.bf16.msra.mxu0 %v2408
    %2675 = vmatpush.bf16.msra.mxu0 %v2406
    %2676 = vmatpush.bf16.msra.mxu0 %v2404
    %2677 = vmatpush.bf16.msra.mxu0 %v2402
    %2678 = vmatpush.bf16.msra.mxu0 %v2400
    %2679 = vmatpush.bf16.msra.mxu0 %v2398
    %2680 = vmatmul.bf16.gmra.mxu0 %v2048
    %v2681 = vpop.f32.mrf.mxu0
    %v2682 = vadd.f32 %v2593, %v2681
    %v2683 = vpop.f32.mrf.mxu0
    %v2684 = vadd.f32 %v2595, %v2683
    %2685 = vmatmul.bf16.gmra.mxu0 %v2052
    %v2686 = vpop.f32.mrf.mxu0
    %v2687 = vadd.f32 %v2598, %v2686
    %v2688 = vpop.f32.mrf.mxu0
    %v2689 = vadd.f32 %v2600, %v2688
    %2690 = vmatmul.bf16.gmra.mxu0 %v2056
    %v2691 = vpop.f32.mrf.mxu0
    %v2692 = vadd.f32 %v2603, %v2691
    %v2693 = vpop.f32.mrf.mxu0
    %v2694 = vadd.f32 %v2605, %v2693
    %2695 = vmatmul.bf16.gmra.mxu0 %v2060
    %v2696 = vpop.f32.mrf.mxu0
    %v2697 = vadd.f32 %v2608, %v2696
    %v2698 = vpop.f32.mrf.mxu0
    %v2699 = vadd.f32 %v2610, %v2698
    %2700 = vmatmul.bf16.gmra.mxu0 %v2064
    %v2701 = vpop.f32.mrf.mxu0
    %v2702 = vadd.f32 %v2613, %v2701
    %v2703 = vpop.f32.mrf.mxu0
    %v2704 = vadd.f32 %v2615, %v2703
    %2705 = vmatmul.bf16.gmra.mxu0 %v2068
    %v2706 = vpop.f32.mrf.mxu0
    %v2707 = vadd.f32 %v2618, %v2706
    %v2708 = vpop.f32.mrf.mxu0
    %v2709 = vadd.f32 %v2620, %v2708
    %2710 = vmatmul.bf16.gmra.mxu0 %v2072
    %v2711 = vpop.f32.mrf.mxu0
    %v2712 = vadd.f32 %v2623, %v2711
    %v2713 = vpop.f32.mrf.mxu0
    %v2714 = vadd.f32 %v2625, %v2713
    %2715 = vmatmul.bf16.gmra.mxu0 %v2076
    %v2716 = vpop.f32.mrf.mxu0
    %v2717 = vadd.f32 %v2628, %v2716
    %v2718 = vpop.f32.mrf.mxu0
    %v2719 = vadd.f32 %v2630, %v2718
    %2720 = vmatmul.bf16.gmra.mxu0 %v2080
    %v2721 = vpop.f32.mrf.mxu0
    %v2722 = vadd.f32 %v2633, %v2721
    %v2723 = vpop.f32.mrf.mxu0
    %v2724 = vadd.f32 %v2635, %v2723
    %2725 = vmatmul.bf16.gmra.mxu0 %v2084
    %v2726 = vpop.f32.mrf.mxu0
    %v2727 = vadd.f32 %v2638, %v2726
    %v2728 = vpop.f32.mrf.mxu0
    %v2729 = vadd.f32 %v2640, %v2728
    %2730 = vmatmul.bf16.gmra.mxu0 %v2088
    %v2731 = vpop.f32.mrf.mxu0
    %v2732 = vadd.f32 %v2643, %v2731
    %v2733 = vpop.f32.mrf.mxu0
    %v2734 = vadd.f32 %v2645, %v2733
    %2735 = vmatmul.bf16.gmra.mxu0 %v2092
    %v2736 = vpop.f32.mrf.mxu0
    %v2737 = vadd.f32 %v2648, %v2736
    %v2738 = vpop.f32.mrf.mxu0
    %v2739 = vadd.f32 %v2650, %v2738
    %2740 = vmatmul.bf16.gmra.mxu0 %v2096
    %v2741 = vpop.f32.mrf.mxu0
    %v2742 = vadd.f32 %v2653, %v2741
    %v2743 = vpop.f32.mrf.mxu0
    %v2744 = vadd.f32 %v2655, %v2743
    %2745 = vmatmul.bf16.gmra.mxu0 %v2100
    %v2746 = vpop.f32.mrf.mxu0
    %v2747 = vadd.f32 %v2658, %v2746
    %v2748 = vpop.f32.mrf.mxu0
    %v2749 = vadd.f32 %v2660, %v2748
    %2750 = vmatmul.bf16.gmra.mxu0 %v2104
    %v2751 = vpop.f32.mrf.mxu0
    %v2752 = vadd.f32 %v2663, %v2751
    %v2753 = vpop.f32.mrf.mxu0
    %v2754 = vadd.f32 %v2665, %v2753
    %2755 = vmatmul.bf16.gmra.mxu0 %v2108
    %v2756 = vpop.f32.mrf.mxu0
    %v2757 = vadd.f32 %v2668, %v2756
    %v2758 = vpop.f32.mrf.mxu0
    %v2759 = vadd.f32 %v2670, %v2758
    %2760 = vdwg.mxu0
    %2761 = vmatpush.bf16.msra.mxu0 %v2428
    %2762 = vmatpush.bf16.msra.mxu0 %v2426
    %2763 = vmatpush.bf16.msra.mxu0 %v2424
    %2764 = vmatpush.bf16.msra.mxu0 %v2422
    %2765 = vmatpush.bf16.msra.mxu0 %v2420
    %2766 = vmatpush.bf16.msra.mxu0 %v2418
    %2767 = vmatpush.bf16.msra.mxu0 %v2416
    %2768 = vmatpush.bf16.msra.mxu0 %v2414
    %2769 = vmatmul.bf16.gmra.mxu0 %v2049
    %v2770 = vpop.f32.mrf.mxu0
    %v2771 = vadd.f32 %v2682, %v2770
    %v2772 = vpop.f32.mrf.mxu0
    %v2773 = vadd.f32 %v2684, %v2772
    %2774 = vmatmul.bf16.gmra.mxu0 %v2053
    %v2775 = vpop.f32.mrf.mxu0
    %v2776 = vadd.f32 %v2687, %v2775
    %v2777 = vpop.f32.mrf.mxu0
    %v2778 = vadd.f32 %v2689, %v2777
    %2779 = vmatmul.bf16.gmra.mxu0 %v2057
    %v2780 = vpop.f32.mrf.mxu0
    %v2781 = vadd.f32 %v2692, %v2780
    %v2782 = vpop.f32.mrf.mxu0
    %v2783 = vadd.f32 %v2694, %v2782
    %2784 = vmatmul.bf16.gmra.mxu0 %v2061
    %v2785 = vpop.f32.mrf.mxu0
    %v2786 = vadd.f32 %v2697, %v2785
    %v2787 = vpop.f32.mrf.mxu0
    %v2788 = vadd.f32 %v2699, %v2787
    %2789 = vmatmul.bf16.gmra.mxu0 %v2065
    %v2790 = vpop.f32.mrf.mxu0
    %v2791 = vadd.f32 %v2702, %v2790
    %v2792 = vpop.f32.mrf.mxu0
    %v2793 = vadd.f32 %v2704, %v2792
    %2794 = vmatmul.bf16.gmra.mxu0 %v2069
    %v2795 = vpop.f32.mrf.mxu0
    %v2796 = vadd.f32 %v2707, %v2795
    %v2797 = vpop.f32.mrf.mxu0
    %v2798 = vadd.f32 %v2709, %v2797
    %2799 = vmatmul.bf16.gmra.mxu0 %v2073
    %v2800 = vpop.f32.mrf.mxu0
    %v2801 = vadd.f32 %v2712, %v2800
    %v2802 = vpop.f32.mrf.mxu0
    %v2803 = vadd.f32 %v2714, %v2802
    %2804 = vmatmul.bf16.gmra.mxu0 %v2077
    %v2805 = vpop.f32.mrf.mxu0
    %v2806 = vadd.f32 %v2717, %v2805
    %v2807 = vpop.f32.mrf.mxu0
    %v2808 = vadd.f32 %v2719, %v2807
    %2809 = vmatmul.bf16.gmra.mxu0 %v2081
    %v2810 = vpop.f32.mrf.mxu0
    %v2811 = vadd.f32 %v2722, %v2810
    %v2812 = vpop.f32.mrf.mxu0
    %v2813 = vadd.f32 %v2724, %v2812
    %2814 = vmatmul.bf16.gmra.mxu0 %v2085
    %v2815 = vpop.f32.mrf.mxu0
    %v2816 = vadd.f32 %v2727, %v2815
    %v2817 = vpop.f32.mrf.mxu0
    %v2818 = vadd.f32 %v2729, %v2817
    %2819 = vmatmul.bf16.gmra.mxu0 %v2089
    %v2820 = vpop.f32.mrf.mxu0
    %v2821 = vadd.f32 %v2732, %v2820
    %v2822 = vpop.f32.mrf.mxu0
    %v2823 = vadd.f32 %v2734, %v2822
    %2824 = vmatmul.bf16.gmra.mxu0 %v2093
    %v2825 = vpop.f32.mrf.mxu0
    %v2826 = vadd.f32 %v2737, %v2825
    %v2827 = vpop.f32.mrf.mxu0
    %v2828 = vadd.f32 %v2739, %v2827
    %2829 = vmatmul.bf16.gmra.mxu0 %v2097
    %v2830 = vpop.f32.mrf.mxu0
    %v2831 = vadd.f32 %v2742, %v2830
    %v2832 = vpop.f32.mrf.mxu0
    %v2833 = vadd.f32 %v2744, %v2832
    %2834 = vmatmul.bf16.gmra.mxu0 %v2101
    %v2835 = vpop.f32.mrf.mxu0
    %v2836 = vadd.f32 %v2747, %v2835
    %v2837 = vpop.f32.mrf.mxu0
    %v2838 = vadd.f32 %v2749, %v2837
    %2839 = vmatmul.bf16.gmra.mxu0 %v2105
    %v2840 = vpop.f32.mrf.mxu0
    %v2841 = vadd.f32 %v2752, %v2840
    %v2842 = vpop.f32.mrf.mxu0
    %v2843 = vadd.f32 %v2754, %v2842
    %2844 = vmatmul.bf16.gmra.mxu0 %v2109
    %v2845 = vpop.f32.mrf.mxu0
    %v2846 = vadd.f32 %v2757, %v2845
    %v2847 = vpop.f32.mrf.mxu0
    %v2848 = vadd.f32 %v2759, %v2847
    %2849 = vdwg.mxu0
    %2850 = vmatpush.bf16.msra.mxu0 %v2381
    %2851 = vmatpush.bf16.msra.mxu0 %v2379
    %2852 = vmatpush.bf16.msra.mxu0 %v2377
    %2853 = vmatpush.bf16.msra.mxu0 %v2375
    %2854 = vmatpush.bf16.msra.mxu0 %v2373
    %2855 = vmatpush.bf16.msra.mxu0 %v2371
    %2856 = vmatpush.bf16.msra.mxu0 %v2369
    %2857 = vmatpush.bf16.msra.mxu0 %v2367
    %2858 = vmatmul.bf16.gmra.mxu0 %v2046
    %v2859 = vpop.f32.mrf.mxu0
    %v2860 = vadd.f32 %v1851, %v2859
    %v2861 = vpop.f32.mrf.mxu0
    %v2862 = vadd.f32 %v1851, %v2861
    %2863 = vmatmul.bf16.gmra.mxu0 %v2050
    %v2864 = vpop.f32.mrf.mxu0
    %v2865 = vadd.f32 %v1851, %v2864
    %v2866 = vpop.f32.mrf.mxu0
    %v2867 = vadd.f32 %v1851, %v2866
    %2868 = vmatmul.bf16.gmra.mxu0 %v2054
    %v2869 = vpop.f32.mrf.mxu0
    %v2870 = vadd.f32 %v1851, %v2869
    %v2871 = vpop.f32.mrf.mxu0
    %v2872 = vadd.f32 %v1851, %v2871
    %2873 = vmatmul.bf16.gmra.mxu0 %v2058
    %v2874 = vpop.f32.mrf.mxu0
    %v2875 = vadd.f32 %v1851, %v2874
    %v2876 = vpop.f32.mrf.mxu0
    %v2877 = vadd.f32 %v1851, %v2876
    %2878 = vmatmul.bf16.gmra.mxu0 %v2062
    %v2879 = vpop.f32.mrf.mxu0
    %v2880 = vadd.f32 %v1851, %v2879
    %v2881 = vpop.f32.mrf.mxu0
    %v2882 = vadd.f32 %v1851, %v2881
    %2883 = vmatmul.bf16.gmra.mxu0 %v2066
    %v2884 = vpop.f32.mrf.mxu0
    %v2885 = vadd.f32 %v1851, %v2884
    %v2886 = vpop.f32.mrf.mxu0
    %v2887 = vadd.f32 %v1851, %v2886
    %2888 = vmatmul.bf16.gmra.mxu0 %v2070
    %v2889 = vpop.f32.mrf.mxu0
    %v2890 = vadd.f32 %v1851, %v2889
    %v2891 = vpop.f32.mrf.mxu0
    %v2892 = vadd.f32 %v1851, %v2891
    %2893 = vmatmul.bf16.gmra.mxu0 %v2074
    %v2894 = vpop.f32.mrf.mxu0
    %v2895 = vadd.f32 %v1851, %v2894
    %v2896 = vpop.f32.mrf.mxu0
    %v2897 = vadd.f32 %v1851, %v2896
    %2898 = vmatmul.bf16.gmra.mxu0 %v2078
    %v2899 = vpop.f32.mrf.mxu0
    %v2900 = vadd.f32 %v1851, %v2899
    %v2901 = vpop.f32.mrf.mxu0
    %v2902 = vadd.f32 %v1851, %v2901
    %2903 = vmatmul.bf16.gmra.mxu0 %v2082
    %v2904 = vpop.f32.mrf.mxu0
    %v2905 = vadd.f32 %v1851, %v2904
    %v2906 = vpop.f32.mrf.mxu0
    %v2907 = vadd.f32 %v1851, %v2906
    %2908 = vmatmul.bf16.gmra.mxu0 %v2086
    %v2909 = vpop.f32.mrf.mxu0
    %v2910 = vadd.f32 %v1851, %v2909
    %v2911 = vpop.f32.mrf.mxu0
    %v2912 = vadd.f32 %v1851, %v2911
    %2913 = vmatmul.bf16.gmra.mxu0 %v2090
    %v2914 = vpop.f32.mrf.mxu0
    %v2915 = vadd.f32 %v1851, %v2914
    %v2916 = vpop.f32.mrf.mxu0
    %v2917 = vadd.f32 %v1851, %v2916
    %2918 = vmatmul.bf16.gmra.mxu0 %v2094
    %v2919 = vpop.f32.mrf.mxu0
    %v2920 = vadd.f32 %v1851, %v2919
    %v2921 = vpop.f32.mrf.mxu0
    %v2922 = vadd.f32 %v1851, %v2921
    %2923 = vmatmul.bf16.gmra.mxu0 %v2098
    %v2924 = vpop.f32.mrf.mxu0
    %v2925 = vadd.f32 %v1851, %v2924
    %v2926 = vpop.f32.mrf.mxu0
    %v2927 = vadd.f32 %v1851, %v2926
    %2928 = vmatmul.bf16.gmra.mxu0 %v2102
    %v2929 = vpop.f32.mrf.mxu0
    %v2930 = vadd.f32 %v1851, %v2929
    %v2931 = vpop.f32.mrf.mxu0
    %v2932 = vadd.f32 %v1851, %v2931
    %2933 = vmatmul.bf16.gmra.mxu0 %v2106
    %v2934 = vpop.f32.mrf.mxu0
    %v2935 = vadd.f32 %v1851, %v2934
    %v2936 = vpop.f32.mrf.mxu0
    %v2937 = vadd.f32 %v1851, %v2936
    %2938 = vdwg.mxu0
    %2939 = vmatpush.bf16.msra.mxu0 %v2397
    %2940 = vmatpush.bf16.msra.mxu0 %v2395
    %2941 = vmatpush.bf16.msra.mxu0 %v2393
    %2942 = vmatpush.bf16.msra.mxu0 %v2391
    %2943 = vmatpush.bf16.msra.mxu0 %v2389
    %2944 = vmatpush.bf16.msra.mxu0 %v2387
    %2945 = vmatpush.bf16.msra.mxu0 %v2385
    %2946 = vmatpush.bf16.msra.mxu0 %v2383
    %2947 = vmatmul.bf16.gmra.mxu0 %v2047
    %v2948 = vpop.f32.mrf.mxu0
    %v2949 = vadd.f32 %v2860, %v2948
    %v2950 = vpop.f32.mrf.mxu0
    %v2951 = vadd.f32 %v2862, %v2950
    %2952 = vmatmul.bf16.gmra.mxu0 %v2051
    %v2953 = vpop.f32.mrf.mxu0
    %v2954 = vadd.f32 %v2865, %v2953
    %v2955 = vpop.f32.mrf.mxu0
    %v2956 = vadd.f32 %v2867, %v2955
    %2957 = vmatmul.bf16.gmra.mxu0 %v2055
    %v2958 = vpop.f32.mrf.mxu0
    %v2959 = vadd.f32 %v2870, %v2958
    %v2960 = vpop.f32.mrf.mxu0
    %v2961 = vadd.f32 %v2872, %v2960
    %2962 = vmatmul.bf16.gmra.mxu0 %v2059
    %v2963 = vpop.f32.mrf.mxu0
    %v2964 = vadd.f32 %v2875, %v2963
    %v2965 = vpop.f32.mrf.mxu0
    %v2966 = vadd.f32 %v2877, %v2965
    %2967 = vmatmul.bf16.gmra.mxu0 %v2063
    %v2968 = vpop.f32.mrf.mxu0
    %v2969 = vadd.f32 %v2880, %v2968
    %v2970 = vpop.f32.mrf.mxu0
    %v2971 = vadd.f32 %v2882, %v2970
    %2972 = vmatmul.bf16.gmra.mxu0 %v2067
    %v2973 = vpop.f32.mrf.mxu0
    %v2974 = vadd.f32 %v2885, %v2973
    %v2975 = vpop.f32.mrf.mxu0
    %v2976 = vadd.f32 %v2887, %v2975
    %2977 = vmatmul.bf16.gmra.mxu0 %v2071
    %v2978 = vpop.f32.mrf.mxu0
    %v2979 = vadd.f32 %v2890, %v2978
    %v2980 = vpop.f32.mrf.mxu0
    %v2981 = vadd.f32 %v2892, %v2980
    %2982 = vmatmul.bf16.gmra.mxu0 %v2075
    %v2983 = vpop.f32.mrf.mxu0
    %v2984 = vadd.f32 %v2895, %v2983
    %v2985 = vpop.f32.mrf.mxu0
    %v2986 = vadd.f32 %v2897, %v2985
    %2987 = vmatmul.bf16.gmra.mxu0 %v2079
    %v2988 = vpop.f32.mrf.mxu0
    %v2989 = vadd.f32 %v2900, %v2988
    %v2990 = vpop.f32.mrf.mxu0
    %v2991 = vadd.f32 %v2902, %v2990
    %2992 = vmatmul.bf16.gmra.mxu0 %v2083
    %v2993 = vpop.f32.mrf.mxu0
    %v2994 = vadd.f32 %v2905, %v2993
    %v2995 = vpop.f32.mrf.mxu0
    %v2996 = vadd.f32 %v2907, %v2995
    %2997 = vmatmul.bf16.gmra.mxu0 %v2087
    %v2998 = vpop.f32.mrf.mxu0
    %v2999 = vadd.f32 %v2910, %v2998
    %v3000 = vpop.f32.mrf.mxu0
    %v3001 = vadd.f32 %v2912, %v3000
    %3002 = vmatmul.bf16.gmra.mxu0 %v2091
    %v3003 = vpop.f32.mrf.mxu0
    %v3004 = vadd.f32 %v2915, %v3003
    %v3005 = vpop.f32.mrf.mxu0
    %v3006 = vadd.f32 %v2917, %v3005
    %3007 = vmatmul.bf16.gmra.mxu0 %v2095
    %v3008 = vpop.f32.mrf.mxu0
    %v3009 = vadd.f32 %v2920, %v3008
    %v3010 = vpop.f32.mrf.mxu0
    %v3011 = vadd.f32 %v2922, %v3010
    %3012 = vmatmul.bf16.gmra.mxu0 %v2099
    %v3013 = vpop.f32.mrf.mxu0
    %v3014 = vadd.f32 %v2925, %v3013
    %v3015 = vpop.f32.mrf.mxu0
    %v3016 = vadd.f32 %v2927, %v3015
    %3017 = vmatmul.bf16.gmra.mxu0 %v2103
    %v3018 = vpop.f32.mrf.mxu0
    %v3019 = vadd.f32 %v2930, %v3018
    %v3020 = vpop.f32.mrf.mxu0
    %v3021 = vadd.f32 %v2932, %v3020
    %3022 = vmatmul.bf16.gmra.mxu0 %v2107
    %v3023 = vpop.f32.mrf.mxu0
    %v3024 = vadd.f32 %v2935, %v3023
    %v3025 = vpop.f32.mrf.mxu0
    %v3026 = vadd.f32 %v2937, %v3025
    %3027 = vdwg.mxu0
    %3028 = vmatpush.bf16.msra.mxu0 %v2413
    %3029 = vmatpush.bf16.msra.mxu0 %v2411
    %3030 = vmatpush.bf16.msra.mxu0 %v2409
    %3031 = vmatpush.bf16.msra.mxu0 %v2407
    %3032 = vmatpush.bf16.msra.mxu0 %v2405
    %3033 = vmatpush.bf16.msra.mxu0 %v2403
    %3034 = vmatpush.bf16.msra.mxu0 %v2401
    %3035 = vmatpush.bf16.msra.mxu0 %v2399
    %3036 = vmatmul.bf16.gmra.mxu0 %v2048
    %v3037 = vpop.f32.mrf.mxu0
    %v3038 = vadd.f32 %v2949, %v3037
    %v3039 = vpop.f32.mrf.mxu0
    %v3040 = vadd.f32 %v2951, %v3039
    %3041 = vmatmul.bf16.gmra.mxu0 %v2052
    %v3042 = vpop.f32.mrf.mxu0
    %v3043 = vadd.f32 %v2954, %v3042
    %v3044 = vpop.f32.mrf.mxu0
    %v3045 = vadd.f32 %v2956, %v3044
    %3046 = vmatmul.bf16.gmra.mxu0 %v2056
    %v3047 = vpop.f32.mrf.mxu0
    %v3048 = vadd.f32 %v2959, %v3047
    %v3049 = vpop.f32.mrf.mxu0
    %v3050 = vadd.f32 %v2961, %v3049
    %3051 = vmatmul.bf16.gmra.mxu0 %v2060
    %v3052 = vpop.f32.mrf.mxu0
    %v3053 = vadd.f32 %v2964, %v3052
    %v3054 = vpop.f32.mrf.mxu0
    %v3055 = vadd.f32 %v2966, %v3054
    %3056 = vmatmul.bf16.gmra.mxu0 %v2064
    %v3057 = vpop.f32.mrf.mxu0
    %v3058 = vadd.f32 %v2969, %v3057
    %v3059 = vpop.f32.mrf.mxu0
    %v3060 = vadd.f32 %v2971, %v3059
    %3061 = vmatmul.bf16.gmra.mxu0 %v2068
    %v3062 = vpop.f32.mrf.mxu0
    %v3063 = vadd.f32 %v2974, %v3062
    %v3064 = vpop.f32.mrf.mxu0
    %v3065 = vadd.f32 %v2976, %v3064
    %3066 = vmatmul.bf16.gmra.mxu0 %v2072
    %v3067 = vpop.f32.mrf.mxu0
    %v3068 = vadd.f32 %v2979, %v3067
    %v3069 = vpop.f32.mrf.mxu0
    %v3070 = vadd.f32 %v2981, %v3069
    %3071 = vmatmul.bf16.gmra.mxu0 %v2076
    %v3072 = vpop.f32.mrf.mxu0
    %v3073 = vadd.f32 %v2984, %v3072
    %v3074 = vpop.f32.mrf.mxu0
    %v3075 = vadd.f32 %v2986, %v3074
    %3076 = vmatmul.bf16.gmra.mxu0 %v2080
    %v3077 = vpop.f32.mrf.mxu0
    %v3078 = vadd.f32 %v2989, %v3077
    %v3079 = vpop.f32.mrf.mxu0
    %v3080 = vadd.f32 %v2991, %v3079
    %3081 = vmatmul.bf16.gmra.mxu0 %v2084
    %v3082 = vpop.f32.mrf.mxu0
    %v3083 = vadd.f32 %v2994, %v3082
    %v3084 = vpop.f32.mrf.mxu0
    %v3085 = vadd.f32 %v2996, %v3084
    %3086 = vmatmul.bf16.gmra.mxu0 %v2088
    %v3087 = vpop.f32.mrf.mxu0
    %v3088 = vadd.f32 %v2999, %v3087
    %v3089 = vpop.f32.mrf.mxu0
    %v3090 = vadd.f32 %v3001, %v3089
    %3091 = vmatmul.bf16.gmra.mxu0 %v2092
    %v3092 = vpop.f32.mrf.mxu0
    %v3093 = vadd.f32 %v3004, %v3092
    %v3094 = vpop.f32.mrf.mxu0
    %v3095 = vadd.f32 %v3006, %v3094
    %3096 = vmatmul.bf16.gmra.mxu0 %v2096
    %v3097 = vpop.f32.mrf.mxu0
    %v3098 = vadd.f32 %v3009, %v3097
    %v3099 = vpop.f32.mrf.mxu0
    %v3100 = vadd.f32 %v3011, %v3099
    %3101 = vmatmul.bf16.gmra.mxu0 %v2100
    %v3102 = vpop.f32.mrf.mxu0
    %v3103 = vadd.f32 %v3014, %v3102
    %v3104 = vpop.f32.mrf.mxu0
    %v3105 = vadd.f32 %v3016, %v3104
    %3106 = vmatmul.bf16.gmra.mxu0 %v2104
    %v3107 = vpop.f32.mrf.mxu0
    %v3108 = vadd.f32 %v3019, %v3107
    %v3109 = vpop.f32.mrf.mxu0
    %v3110 = vadd.f32 %v3021, %v3109
    %3111 = vmatmul.bf16.gmra.mxu0 %v2108
    %v3112 = vpop.f32.mrf.mxu0
    %v3113 = vadd.f32 %v3024, %v3112
    %v3114 = vpop.f32.mrf.mxu0
    %v3115 = vadd.f32 %v3026, %v3114
    %3116 = vdwg.mxu0
    %3117 = vmatpush.bf16.msra.mxu0 %v2429
    %3118 = vmatpush.bf16.msra.mxu0 %v2427
    %3119 = vmatpush.bf16.msra.mxu0 %v2425
    %3120 = vmatpush.bf16.msra.mxu0 %v2423
    %3121 = vmatpush.bf16.msra.mxu0 %v2421
    %3122 = vmatpush.bf16.msra.mxu0 %v2419
    %3123 = vmatpush.bf16.msra.mxu0 %v2417
    %3124 = vmatpush.bf16.msra.mxu0 %v2415
    %3125 = vmatmul.bf16.gmra.mxu0 %v2049
    %v3126 = vpop.f32.mrf.mxu0
    %v3127 = vadd.f32 %v3038, %v3126
    %v3128 = vpop.f32.mrf.mxu0
    %v3129 = vadd.f32 %v3040, %v3128
    %3130 = vmatmul.bf16.gmra.mxu0 %v2053
    %v3131 = vpop.f32.mrf.mxu0
    %v3132 = vadd.f32 %v3043, %v3131
    %v3133 = vpop.f32.mrf.mxu0
    %v3134 = vadd.f32 %v3045, %v3133
    %3135 = vmatmul.bf16.gmra.mxu0 %v2057
    %v3136 = vpop.f32.mrf.mxu0
    %v3137 = vadd.f32 %v3048, %v3136
    %v3138 = vpop.f32.mrf.mxu0
    %v3139 = vadd.f32 %v3050, %v3138
    %3140 = vmatmul.bf16.gmra.mxu0 %v2061
    %v3141 = vpop.f32.mrf.mxu0
    %v3142 = vadd.f32 %v3053, %v3141
    %v3143 = vpop.f32.mrf.mxu0
    %v3144 = vadd.f32 %v3055, %v3143
    %3145 = vmatmul.bf16.gmra.mxu0 %v2065
    %v3146 = vpop.f32.mrf.mxu0
    %v3147 = vadd.f32 %v3058, %v3146
    %v3148 = vpop.f32.mrf.mxu0
    %v3149 = vadd.f32 %v3060, %v3148
    %3150 = vmatmul.bf16.gmra.mxu0 %v2069
    %v3151 = vpop.f32.mrf.mxu0
    %v3152 = vadd.f32 %v3063, %v3151
    %v3153 = vpop.f32.mrf.mxu0
    %v3154 = vadd.f32 %v3065, %v3153
    %3155 = vmatmul.bf16.gmra.mxu0 %v2073
    %v3156 = vpop.f32.mrf.mxu0
    %v3157 = vadd.f32 %v3068, %v3156
    %v3158 = vpop.f32.mrf.mxu0
    %v3159 = vadd.f32 %v3070, %v3158
    %3160 = vmatmul.bf16.gmra.mxu0 %v2077
    %v3161 = vpop.f32.mrf.mxu0
    %v3162 = vadd.f32 %v3073, %v3161
    %v3163 = vpop.f32.mrf.mxu0
    %v3164 = vadd.f32 %v3075, %v3163
    %3165 = vmatmul.bf16.gmra.mxu0 %v2081
    %v3166 = vpop.f32.mrf.mxu0
    %v3167 = vadd.f32 %v3078, %v3166
    %v3168 = vpop.f32.mrf.mxu0
    %v3169 = vadd.f32 %v3080, %v3168
    %3170 = vmatmul.bf16.gmra.mxu0 %v2085
    %v3171 = vpop.f32.mrf.mxu0
    %v3172 = vadd.f32 %v3083, %v3171
    %v3173 = vpop.f32.mrf.mxu0
    %v3174 = vadd.f32 %v3085, %v3173
    %3175 = vmatmul.bf16.gmra.mxu0 %v2089
    %v3176 = vpop.f32.mrf.mxu0
    %v3177 = vadd.f32 %v3088, %v3176
    %v3178 = vpop.f32.mrf.mxu0
    %v3179 = vadd.f32 %v3090, %v3178
    %3180 = vmatmul.bf16.gmra.mxu0 %v2093
    %v3181 = vpop.f32.mrf.mxu0
    %v3182 = vadd.f32 %v3093, %v3181
    %v3183 = vpop.f32.mrf.mxu0
    %v3184 = vadd.f32 %v3095, %v3183
    %3185 = vmatmul.bf16.gmra.mxu0 %v2097
    %v3186 = vpop.f32.mrf.mxu0
    %v3187 = vadd.f32 %v3098, %v3186
    %v3188 = vpop.f32.mrf.mxu0
    %v3189 = vadd.f32 %v3100, %v3188
    %3190 = vmatmul.bf16.gmra.mxu0 %v2101
    %v3191 = vpop.f32.mrf.mxu0
    %v3192 = vadd.f32 %v3103, %v3191
    %v3193 = vpop.f32.mrf.mxu0
    %v3194 = vadd.f32 %v3105, %v3193
    %3195 = vmatmul.bf16.gmra.mxu0 %v2105
    %v3196 = vpop.f32.mrf.mxu0
    %v3197 = vadd.f32 %v3108, %v3196
    %v3198 = vpop.f32.mrf.mxu0
    %v3199 = vadd.f32 %v3110, %v3198
    %3200 = vmatmul.bf16.gmra.mxu0 %v2109
    %v3201 = vpop.f32.mrf.mxu0
    %v3202 = vadd.f32 %v3113, %v3201
    %v3203 = vpop.f32.mrf.mxu0
    %v3204 = vadd.f32 %v3115, %v3203
    %3205 = vdwg.mxu0
    %v3206 = vpack.c.bf16 %v3127, %v2771
    %v3207 = vpack.c.bf16 %v3129, %v2773
    %v3208 = vpack.c.bf16 %v3132, %v2776
    %v3209 = vpack.c.bf16 %v3134, %v2778
    %v3210 = vpack.c.bf16 %v3137, %v2781
    %v3211 = vpack.c.bf16 %v3139, %v2783
    %v3212 = vpack.c.bf16 %v3142, %v2786
    %v3213 = vpack.c.bf16 %v3144, %v2788
    %v3214 = vpack.c.bf16 %v3147, %v2791
    %v3215 = vpack.c.bf16 %v3149, %v2793
    %v3216 = vpack.c.bf16 %v3152, %v2796
    %v3217 = vpack.c.bf16 %v3154, %v2798
    %v3218 = vpack.c.bf16 %v3157, %v2801
    %v3219 = vpack.c.bf16 %v3159, %v2803
    %v3220 = vpack.c.bf16 %v3162, %v2806
    %v3221 = vpack.c.bf16 %v3164, %v2808
    %v3222 = vpack.c.bf16 %v3167, %v2811
    %v3223 = vpack.c.bf16 %v3169, %v2813
    %v3224 = vpack.c.bf16 %v3172, %v2816
    %v3225 = vpack.c.bf16 %v3174, %v2818
    %v3226 = vpack.c.bf16 %v3177, %v2821
    %v3227 = vpack.c.bf16 %v3179, %v2823
    %v3228 = vpack.c.bf16 %v3182, %v2826
    %v3229 = vpack.c.bf16 %v3184, %v2828
    %v3230 = vpack.c.bf16 %v3187, %v2831
    %v3231 = vpack.c.bf16 %v3189, %v2833
    %v3232 = vpack.c.bf16 %v3192, %v2836
    %v3233 = vpack.c.bf16 %v3194, %v2838
    %v3234 = vpack.c.bf16 %v3197, %v2841
    %v3235 = vpack.c.bf16 %v3199, %v2843
    %v3236 = vpack.c.bf16 %v3202, %v2846
    %v3237 = vpack.c.bf16 %v3204, %v2848
    %v3238 = vunpack.c.l.bf16 %v3206
    %v3239 = vunpack.c.h.bf16 %v3206
    %v3240 = vunpack.c.l.bf16 %v3207
    %v3241 = vunpack.c.h.bf16 %v3207
    %v3242 = vunpack.c.l.bf16 %v3208
    %v3243 = vunpack.c.h.bf16 %v3208
    %v3244 = vunpack.c.l.bf16 %v3209
    %v3245 = vunpack.c.h.bf16 %v3209
    %v3246 = vunpack.c.l.bf16 %v3210
    %v3247 = vunpack.c.h.bf16 %v3210
    %v3248 = vunpack.c.l.bf16 %v3211
    %v3249 = vunpack.c.h.bf16 %v3211
    %v3250 = vunpack.c.l.bf16 %v3212
    %v3251 = vunpack.c.h.bf16 %v3212
    %v3252 = vunpack.c.l.bf16 %v3213
    %v3253 = vunpack.c.h.bf16 %v3213
    %v3254 = vunpack.c.l.bf16 %v3214
    %v3255 = vunpack.c.h.bf16 %v3214
    %v3256 = vunpack.c.l.bf16 %v3215
    %v3257 = vunpack.c.h.bf16 %v3215
    %v3258 = vunpack.c.l.bf16 %v3216
    %v3259 = vunpack.c.h.bf16 %v3216
    %v3260 = vunpack.c.l.bf16 %v3217
    %v3261 = vunpack.c.h.bf16 %v3217
    %v3262 = vunpack.c.l.bf16 %v3218
    %v3263 = vunpack.c.h.bf16 %v3218
    %v3264 = vunpack.c.l.bf16 %v3219
    %v3265 = vunpack.c.h.bf16 %v3219
    %v3266 = vunpack.c.l.bf16 %v3220
    %v3267 = vunpack.c.h.bf16 %v3220
    %v3268 = vunpack.c.l.bf16 %v3221
    %v3269 = vunpack.c.h.bf16 %v3221
    %v3270 = vunpack.c.l.bf16 %v3222
    %v3271 = vunpack.c.h.bf16 %v3222
    %v3272 = vunpack.c.l.bf16 %v3223
    %v3273 = vunpack.c.h.bf16 %v3223
    %v3274 = vunpack.c.l.bf16 %v3224
    %v3275 = vunpack.c.h.bf16 %v3224
    %v3276 = vunpack.c.l.bf16 %v3225
    %v3277 = vunpack.c.h.bf16 %v3225
    %v3278 = vunpack.c.l.bf16 %v3226
    %v3279 = vunpack.c.h.bf16 %v3226
    %v3280 = vunpack.c.l.bf16 %v3227
    %v3281 = vunpack.c.h.bf16 %v3227
    %v3282 = vunpack.c.l.bf16 %v3228
    %v3283 = vunpack.c.h.bf16 %v3228
    %v3284 = vunpack.c.l.bf16 %v3229
    %v3285 = vunpack.c.h.bf16 %v3229
    %v3286 = vunpack.c.l.bf16 %v3230
    %v3287 = vunpack.c.h.bf16 %v3230
    %v3288 = vunpack.c.l.bf16 %v3231
    %v3289 = vunpack.c.h.bf16 %v3231
    %v3290 = vunpack.c.l.bf16 %v3232
    %v3291 = vunpack.c.h.bf16 %v3232
    %v3292 = vunpack.c.l.bf16 %v3233
    %v3293 = vunpack.c.h.bf16 %v3233
    %v3294 = vunpack.c.l.bf16 %v3234
    %v3295 = vunpack.c.h.bf16 %v3234
    %v3296 = vunpack.c.l.bf16 %v3235
    %v3297 = vunpack.c.h.bf16 %v3235
    %v3298 = vunpack.c.l.bf16 %v3236
    %v3299 = vunpack.c.h.bf16 %v3236
    %v3300 = vunpack.c.l.bf16 %v3237
    %v3301 = vunpack.c.h.bf16 %v3237
    %vm3302 = vcmp.gt.f32.partialorder %v3238, 0.0
    %vm3303 = vcmp.gt.f32.partialorder %v3239, 0.0
    %vm3304 = vcmp.gt.f32.partialorder %v3240, 0.0
    %vm3305 = vcmp.gt.f32.partialorder %v3241, 0.0
    %vm3306 = vcmp.gt.f32.partialorder %v3242, 0.0
    %vm3307 = vcmp.gt.f32.partialorder %v3243, 0.0
    %vm3308 = vcmp.gt.f32.partialorder %v3244, 0.0
    %vm3309 = vcmp.gt.f32.partialorder %v3245, 0.0
    %vm3310 = vcmp.gt.f32.partialorder %v3246, 0.0
    %vm3311 = vcmp.gt.f32.partialorder %v3247, 0.0
    %vm3312 = vcmp.gt.f32.partialorder %v3248, 0.0
    %vm3313 = vcmp.gt.f32.partialorder %v3249, 0.0
    %vm3314 = vcmp.gt.f32.partialorder %v3250, 0.0
    %vm3315 = vcmp.gt.f32.partialorder %v3251, 0.0
    %vm3316 = vcmp.gt.f32.partialorder %v3252, 0.0
    %vm3317 = vcmp.gt.f32.partialorder %v3253, 0.0
    %vm3318 = vcmp.gt.f32.partialorder %v3254, 0.0
    %vm3319 = vcmp.gt.f32.partialorder %v3255, 0.0
    %vm3320 = vcmp.gt.f32.partialorder %v3256, 0.0
    %vm3321 = vcmp.gt.f32.partialorder %v3257, 0.0
    %vm3322 = vcmp.gt.f32.partialorder %v3258, 0.0
    %vm3323 = vcmp.gt.f32.partialorder %v3259, 0.0
    %vm3324 = vcmp.gt.f32.partialorder %v3260, 0.0
    %vm3325 = vcmp.gt.f32.partialorder %v3261, 0.0
    %vm3326 = vcmp.gt.f32.partialorder %v3262, 0.0
    %vm3327 = vcmp.gt.f32.partialorder %v3263, 0.0
    %vm3328 = vcmp.gt.f32.partialorder %v3264, 0.0
    %vm3329 = vcmp.gt.f32.partialorder %v3265, 0.0
    %vm3330 = vcmp.gt.f32.partialorder %v3266, 0.0
    %vm3331 = vcmp.gt.f32.partialorder %v3267, 0.0
    %vm3332 = vcmp.gt.f32.partialorder %v3268, 0.0
    %vm3333 = vcmp.gt.f32.partialorder %v3269, 0.0
    %vm3334 = vcmp.gt.f32.partialorder %v3270, 0.0
    %vm3335 = vcmp.gt.f32.partialorder %v3271, 0.0
    %vm3336 = vcmp.gt.f32.partialorder %v3272, 0.0
    %vm3337 = vcmp.gt.f32.partialorder %v3273, 0.0
    %vm3338 = vcmp.gt.f32.partialorder %v3274, 0.0
    %vm3339 = vcmp.gt.f32.partialorder %v3275, 0.0
    %vm3340 = vcmp.gt.f32.partialorder %v3276, 0.0
    %vm3341 = vcmp.gt.f32.partialorder %v3277, 0.0
    %vm3342 = vcmp.gt.f32.partialorder %v3278, 0.0
    %vm3343 = vcmp.gt.f32.partialorder %v3279, 0.0
    %vm3344 = vcmp.gt.f32.partialorder %v3280, 0.0
    %vm3345 = vcmp.gt.f32.partialorder %v3281, 0.0
    %vm3346 = vcmp.gt.f32.partialorder %v3282, 0.0
    %vm3347 = vcmp.gt.f32.partialorder %v3283, 0.0
    %vm3348 = vcmp.gt.f32.partialorder %v3284, 0.0
    %vm3349 = vcmp.gt.f32.partialorder %v3285, 0.0
    %vm3350 = vcmp.gt.f32.partialorder %v3286, 0.0
    %vm3351 = vcmp.gt.f32.partialorder %v3287, 0.0
    %vm3352 = vcmp.gt.f32.partialorder %v3288, 0.0
    %vm3353 = vcmp.gt.f32.partialorder %v3289, 0.0
    %vm3354 = vcmp.gt.f32.partialorder %v3290, 0.0
    %vm3355 = vcmp.gt.f32.partialorder %v3291, 0.0
    %vm3356 = vcmp.gt.f32.partialorder %v3292, 0.0
    %vm3357 = vcmp.gt.f32.partialorder %v3293, 0.0
    %vm3358 = vcmp.gt.f32.partialorder %v3294, 0.0
    %vm3359 = vcmp.gt.f32.partialorder %v3295, 0.0
    %vm3360 = vcmp.gt.f32.partialorder %v3296, 0.0
    %vm3361 = vcmp.gt.f32.partialorder %v3297, 0.0
    %vm3362 = vcmp.gt.f32.partialorder %v3298, 0.0
    %vm3363 = vcmp.gt.f32.partialorder %v3299, 0.0
    %vm3364 = vcmp.gt.f32.partialorder %v3300, 0.0
    %vm3365 = vcmp.gt.f32.partialorder %v3301, 0.0
    %v3366 = vmul.f32 %v3238, 1.442695
    %v3367 = vpow.pop %v3366
    %v3368 = vmul.f32 %v3239, 1.442695
    %v3369 = vpow.pop %v3368
    %v3370 = vmul.f32 %v3240, 1.442695
    %v3371 = vpow.pop %v3370
    %v3372 = vmul.f32 %v3241, 1.442695
    %v3373 = vpow.pop %v3372
    %v3374 = vmul.f32 %v3242, 1.442695
    %v3375 = vpow.pop %v3374
    %v3376 = vmul.f32 %v3243, 1.442695
    %v3377 = vpow.pop %v3376
    %v3378 = vmul.f32 %v3244, 1.442695
    %v3379 = vpow.pop %v3378
    %v3380 = vmul.f32 %v3245, 1.442695
    %v3381 = vpow.pop %v3380
    %v3382 = vmul.f32 %v3246, 1.442695
    %v3383 = vpow.pop %v3382
    %v3384 = vmul.f32 %v3247, 1.442695
    %v3385 = vpow.pop %v3384
    %v3386 = vmul.f32 %v3248, 1.442695
    %v3387 = vpow.pop %v3386
    %v3388 = vmul.f32 %v3249, 1.442695
    %v3389 = vpow.pop %v3388
    %v3390 = vmul.f32 %v3250, 1.442695
    %v3391 = vpow.pop %v3390
    %v3392 = vmul.f32 %v3251, 1.442695
    %v3393 = vpow.pop %v3392
    %v3394 = vmul.f32 %v3252, 1.442695
    %v3395 = vpow.pop %v3394
    %v3396 = vmul.f32 %v3253, 1.442695
    %v3397 = vpow.pop %v3396
    %v3398 = vmul.f32 %v3254, 1.442695
    %v3399 = vpow.pop %v3398
    %v3400 = vmul.f32 %v3255, 1.442695
    %v3401 = vpow.pop %v3400
    %v3402 = vmul.f32 %v3256, 1.442695
    %v3403 = vpow.pop %v3402
    %v3404 = vmul.f32 %v3257, 1.442695
    %v3405 = vpow.pop %v3404
    %v3406 = vmul.f32 %v3258, 1.442695
    %v3407 = vpow.pop %v3406
    %v3408 = vmul.f32 %v3259, 1.442695
    %v3409 = vpow.pop %v3408
    %v3410 = vmul.f32 %v3260, 1.442695
    %v3411 = vpow.pop %v3410
    %v3412 = vmul.f32 %v3261, 1.442695
    %v3413 = vpow.pop %v3412
    %v3414 = vmul.f32 %v3262, 1.442695
    %v3415 = vpow.pop %v3414
    %v3416 = vmul.f32 %v3263, 1.442695
    %v3417 = vpow.pop %v3416
    %v3418 = vmul.f32 %v3264, 1.442695
    %v3419 = vpow.pop %v3418
    %v3420 = vmul.f32 %v3265, 1.442695
    %v3421 = vpow.pop %v3420
    %v3422 = vmul.f32 %v3266, 1.442695
    %v3423 = vpow.pop %v3422
    %v3424 = vmul.f32 %v3267, 1.442695
    %v3425 = vpow.pop %v3424
    %v3426 = vmul.f32 %v3268, 1.442695
    %v3427 = vpow.pop %v3426
    %v3428 = vmul.f32 %v3269, 1.442695
    %v3429 = vpow.pop %v3428
    %v3430 = vmul.f32 %v3270, 1.442695
    %v3431 = vpow.pop %v3430
    %v3432 = vmul.f32 %v3271, 1.442695
    %v3433 = vpow.pop %v3432
    %v3434 = vmul.f32 %v3272, 1.442695
    %v3435 = vpow.pop %v3434
    %v3436 = vmul.f32 %v3273, 1.442695
    %v3437 = vpow.pop %v3436
    %v3438 = vmul.f32 %v3274, 1.442695
    %v3439 = vpow.pop %v3438
    %v3440 = vmul.f32 %v3275, 1.442695
    %v3441 = vpow.pop %v3440
    %v3442 = vmul.f32 %v3276, 1.442695
    %v3443 = vpow.pop %v3442
    %v3444 = vmul.f32 %v3277, 1.442695
    %v3445 = vpow.pop %v3444
    %v3446 = vmul.f32 %v3278, 1.442695
    %v3447 = vpow.pop %v3446
    %v3448 = vmul.f32 %v3279, 1.442695
    %v3449 = vpow.pop %v3448
    %v3450 = vmul.f32 %v3280, 1.442695
    %v3451 = vpow.pop %v3450
    %v3452 = vmul.f32 %v3281, 1.442695
    %v3453 = vpow.pop %v3452
    %v3454 = vmul.f32 %v3282, 1.442695
    %v3455 = vpow.pop %v3454
    %v3456 = vmul.f32 %v3283, 1.442695
    %v3457 = vpow.pop %v3456
    %v3458 = vmul.f32 %v3284, 1.442695
    %v3459 = vpow.pop %v3458
    %v3460 = vmul.f32 %v3285, 1.442695
    %v3461 = vpow.pop %v3460
    %v3462 = vmul.f32 %v3286, 1.442695
    %v3463 = vpow.pop %v3462
    %v3464 = vmul.f32 %v3287, 1.442695
    %v3465 = vpow.pop %v3464
    %v3466 = vmul.f32 %v3288, 1.442695
    %v3467 = vpow.pop %v3466
    %v3468 = vmul.f32 %v3289, 1.442695
    %v3469 = vpow.pop %v3468
    %v3470 = vmul.f32 %v3290, 1.442695
    %v3471 = vpow.pop %v3470
    %v3472 = vmul.f32 %v3291, 1.442695
    %v3473 = vpow.pop %v3472
    %v3474 = vmul.f32 %v3292, 1.442695
    %v3475 = vpow.pop %v3474
    %v3476 = vmul.f32 %v3293, 1.442695
    %v3477 = vpow.pop %v3476
    %v3478 = vmul.f32 %v3294, 1.442695
    %v3479 = vpow.pop %v3478
    %v3480 = vmul.f32 %v3295, 1.442695
    %v3481 = vpow.pop %v3480
    %v3482 = vmul.f32 %v3296, 1.442695
    %v3483 = vpow.pop %v3482
    %v3484 = vmul.f32 %v3297, 1.442695
    %v3485 = vpow.pop %v3484
    %v3486 = vmul.f32 %v3298, 1.442695
    %v3487 = vpow.pop %v3486
    %v3488 = vmul.f32 %v3299, 1.442695
    %v3489 = vpow.pop %v3488
    %v3490 = vmul.f32 %v3300, 1.442695
    %v3491 = vpow.pop %v3490
    %v3492 = vmul.f32 %v3301, 1.442695
    %v3493 = vpow.pop %v3492
    %v3494 = vpack.c.bf16 %v3369, %v3367
    %v3495 = vpack.c.bf16 %v3373, %v3371
    %v3496 = vpack.c.bf16 %v3377, %v3375
    %v3497 = vpack.c.bf16 %v3381, %v3379
    %v3498 = vpack.c.bf16 %v3385, %v3383
    %v3499 = vpack.c.bf16 %v3389, %v3387
    %v3500 = vpack.c.bf16 %v3393, %v3391
    %v3501 = vpack.c.bf16 %v3397, %v3395
    %v3502 = vpack.c.bf16 %v3401, %v3399
    %v3503 = vpack.c.bf16 %v3405, %v3403
    %v3504 = vpack.c.bf16 %v3409, %v3407
    %v3505 = vpack.c.bf16 %v3413, %v3411
    %v3506 = vpack.c.bf16 %v3417, %v3415
    %v3507 = vpack.c.bf16 %v3421, %v3419
    %v3508 = vpack.c.bf16 %v3425, %v3423
    %v3509 = vpack.c.bf16 %v3429, %v3427
    %v3510 = vpack.c.bf16 %v3433, %v3431
    %v3511 = vpack.c.bf16 %v3437, %v3435
    %v3512 = vpack.c.bf16 %v3441, %v3439
    %v3513 = vpack.c.bf16 %v3445, %v3443
    %v3514 = vpack.c.bf16 %v3449, %v3447
    %v3515 = vpack.c.bf16 %v3453, %v3451
    %v3516 = vpack.c.bf16 %v3457, %v3455
    %v3517 = vpack.c.bf16 %v3461, %v3459
    %v3518 = vpack.c.bf16 %v3465, %v3463
    %v3519 = vpack.c.bf16 %v3469, %v3467
    %v3520 = vpack.c.bf16 %v3473, %v3471
    %v3521 = vpack.c.bf16 %v3477, %v3475
    %v3522 = vpack.c.bf16 %v3481, %v3479
    %v3523 = vpack.c.bf16 %v3485, %v3483
    %v3524 = vpack.c.bf16 %v3489, %v3487
    %v3525 = vpack.c.bf16 %v3493, %v3491
    %v3526 = vunpack.c.l.bf16 %v3494
    %v3527 = vunpack.c.h.bf16 %v3494
    %v3528 = vunpack.c.l.bf16 %v3495
    %v3529 = vunpack.c.h.bf16 %v3495
    %v3530 = vunpack.c.l.bf16 %v3496
    %v3531 = vunpack.c.h.bf16 %v3496
    %v3532 = vunpack.c.l.bf16 %v3497
    %v3533 = vunpack.c.h.bf16 %v3497
    %v3534 = vunpack.c.l.bf16 %v3498
    %v3535 = vunpack.c.h.bf16 %v3498
    %v3536 = vunpack.c.l.bf16 %v3499
    %v3537 = vunpack.c.h.bf16 %v3499
    %v3538 = vunpack.c.l.bf16 %v3500
    %v3539 = vunpack.c.h.bf16 %v3500
    %v3540 = vunpack.c.l.bf16 %v3501
    %v3541 = vunpack.c.h.bf16 %v3501
    %v3542 = vunpack.c.l.bf16 %v3502
    %v3543 = vunpack.c.h.bf16 %v3502
    %v3544 = vunpack.c.l.bf16 %v3503
    %v3545 = vunpack.c.h.bf16 %v3503
    %v3546 = vunpack.c.l.bf16 %v3504
    %v3547 = vunpack.c.h.bf16 %v3504
    %v3548 = vunpack.c.l.bf16 %v3505
    %v3549 = vunpack.c.h.bf16 %v3505
    %v3550 = vunpack.c.l.bf16 %v3506
    %v3551 = vunpack.c.h.bf16 %v3506
    %v3552 = vunpack.c.l.bf16 %v3507
    %v3553 = vunpack.c.h.bf16 %v3507
    %v3554 = vunpack.c.l.bf16 %v3508
    %v3555 = vunpack.c.h.bf16 %v3508
    %v3556 = vunpack.c.l.bf16 %v3509
    %v3557 = vunpack.c.h.bf16 %v3509
    %v3558 = vunpack.c.l.bf16 %v3510
    %v3559 = vunpack.c.h.bf16 %v3510
    %v3560 = vunpack.c.l.bf16 %v3511
    %v3561 = vunpack.c.h.bf16 %v3511
    %v3562 = vunpack.c.l.bf16 %v3512
    %v3563 = vunpack.c.h.bf16 %v3512
    %v3564 = vunpack.c.l.bf16 %v3513
    %v3565 = vunpack.c.h.bf16 %v3513
    %v3566 = vunpack.c.l.bf16 %v3514
    %v3567 = vunpack.c.h.bf16 %v3514
    %v3568 = vunpack.c.l.bf16 %v3515
    %v3569 = vunpack.c.h.bf16 %v3515
    %v3570 = vunpack.c.l.bf16 %v3516
    %v3571 = vunpack.c.h.bf16 %v3516
    %v3572 = vunpack.c.l.bf16 %v3517
    %v3573 = vunpack.c.h.bf16 %v3517
    %v3574 = vunpack.c.l.bf16 %v3518
    %v3575 = vunpack.c.h.bf16 %v3518
    %v3576 = vunpack.c.l.bf16 %v3519
    %v3577 = vunpack.c.h.bf16 %v3519
    %v3578 = vunpack.c.l.bf16 %v3520
    %v3579 = vunpack.c.h.bf16 %v3520
    %v3580 = vunpack.c.l.bf16 %v3521
    %v3581 = vunpack.c.h.bf16 %v3521
    %v3582 = vunpack.c.l.bf16 %v3522
    %v3583 = vunpack.c.h.bf16 %v3522
    %v3584 = vunpack.c.l.bf16 %v3523
    %v3585 = vunpack.c.h.bf16 %v3523
    %v3586 = vunpack.c.l.bf16 %v3524
    %v3587 = vunpack.c.h.bf16 %v3524
    %v3588 = vunpack.c.l.bf16 %v3525
    %v3589 = vunpack.c.h.bf16 %v3525
    %v3590 = vsub.f32 %v3526, 1.0
    %v3591 = vsub.f32 %v3527, 1.0
    %v3592 = vsub.f32 %v3528, 1.0
    %v3593 = vsub.f32 %v3529, 1.0
    %v3594 = vsub.f32 %v3530, 1.0
    %v3595 = vsub.f32 %v3531, 1.0
    %v3596 = vsub.f32 %v3532, 1.0
    %v3597 = vsub.f32 %v3533, 1.0
    %v3598 = vsub.f32 %v3534, 1.0
    %v3599 = vsub.f32 %v3535, 1.0
    %v3600 = vsub.f32 %v3536, 1.0
    %v3601 = vsub.f32 %v3537, 1.0
    %v3602 = vsub.f32 %v3538, 1.0
    %v3603 = vsub.f32 %v3539, 1.0
    %v3604 = vsub.f32 %v3540, 1.0
    %v3605 = vsub.f32 %v3541, 1.0
    %v3606 = vsub.f32 %v3542, 1.0
    %v3607 = vsub.f32 %v3543, 1.0
    %v3608 = vsub.f32 %v3544, 1.0
    %v3609 = vsub.f32 %v3545, 1.0
    %v3610 = vsub.f32 %v3546, 1.0
    %v3611 = vsub.f32 %v3547, 1.0
    %v3612 = vsub.f32 %v3548, 1.0
    %v3613 = vsub.f32 %v3549, 1.0
    %v3614 = vsub.f32 %v3550, 1.0
    %v3615 = vsub.f32 %v3551, 1.0
    %v3616 = vsub.f32 %v3552, 1.0
    %v3617 = vsub.f32 %v3553, 1.0
    %v3618 = vsub.f32 %v3554, 1.0
    %v3619 = vsub.f32 %v3555, 1.0
    %v3620 = vsub.f32 %v3556, 1.0
    %v3621 = vsub.f32 %v3557, 1.0
    %v3622 = vsub.f32 %v3558, 1.0
    %v3623 = vsub.f32 %v3559, 1.0
    %v3624 = vsub.f32 %v3560, 1.0
    %v3625 = vsub.f32 %v3561, 1.0
    %v3626 = vsub.f32 %v3562, 1.0
    %v3627 = vsub.f32 %v3563, 1.0
    %v3628 = vsub.f32 %v3564, 1.0
    %v3629 = vsub.f32 %v3565, 1.0
    %v3630 = vsub.f32 %v3566, 1.0
    %v3631 = vsub.f32 %v3567, 1.0
    %v3632 = vsub.f32 %v3568, 1.0
    %v3633 = vsub.f32 %v3569, 1.0
    %v3634 = vsub.f32 %v3570, 1.0
    %v3635 = vsub.f32 %v3571, 1.0
    %v3636 = vsub.f32 %v3572, 1.0
    %v3637 = vsub.f32 %v3573, 1.0
    %v3638 = vsub.f32 %v3574, 1.0
    %v3639 = vsub.f32 %v3575, 1.0
    %v3640 = vsub.f32 %v3576, 1.0
    %v3641 = vsub.f32 %v3577, 1.0
    %v3642 = vsub.f32 %v3578, 1.0
    %v3643 = vsub.f32 %v3579, 1.0
    %v3644 = vsub.f32 %v3580, 1.0
    %v3645 = vsub.f32 %v3581, 1.0
    %v3646 = vsub.f32 %v3582, 1.0
    %v3647 = vsub.f32 %v3583, 1.0
    %v3648 = vsub.f32 %v3584, 1.0
    %v3649 = vsub.f32 %v3585, 1.0
    %v3650 = vsub.f32 %v3586, 1.0
    %v3651 = vsub.f32 %v3587, 1.0
    %v3652 = vsub.f32 %v3588, 1.0
    %v3653 = vsub.f32 %v3589, 1.0
    %v3654 = vpack.c.bf16 %v3591, %v3590
    %v3655 = vpack.c.bf16 %v3593, %v3592
    %v3656 = vpack.c.bf16 %v3595, %v3594
    %v3657 = vpack.c.bf16 %v3597, %v3596
    %v3658 = vpack.c.bf16 %v3599, %v3598
    %v3659 = vpack.c.bf16 %v3601, %v3600
    %v3660 = vpack.c.bf16 %v3603, %v3602
    %v3661 = vpack.c.bf16 %v3605, %v3604
    %v3662 = vpack.c.bf16 %v3607, %v3606
    %v3663 = vpack.c.bf16 %v3609, %v3608
    %v3664 = vpack.c.bf16 %v3611, %v3610
    %v3665 = vpack.c.bf16 %v3613, %v3612
    %v3666 = vpack.c.bf16 %v3615, %v3614
    %v3667 = vpack.c.bf16 %v3617, %v3616
    %v3668 = vpack.c.bf16 %v3619, %v3618
    %v3669 = vpack.c.bf16 %v3621, %v3620
    %v3670 = vpack.c.bf16 %v3623, %v3622
    %v3671 = vpack.c.bf16 %v3625, %v3624
    %v3672 = vpack.c.bf16 %v3627, %v3626
    %v3673 = vpack.c.bf16 %v3629, %v3628
    %v3674 = vpack.c.bf16 %v3631, %v3630
    %v3675 = vpack.c.bf16 %v3633, %v3632
    %v3676 = vpack.c.bf16 %v3635, %v3634
    %v3677 = vpack.c.bf16 %v3637, %v3636
    %v3678 = vpack.c.bf16 %v3639, %v3638
    %v3679 = vpack.c.bf16 %v3641, %v3640
    %v3680 = vpack.c.bf16 %v3643, %v3642
    %v3681 = vpack.c.bf16 %v3645, %v3644
    %v3682 = vpack.c.bf16 %v3647, %v3646
    %v3683 = vpack.c.bf16 %v3649, %v3648
    %v3684 = vpack.c.bf16 %v3651, %v3650
    %v3685 = vpack.c.bf16 %v3653, %v3652
    %vm3686 = vmpackc.low %vm3303, %vm3302
    %vm3687 = vmpackc.low %vm3305, %vm3304
    %vm3688 = vmpackc.low %vm3307, %vm3306
    %vm3689 = vmpackc.low %vm3309, %vm3308
    %vm3690 = vmpackc.low %vm3311, %vm3310
    %vm3691 = vmpackc.low %vm3313, %vm3312
    %vm3692 = vmpackc.low %vm3315, %vm3314
    %vm3693 = vmpackc.low %vm3317, %vm3316
    %vm3694 = vmpackc.low %vm3319, %vm3318
    %vm3695 = vmpackc.low %vm3321, %vm3320
    %vm3696 = vmpackc.low %vm3323, %vm3322
    %vm3697 = vmpackc.low %vm3325, %vm3324
    %vm3698 = vmpackc.low %vm3327, %vm3326
    %vm3699 = vmpackc.low %vm3329, %vm3328
    %vm3700 = vmpackc.low %vm3331, %vm3330
    %vm3701 = vmpackc.low %vm3333, %vm3332
    %vm3702 = vmpackc.low %vm3335, %vm3334
    %vm3703 = vmpackc.low %vm3337, %vm3336
    %vm3704 = vmpackc.low %vm3339, %vm3338
    %vm3705 = vmpackc.low %vm3341, %vm3340
    %vm3706 = vmpackc.low %vm3343, %vm3342
    %vm3707 = vmpackc.low %vm3345, %vm3344
    %vm3708 = vmpackc.low %vm3347, %vm3346
    %vm3709 = vmpackc.low %vm3349, %vm3348
    %vm3710 = vmpackc.low %vm3351, %vm3350
    %vm3711 = vmpackc.low %vm3353, %vm3352
    %vm3712 = vmpackc.low %vm3355, %vm3354
    %vm3713 = vmpackc.low %vm3357, %vm3356
    %vm3714 = vmpackc.low %vm3359, %vm3358
    %vm3715 = vmpackc.low %vm3361, %vm3360
    %vm3716 = vmpackc.low %vm3363, %vm3362
    %vm3717 = vmpackc.low %vm3365, %vm3364
    %v3718 = vsel %vm3686, %v3206, %v3654
    %v3719 = vsel %vm3687, %v3207, %v3655
    %v3720 = vsel %vm3688, %v3208, %v3656
    %v3721 = vsel %vm3689, %v3209, %v3657
    %v3722 = vsel %vm3690, %v3210, %v3658
    %v3723 = vsel %vm3691, %v3211, %v3659
    %v3724 = vsel %vm3692, %v3212, %v3660
    %v3725 = vsel %vm3693, %v3213, %v3661
    %v3726 = vsel %vm3694, %v3214, %v3662
    %v3727 = vsel %vm3695, %v3215, %v3663
    %v3728 = vsel %vm3696, %v3216, %v3664
    %v3729 = vsel %vm3697, %v3217, %v3665
    %v3730 = vsel %vm3698, %v3218, %v3666
    %v3731 = vsel %vm3699, %v3219, %v3667
    %v3732 = vsel %vm3700, %v3220, %v3668
    %v3733 = vsel %vm3701, %v3221, %v3669
    %v3734 = vsel %vm3702, %v3222, %v3670
    %v3735 = vsel %vm3703, %v3223, %v3671
    %v3736 = vsel %vm3704, %v3224, %v3672
    %v3737 = vsel %vm3705, %v3225, %v3673
    %v3738 = vsel %vm3706, %v3226, %v3674
    %v3739 = vsel %vm3707, %v3227, %v3675
    %v3740 = vsel %vm3708, %v3228, %v3676
    %v3741 = vsel %vm3709, %v3229, %v3677
    %v3742 = vsel %vm3710, %v3230, %v3678
    %v3743 = vsel %vm3711, %v3231, %v3679
    %v3744 = vsel %vm3712, %v3232, %v3680
    %v3745 = vsel %vm3713, %v3233, %v3681
    %v3746 = vsel %vm3714, %v3234, %v3682
    %v3747 = vsel %vm3715, %v3235, %v3683
    %v3748 = vsel %vm3716, %v3236, %v3684
    %v3749 = vsel %vm3717, %v3237, %v3685
    %v3750 = vld [vmem:[%s7] sm:$0xff]
    %v3751 = vld [vmem:[%s7 + $0x8] sm:$0xff]
    %v3752 = vld [vmem:[%s7 + $0x10] sm:$0xff]
    %v3753 = vld [vmem:[%s7 + $0x18] sm:$0xff]
    %v3754 = vld [vmem:[%s7 + $0x20] sm:$0xff]
    %v3755 = vld [vmem:[%s7 + $0x28] sm:$0xff]
    %v3756 = vld [vmem:[%s7 + $0x30] sm:$0xff]
    %v3757 = vld [vmem:[%s7 + $0x38] sm:$0xff]
    %v3758 = vld [vmem:[%s7 + $0x40] sm:$0xff]
    %v3759 = vld [vmem:[%s7 + $0x48] sm:$0xff]
    %v3760 = vld [vmem:[%s7 + $0x50] sm:$0xff]
    %v3761 = vld [vmem:[%s7 + $0x58] sm:$0xff]
    %v3762 = vld [vmem:[%s7 + $0x60] sm:$0xff]
    %v3763 = vld [vmem:[%s7 + $0x68] sm:$0xff]
    %v3764 = vld [vmem:[%s7 + $0x70] sm:$0xff]
    %v3765 = vld [vmem:[%s7 + $0x78] sm:$0xff]
    %v3766 = vld [vmem:[%s7 + $0x80] sm:$0xff]
    %v3767 = vld [vmem:[%s7 + $0x88] sm:$0xff]
    %v3768 = vld [vmem:[%s7 + $0x90] sm:$0xff]
    %v3769 = vld [vmem:[%s7 + $0x98] sm:$0xff]
    %v3770 = vld [vmem:[%s7 + $0xa0] sm:$0xff]
    %v3771 = vld [vmem:[%s7 + $0xa8] sm:$0xff]
    %v3772 = vld [vmem:[%s7 + $0xb0] sm:$0xff]
    %v3773 = vld [vmem:[%s7 + $0xb8] sm:$0xff]
    %v3774 = vld [vmem:[%s7 + $0xc0] sm:$0xff]
    %v3775 = vld [vmem:[%s7 + $0xc8] sm:$0xff]
    %v3776 = vld [vmem:[%s7 + $0xd0] sm:$0xff]
    %v3777 = vld [vmem:[%s7 + $0xd8] sm:$0xff]
    %v3778 = vld [vmem:[%s7 + $0xe0] sm:$0xff]
    %v3779 = vld [vmem:[%s7 + $0xe8] sm:$0xff]
    %v3780 = vld [vmem:[%s7 + $0xf0] sm:$0xff]
    %v3781 = vld [vmem:[%s7 + $0xf8] sm:$0xff]
    %v3782 = vld [vmem:[%s8] sm:$0x3]
    %v3784 = vperm.slane %v3782, 0
    %v3785 = vperm.slane %v3782, 1
    %v3820 = vunpack.c.l.b16 %v3718
    %v3821 = vunpack.c.h.b16 %v3718
    %v3822 = vunpack.c.l.b16 %v3719
    %v3823 = vunpack.c.h.b16 %v3719
    %v3824 = vunpack.c.l.b16 %v3720
    %v3825 = vunpack.c.h.b16 %v3720
    %v3826 = vunpack.c.l.b16 %v3721
    %v3827 = vunpack.c.h.b16 %v3721
    %v3828 = vunpack.c.l.b16 %v3722
    %v3829 = vunpack.c.h.b16 %v3722
    %v3830 = vunpack.c.l.b16 %v3723
    %v3831 = vunpack.c.h.b16 %v3723
    %v3832 = vunpack.c.l.b16 %v3724
    %v3833 = vunpack.c.h.b16 %v3724
    %v3834 = vunpack.c.l.b16 %v3725
    %v3835 = vunpack.c.h.b16 %v3725
    %v3836 = vunpack.c.l.b16 %v3726
    %v3837 = vunpack.c.h.b16 %v3726
    %v3838 = vunpack.c.l.b16 %v3727
    %v3839 = vunpack.c.h.b16 %v3727
    %v3840 = vunpack.c.l.b16 %v3728
    %v3841 = vunpack.c.h.b16 %v3728
    %v3842 = vunpack.c.l.b16 %v3729
    %v3843 = vunpack.c.h.b16 %v3729
    %v3844 = vunpack.c.l.b16 %v3730
    %v3845 = vunpack.c.h.b16 %v3730
    %v3846 = vunpack.c.l.b16 %v3731
    %v3847 = vunpack.c.h.b16 %v3731
    %v3848 = vunpack.c.l.b16 %v3732
    %v3849 = vunpack.c.h.b16 %v3732
    %v3850 = vunpack.c.l.b16 %v3733
    %v3851 = vunpack.c.h.b16 %v3733
    %v3852 = vunpack.c.l.b16 %v3734
    %v3853 = vunpack.c.h.b16 %v3734
    %v3854 = vunpack.c.l.b16 %v3735
    %v3855 = vunpack.c.h.b16 %v3735
    %v3856 = vunpack.c.l.b16 %v3736
    %v3857 = vunpack.c.h.b16 %v3736
    %v3858 = vunpack.c.l.b16 %v3737
    %v3859 = vunpack.c.h.b16 %v3737
    %v3860 = vunpack.c.l.b16 %v3738
    %v3861 = vunpack.c.h.b16 %v3738
    %v3862 = vunpack.c.l.b16 %v3739
    %v3863 = vunpack.c.h.b16 %v3739
    %v3864 = vunpack.c.l.b16 %v3740
    %v3865 = vunpack.c.h.b16 %v3740
    %v3866 = vunpack.c.l.b16 %v3741
    %v3867 = vunpack.c.h.b16 %v3741
    %v3868 = vunpack.c.l.b16 %v3742
    %v3869 = vunpack.c.h.b16 %v3742
    %v3870 = vunpack.c.l.b16 %v3743
    %v3871 = vunpack.c.h.b16 %v3743
    %v3872 = vunpack.c.l.b16 %v3744
    %v3873 = vunpack.c.h.b16 %v3744
    %v3874 = vunpack.c.l.b16 %v3745
    %v3875 = vunpack.c.h.b16 %v3745
    %v3876 = vunpack.c.l.b16 %v3746
    %v3877 = vunpack.c.h.b16 %v3746
    %v3878 = vunpack.c.l.b16 %v3747
    %v3879 = vunpack.c.h.b16 %v3747
    %v3880 = vunpack.c.l.b16 %v3748
    %v3881 = vunpack.c.h.b16 %v3748
    %v3882 = vunpack.c.l.b16 %v3749
    %v3883 = vunpack.c.h.b16 %v3749
    %v3884 = vpack.c.b16 %v3822, %v3820
    %v3885 = vpack.c.b16 %v3823, %v3821
    %v3886 = vpack.c.b16 %v3826, %v3824
    %v3887 = vpack.c.b16 %v3827, %v3825
    %v3888 = vpack.c.b16 %v3830, %v3828
    %v3889 = vpack.c.b16 %v3831, %v3829
    %v3890 = vpack.c.b16 %v3834, %v3832
    %v3891 = vpack.c.b16 %v3835, %v3833
    %v3892 = vpack.c.b16 %v3838, %v3836
    %v3893 = vpack.c.b16 %v3839, %v3837
    %v3894 = vpack.c.b16 %v3842, %v3840
    %v3895 = vpack.c.b16 %v3843, %v3841
    %v3896 = vpack.c.b16 %v3846, %v3844
    %v3897 = vpack.c.b16 %v3847, %v3845
    %v3898 = vpack.c.b16 %v3850, %v3848
    %v3899 = vpack.c.b16 %v3851, %v3849
    %v3900 = vpack.c.b16 %v3854, %v3852
    %v3901 = vpack.c.b16 %v3855, %v3853
    %v3902 = vpack.c.b16 %v3858, %v3856
    %v3903 = vpack.c.b16 %v3859, %v3857
    %v3904 = vpack.c.b16 %v3862, %v3860
    %v3905 = vpack.c.b16 %v3863, %v3861
    %v3906 = vpack.c.b16 %v3866, %v3864
    %v3907 = vpack.c.b16 %v3867, %v3865
    %v3908 = vpack.c.b16 %v3870, %v3868
    %v3909 = vpack.c.b16 %v3871, %v3869
    %v3910 = vpack.c.b16 %v3874, %v3872
    %v3911 = vpack.c.b16 %v3875, %v3873
    %v3912 = vpack.c.b16 %v3878, %v3876
    %v3913 = vpack.c.b16 %v3879, %v3877
    %v3914 = vpack.c.b16 %v3882, %v3880
    %v3915 = vpack.c.b16 %v3883, %v3881
    %v3980 = vunpack.c.l.b16 %v3750
    %v3981 = vunpack.c.h.b16 %v3750
    %v3982 = vunpack.c.l.b16 %v3751
    %v3983 = vunpack.c.h.b16 %v3751
    %v3984 = vunpack.c.l.b16 %v3752
    %v3985 = vunpack.c.h.b16 %v3752
    %v3986 = vunpack.c.l.b16 %v3753
    %v3987 = vunpack.c.h.b16 %v3753
    %v3988 = vunpack.c.l.b16 %v3754
    %v3989 = vunpack.c.h.b16 %v3754
    %v3990 = vunpack.c.l.b16 %v3755
    %v3991 = vunpack.c.h.b16 %v3755
    %v3992 = vunpack.c.l.b16 %v3756
    %v3993 = vunpack.c.h.b16 %v3756
    %v3994 = vunpack.c.l.b16 %v3757
    %v3995 = vunpack.c.h.b16 %v3757
    %v3996 = vunpack.c.l.b16 %v3758
    %v3997 = vunpack.c.h.b16 %v3758
    %v3998 = vunpack.c.l.b16 %v3759
    %v3999 = vunpack.c.h.b16 %v3759
    %v4000 = vunpack.c.l.b16 %v3760
    %v4001 = vunpack.c.h.b16 %v3760
    %v4002 = vunpack.c.l.b16 %v3761
    %v4003 = vunpack.c.h.b16 %v3761
    %v4004 = vunpack.c.l.b16 %v3762
    %v4005 = vunpack.c.h.b16 %v3762
    %v4006 = vunpack.c.l.b16 %v3763
    %v4007 = vunpack.c.h.b16 %v3763
    %v4008 = vunpack.c.l.b16 %v3764
    %v4009 = vunpack.c.h.b16 %v3764
    %v4010 = vunpack.c.l.b16 %v3765
    %v4011 = vunpack.c.h.b16 %v3765
    %v4012 = vunpack.c.l.b16 %v3766
    %v4013 = vunpack.c.h.b16 %v3766
    %v4014 = vunpack.c.l.b16 %v3767
    %v4015 = vunpack.c.h.b16 %v3767
    %v4016 = vunpack.c.l.b16 %v3768
    %v4017 = vunpack.c.h.b16 %v3768
    %v4018 = vunpack.c.l.b16 %v3769
    %v4019 = vunpack.c.h.b16 %v3769
    %v4020 = vunpack.c.l.b16 %v3770
    %v4021 = vunpack.c.h.b16 %v3770
    %v4022 = vunpack.c.l.b16 %v3771
    %v4023 = vunpack.c.h.b16 %v3771
    %v4024 = vunpack.c.l.b16 %v3772
    %v4025 = vunpack.c.h.b16 %v3772
    %v4026 = vunpack.c.l.b16 %v3773
    %v4027 = vunpack.c.h.b16 %v3773
    %v4028 = vunpack.c.l.b16 %v3774
    %v4029 = vunpack.c.h.b16 %v3774
    %v4030 = vunpack.c.l.b16 %v3775
    %v4031 = vunpack.c.h.b16 %v3775
    %v4032 = vunpack.c.l.b16 %v3776
    %v4033 = vunpack.c.h.b16 %v3776
    %v4034 = vunpack.c.l.b16 %v3777
    %v4035 = vunpack.c.h.b16 %v3777
    %v4036 = vunpack.c.l.b16 %v3778
    %v4037 = vunpack.c.h.b16 %v3778
    %v4038 = vunpack.c.l.b16 %v3779
    %v4039 = vunpack.c.h.b16 %v3779
    %v4040 = vunpack.c.l.b16 %v3780
    %v4041 = vunpack.c.h.b16 %v3780
    %v4042 = vunpack.c.l.b16 %v3781
    %v4043 = vunpack.c.h.b16 %v3781
    %v4044 = vpack.c.b16 %v3982, %v3980
    %v4045 = vpack.c.b16 %v3983, %v3981
    %v4046 = vpack.c.b16 %v3986, %v3984
    %v4047 = vpack.c.b16 %v3987, %v3985
    %v4048 = vpack.c.b16 %v3990, %v3988
    %v4049 = vpack.c.b16 %v3991, %v3989
    %v4050 = vpack.c.b16 %v3994, %v3992
    %v4051 = vpack.c.b16 %v3995, %v3993
    %v4052 = vpack.c.b16 %v3998, %v3996
    %v4053 = vpack.c.b16 %v3999, %v3997
    %v4054 = vpack.c.b16 %v4002, %v4000
    %v4055 = vpack.c.b16 %v4003, %v4001
    %v4056 = vpack.c.b16 %v4006, %v4004
    %v4057 = vpack.c.b16 %v4007, %v4005
    %v4058 = vpack.c.b16 %v4010, %v4008
    %v4059 = vpack.c.b16 %v4011, %v4009
    %v4060 = vpack.c.b16 %v4014, %v4012
    %v4061 = vpack.c.b16 %v4015, %v4013
    %v4062 = vpack.c.b16 %v4018, %v4016
    %v4063 = vpack.c.b16 %v4019, %v4017
    %v4064 = vpack.c.b16 %v4022, %v4020
    %v4065 = vpack.c.b16 %v4023, %v4021
    %v4066 = vpack.c.b16 %v4026, %v4024
    %v4067 = vpack.c.b16 %v4027, %v4025
    %v4068 = vpack.c.b16 %v4030, %v4028
    %v4069 = vpack.c.b16 %v4031, %v4029
    %v4070 = vpack.c.b16 %v4034, %v4032
    %v4071 = vpack.c.b16 %v4035, %v4033
    %v4072 = vpack.c.b16 %v4038, %v4036
    %v4073 = vpack.c.b16 %v4039, %v4037
    %v4074 = vpack.c.b16 %v4042, %v4040
    %v4075 = vpack.c.b16 %v4043, %v4041
    %4108 = vmatpush.bf16.msra.mxu0 %v4058
    %4109 = vmatpush.bf16.msra.mxu0 %v4056
    %4110 = vmatpush.bf16.msra.mxu0 %v4054
    %4111 = vmatpush.bf16.msra.mxu0 %v4052
    %4112 = vmatpush.bf16.msra.mxu0 %v4050
    %4113 = vmatpush.bf16.msra.mxu0 %v4048
    %4114 = vmatpush.bf16.msra.mxu0 %v4046
    %4115 = vmatpush.bf16.msra.mxu0 %v4044
    %4116 = vmatmul.bf16.gmra.mxu0 %v3884
    %v4117 = vpop.f32.mrf.mxu0
    %v4118 = vadd.f32 %v3784, %v4117
    %v4119 = vpop.f32.mrf.mxu0
    %v4120 = vadd.f32 %v3784, %v4119
    %4121 = vmatmul.bf16.gmra.mxu0 %v3886
    %v4122 = vpop.f32.mrf.mxu0
    %v4123 = vadd.f32 %v3784, %v4122
    %v4124 = vpop.f32.mrf.mxu0
    %v4125 = vadd.f32 %v3784, %v4124
    %4126 = vmatmul.bf16.gmra.mxu0 %v3888
    %v4127 = vpop.f32.mrf.mxu0
    %v4128 = vadd.f32 %v3784, %v4127
    %v4129 = vpop.f32.mrf.mxu0
    %v4130 = vadd.f32 %v3784, %v4129
    %4131 = vmatmul.bf16.gmra.mxu0 %v3890
    %v4132 = vpop.f32.mrf.mxu0
    %v4133 = vadd.f32 %v3784, %v4132
    %v4134 = vpop.f32.mrf.mxu0
    %v4135 = vadd.f32 %v3784, %v4134
    %4136 = vmatmul.bf16.gmra.mxu0 %v3892
    %v4137 = vpop.f32.mrf.mxu0
    %v4138 = vadd.f32 %v3784, %v4137
    %v4139 = vpop.f32.mrf.mxu0
    %v4140 = vadd.f32 %v3784, %v4139
    %4141 = vmatmul.bf16.gmra.mxu0 %v3894
    %v4142 = vpop.f32.mrf.mxu0
    %v4143 = vadd.f32 %v3784, %v4142
    %v4144 = vpop.f32.mrf.mxu0
    %v4145 = vadd.f32 %v3784, %v4144
    %4146 = vmatmul.bf16.gmra.mxu0 %v3896
    %v4147 = vpop.f32.mrf.mxu0
    %v4148 = vadd.f32 %v3784, %v4147
    %v4149 = vpop.f32.mrf.mxu0
    %v4150 = vadd.f32 %v3784, %v4149
    %4151 = vmatmul.bf16.gmra.mxu0 %v3898
    %v4152 = vpop.f32.mrf.mxu0
    %v4153 = vadd.f32 %v3784, %v4152
    %v4154 = vpop.f32.mrf.mxu0
    %v4155 = vadd.f32 %v3784, %v4154
    %4156 = vmatmul.bf16.gmra.mxu0 %v3900
    %v4157 = vpop.f32.mrf.mxu0
    %v4158 = vadd.f32 %v3784, %v4157
    %v4159 = vpop.f32.mrf.mxu0
    %v4160 = vadd.f32 %v3784, %v4159
    %4161 = vmatmul.bf16.gmra.mxu0 %v3902
    %v4162 = vpop.f32.mrf.mxu0
    %v4163 = vadd.f32 %v3784, %v4162
    %v4164 = vpop.f32.mrf.mxu0
    %v4165 = vadd.f32 %v3784, %v4164
    %4166 = vmatmul.bf16.gmra.mxu0 %v3904
    %v4167 = vpop.f32.mrf.mxu0
    %v4168 = vadd.f32 %v3784, %v4167
    %v4169 = vpop.f32.mrf.mxu0
    %v4170 = vadd.f32 %v3784, %v4169
    %4171 = vmatmul.bf16.gmra.mxu0 %v3906
    %v4172 = vpop.f32.mrf.mxu0
    %v4173 = vadd.f32 %v3784, %v4172
    %v4174 = vpop.f32.mrf.mxu0
    %v4175 = vadd.f32 %v3784, %v4174
    %4176 = vmatmul.bf16.gmra.mxu0 %v3908
    %v4177 = vpop.f32.mrf.mxu0
    %v4178 = vadd.f32 %v3784, %v4177
    %v4179 = vpop.f32.mrf.mxu0
    %v4180 = vadd.f32 %v3784, %v4179
    %4181 = vmatmul.bf16.gmra.mxu0 %v3910
    %v4182 = vpop.f32.mrf.mxu0
    %v4183 = vadd.f32 %v3784, %v4182
    %v4184 = vpop.f32.mrf.mxu0
    %v4185 = vadd.f32 %v3784, %v4184
    %4186 = vmatmul.bf16.gmra.mxu0 %v3912
    %v4187 = vpop.f32.mrf.mxu0
    %v4188 = vadd.f32 %v3784, %v4187
    %v4189 = vpop.f32.mrf.mxu0
    %v4190 = vadd.f32 %v3784, %v4189
    %4191 = vmatmul.bf16.gmra.mxu0 %v3914
    %v4192 = vpop.f32.mrf.mxu0
    %v4193 = vadd.f32 %v3784, %v4192
    %v4194 = vpop.f32.mrf.mxu0
    %v4195 = vadd.f32 %v3784, %v4194
    %4196 = vdwg.mxu0
    %4197 = vmatpush.bf16.msra.mxu0 %v4074
    %4198 = vmatpush.bf16.msra.mxu0 %v4072
    %4199 = vmatpush.bf16.msra.mxu0 %v4070
    %4200 = vmatpush.bf16.msra.mxu0 %v4068
    %4201 = vmatpush.bf16.msra.mxu0 %v4066
    %4202 = vmatpush.bf16.msra.mxu0 %v4064
    %4203 = vmatpush.bf16.msra.mxu0 %v4062
    %4204 = vmatpush.bf16.msra.mxu0 %v4060
    %4205 = vmatmul.bf16.gmra.mxu0 %v3885
    %v4206 = vpop.f32.mrf.mxu0
    %v4207 = vadd.f32 %v4118, %v4206
    %v4208 = vpop.f32.mrf.mxu0
    %v4209 = vadd.f32 %v4120, %v4208
    %4210 = vmatmul.bf16.gmra.mxu0 %v3887
    %v4211 = vpop.f32.mrf.mxu0
    %v4212 = vadd.f32 %v4123, %v4211
    %v4213 = vpop.f32.mrf.mxu0
    %v4214 = vadd.f32 %v4125, %v4213
    %4215 = vmatmul.bf16.gmra.mxu0 %v3889
    %v4216 = vpop.f32.mrf.mxu0
    %v4217 = vadd.f32 %v4128, %v4216
    %v4218 = vpop.f32.mrf.mxu0
    %v4219 = vadd.f32 %v4130, %v4218
    %4220 = vmatmul.bf16.gmra.mxu0 %v3891
    %v4221 = vpop.f32.mrf.mxu0
    %v4222 = vadd.f32 %v4133, %v4221
    %v4223 = vpop.f32.mrf.mxu0
    %v4224 = vadd.f32 %v4135, %v4223
    %4225 = vmatmul.bf16.gmra.mxu0 %v3893
    %v4226 = vpop.f32.mrf.mxu0
    %v4227 = vadd.f32 %v4138, %v4226
    %v4228 = vpop.f32.mrf.mxu0
    %v4229 = vadd.f32 %v4140, %v4228
    %4230 = vmatmul.bf16.gmra.mxu0 %v3895
    %v4231 = vpop.f32.mrf.mxu0
    %v4232 = vadd.f32 %v4143, %v4231
    %v4233 = vpop.f32.mrf.mxu0
    %v4234 = vadd.f32 %v4145, %v4233
    %4235 = vmatmul.bf16.gmra.mxu0 %v3897
    %v4236 = vpop.f32.mrf.mxu0
    %v4237 = vadd.f32 %v4148, %v4236
    %v4238 = vpop.f32.mrf.mxu0
    %v4239 = vadd.f32 %v4150, %v4238
    %4240 = vmatmul.bf16.gmra.mxu0 %v3899
    %v4241 = vpop.f32.mrf.mxu0
    %v4242 = vadd.f32 %v4153, %v4241
    %v4243 = vpop.f32.mrf.mxu0
    %v4244 = vadd.f32 %v4155, %v4243
    %4245 = vmatmul.bf16.gmra.mxu0 %v3901
    %v4246 = vpop.f32.mrf.mxu0
    %v4247 = vadd.f32 %v4158, %v4246
    %v4248 = vpop.f32.mrf.mxu0
    %v4249 = vadd.f32 %v4160, %v4248
    %4250 = vmatmul.bf16.gmra.mxu0 %v3903
    %v4251 = vpop.f32.mrf.mxu0
    %v4252 = vadd.f32 %v4163, %v4251
    %v4253 = vpop.f32.mrf.mxu0
    %v4254 = vadd.f32 %v4165, %v4253
    %4255 = vmatmul.bf16.gmra.mxu0 %v3905
    %v4256 = vpop.f32.mrf.mxu0
    %v4257 = vadd.f32 %v4168, %v4256
    %v4258 = vpop.f32.mrf.mxu0
    %v4259 = vadd.f32 %v4170, %v4258
    %4260 = vmatmul.bf16.gmra.mxu0 %v3907
    %v4261 = vpop.f32.mrf.mxu0
    %v4262 = vadd.f32 %v4173, %v4261
    %v4263 = vpop.f32.mrf.mxu0
    %v4264 = vadd.f32 %v4175, %v4263
    %4265 = vmatmul.bf16.gmra.mxu0 %v3909
    %v4266 = vpop.f32.mrf.mxu0
    %v4267 = vadd.f32 %v4178, %v4266
    %v4268 = vpop.f32.mrf.mxu0
    %v4269 = vadd.f32 %v4180, %v4268
    %4270 = vmatmul.bf16.gmra.mxu0 %v3911
    %v4271 = vpop.f32.mrf.mxu0
    %v4272 = vadd.f32 %v4183, %v4271
    %v4273 = vpop.f32.mrf.mxu0
    %v4274 = vadd.f32 %v4185, %v4273
    %4275 = vmatmul.bf16.gmra.mxu0 %v3913
    %v4276 = vpop.f32.mrf.mxu0
    %v4277 = vadd.f32 %v4188, %v4276
    %v4278 = vpop.f32.mrf.mxu0
    %v4279 = vadd.f32 %v4190, %v4278
    %4280 = vmatmul.bf16.gmra.mxu0 %v3915
    %v4281 = vpop.f32.mrf.mxu0
    %v4282 = vadd.f32 %v4193, %v4281
    %v4283 = vpop.f32.mrf.mxu0
    %v4284 = vadd.f32 %v4195, %v4283
    %4285 = vdwg.mxu0
    %4286 = vmatpush.bf16.msra.mxu0 %v4059
    %4287 = vmatpush.bf16.msra.mxu0 %v4057
    %4288 = vmatpush.bf16.msra.mxu0 %v4055
    %4289 = vmatpush.bf16.msra.mxu0 %v4053
    %4290 = vmatpush.bf16.msra.mxu0 %v4051
    %4291 = vmatpush.bf16.msra.mxu0 %v4049
    %4292 = vmatpush.bf16.msra.mxu0 %v4047
    %4293 = vmatpush.bf16.msra.mxu0 %v4045
    %4294 = vmatmul.bf16.gmra.mxu0 %v3884
    %v4295 = vpop.f32.mrf.mxu0
    %v4296 = vadd.f32 %v3785, %v4295
    %v4297 = vpop.f32.mrf.mxu0
    %v4298 = vadd.f32 %v3785, %v4297
    %4299 = vmatmul.bf16.gmra.mxu0 %v3886
    %v4300 = vpop.f32.mrf.mxu0
    %v4301 = vadd.f32 %v3785, %v4300
    %v4302 = vpop.f32.mrf.mxu0
    %v4303 = vadd.f32 %v3785, %v4302
    %4304 = vmatmul.bf16.gmra.mxu0 %v3888
    %v4305 = vpop.f32.mrf.mxu0
    %v4306 = vadd.f32 %v3785, %v4305
    %v4307 = vpop.f32.mrf.mxu0
    %v4308 = vadd.f32 %v3785, %v4307
    %4309 = vmatmul.bf16.gmra.mxu0 %v3890
    %v4310 = vpop.f32.mrf.mxu0
    %v4311 = vadd.f32 %v3785, %v4310
    %v4312 = vpop.f32.mrf.mxu0
    %v4313 = vadd.f32 %v3785, %v4312
    %4314 = vmatmul.bf16.gmra.mxu0 %v3892
    %v4315 = vpop.f32.mrf.mxu0
    %v4316 = vadd.f32 %v3785, %v4315
    %v4317 = vpop.f32.mrf.mxu0
    %v4318 = vadd.f32 %v3785, %v4317
    %4319 = vmatmul.bf16.gmra.mxu0 %v3894
    %v4320 = vpop.f32.mrf.mxu0
    %v4321 = vadd.f32 %v3785, %v4320
    %v4322 = vpop.f32.mrf.mxu0
    %v4323 = vadd.f32 %v3785, %v4322
    %4324 = vmatmul.bf16.gmra.mxu0 %v3896
    %v4325 = vpop.f32.mrf.mxu0
    %v4326 = vadd.f32 %v3785, %v4325
    %v4327 = vpop.f32.mrf.mxu0
    %v4328 = vadd.f32 %v3785, %v4327
    %4329 = vmatmul.bf16.gmra.mxu0 %v3898
    %v4330 = vpop.f32.mrf.mxu0
    %v4331 = vadd.f32 %v3785, %v4330
    %v4332 = vpop.f32.mrf.mxu0
    %v4333 = vadd.f32 %v3785, %v4332
    %4334 = vmatmul.bf16.gmra.mxu0 %v3900
    %v4335 = vpop.f32.mrf.mxu0
    %v4336 = vadd.f32 %v3785, %v4335
    %v4337 = vpop.f32.mrf.mxu0
    %v4338 = vadd.f32 %v3785, %v4337
    %4339 = vmatmul.bf16.gmra.mxu0 %v3902
    %v4340 = vpop.f32.mrf.mxu0
    %v4341 = vadd.f32 %v3785, %v4340
    %v4342 = vpop.f32.mrf.mxu0
    %v4343 = vadd.f32 %v3785, %v4342
    %4344 = vmatmul.bf16.gmra.mxu0 %v3904
    %v4345 = vpop.f32.mrf.mxu0
    %v4346 = vadd.f32 %v3785, %v4345
    %v4347 = vpop.f32.mrf.mxu0
    %v4348 = vadd.f32 %v3785, %v4347
    %4349 = vmatmul.bf16.gmra.mxu0 %v3906
    %v4350 = vpop.f32.mrf.mxu0
    %v4351 = vadd.f32 %v3785, %v4350
    %v4352 = vpop.f32.mrf.mxu0
    %v4353 = vadd.f32 %v3785, %v4352
    %4354 = vmatmul.bf16.gmra.mxu0 %v3908
    %v4355 = vpop.f32.mrf.mxu0
    %v4356 = vadd.f32 %v3785, %v4355
    %v4357 = vpop.f32.mrf.mxu0
    %v4358 = vadd.f32 %v3785, %v4357
    %4359 = vmatmul.bf16.gmra.mxu0 %v3910
    %v4360 = vpop.f32.mrf.mxu0
    %v4361 = vadd.f32 %v3785, %v4360
    %v4362 = vpop.f32.mrf.mxu0
    %v4363 = vadd.f32 %v3785, %v4362
    %4364 = vmatmul.bf16.gmra.mxu0 %v3912
    %v4365 = vpop.f32.mrf.mxu0
    %v4366 = vadd.f32 %v3785, %v4365
    %v4367 = vpop.f32.mrf.mxu0
    %v4368 = vadd.f32 %v3785, %v4367
    %4369 = vmatmul.bf16.gmra.mxu0 %v3914
    %v4370 = vpop.f32.mrf.mxu0
    %v4371 = vadd.f32 %v3785, %v4370
    %v4372 = vpop.f32.mrf.mxu0
    %v4373 = vadd.f32 %v3785, %v4372
    %4374 = vdwg.mxu0
    %4375 = vmatpush.bf16.msra.mxu0 %v4075
    %4376 = vmatpush.bf16.msra.mxu0 %v4073
    %4377 = vmatpush.bf16.msra.mxu0 %v4071
    %4378 = vmatpush.bf16.msra.mxu0 %v4069
    %4379 = vmatpush.bf16.msra.mxu0 %v4067
    %4380 = vmatpush.bf16.msra.mxu0 %v4065
    %4381 = vmatpush.bf16.msra.mxu0 %v4063
    %4382 = vmatpush.bf16.msra.mxu0 %v4061
    %4383 = vmatmul.bf16.gmra.mxu0 %v3885
    %v4384 = vpop.f32.mrf.mxu0
    %v4385 = vadd.f32 %v4296, %v4384
    %v4386 = vpop.f32.mrf.mxu0
    %v4387 = vadd.f32 %v4298, %v4386
    %4388 = vmatmul.bf16.gmra.mxu0 %v3887
    %v4389 = vpop.f32.mrf.mxu0
    %v4390 = vadd.f32 %v4301, %v4389
    %v4391 = vpop.f32.mrf.mxu0
    %v4392 = vadd.f32 %v4303, %v4391
    %4393 = vmatmul.bf16.gmra.mxu0 %v3889
    %v4394 = vpop.f32.mrf.mxu0
    %v4395 = vadd.f32 %v4306, %v4394
    %v4396 = vpop.f32.mrf.mxu0
    %v4397 = vadd.f32 %v4308, %v4396
    %4398 = vmatmul.bf16.gmra.mxu0 %v3891
    %v4399 = vpop.f32.mrf.mxu0
    %v4400 = vadd.f32 %v4311, %v4399
    %v4401 = vpop.f32.mrf.mxu0
    %v4402 = vadd.f32 %v4313, %v4401
    %4403 = vmatmul.bf16.gmra.mxu0 %v3893
    %v4404 = vpop.f32.mrf.mxu0
    %v4405 = vadd.f32 %v4316, %v4404
    %v4406 = vpop.f32.mrf.mxu0
    %v4407 = vadd.f32 %v4318, %v4406
    %4408 = vmatmul.bf16.gmra.mxu0 %v3895
    %v4409 = vpop.f32.mrf.mxu0
    %v4410 = vadd.f32 %v4321, %v4409
    %v4411 = vpop.f32.mrf.mxu0
    %v4412 = vadd.f32 %v4323, %v4411
    %4413 = vmatmul.bf16.gmra.mxu0 %v3897
    %v4414 = vpop.f32.mrf.mxu0
    %v4415 = vadd.f32 %v4326, %v4414
    %v4416 = vpop.f32.mrf.mxu0
    %v4417 = vadd.f32 %v4328, %v4416
    %4418 = vmatmul.bf16.gmra.mxu0 %v3899
    %v4419 = vpop.f32.mrf.mxu0
    %v4420 = vadd.f32 %v4331, %v4419
    %v4421 = vpop.f32.mrf.mxu0
    %v4422 = vadd.f32 %v4333, %v4421
    %4423 = vmatmul.bf16.gmra.mxu0 %v3901
    %v4424 = vpop.f32.mrf.mxu0
    %v4425 = vadd.f32 %v4336, %v4424
    %v4426 = vpop.f32.mrf.mxu0
    %v4427 = vadd.f32 %v4338, %v4426
    %4428 = vmatmul.bf16.gmra.mxu0 %v3903
    %v4429 = vpop.f32.mrf.mxu0
    %v4430 = vadd.f32 %v4341, %v4429
    %v4431 = vpop.f32.mrf.mxu0
    %v4432 = vadd.f32 %v4343, %v4431
    %4433 = vmatmul.bf16.gmra.mxu0 %v3905
    %v4434 = vpop.f32.mrf.mxu0
    %v4435 = vadd.f32 %v4346, %v4434
    %v4436 = vpop.f32.mrf.mxu0
    %v4437 = vadd.f32 %v4348, %v4436
    %4438 = vmatmul.bf16.gmra.mxu0 %v3907
    %v4439 = vpop.f32.mrf.mxu0
    %v4440 = vadd.f32 %v4351, %v4439
    %v4441 = vpop.f32.mrf.mxu0
    %v4442 = vadd.f32 %v4353, %v4441
    %4443 = vmatmul.bf16.gmra.mxu0 %v3909
    %v4444 = vpop.f32.mrf.mxu0
    %v4445 = vadd.f32 %v4356, %v4444
    %v4446 = vpop.f32.mrf.mxu0
    %v4447 = vadd.f32 %v4358, %v4446
    %4448 = vmatmul.bf16.gmra.mxu0 %v3911
    %v4449 = vpop.f32.mrf.mxu0
    %v4450 = vadd.f32 %v4361, %v4449
    %v4451 = vpop.f32.mrf.mxu0
    %v4452 = vadd.f32 %v4363, %v4451
    %4453 = vmatmul.bf16.gmra.mxu0 %v3913
    %v4454 = vpop.f32.mrf.mxu0
    %v4455 = vadd.f32 %v4366, %v4454
    %v4456 = vpop.f32.mrf.mxu0
    %v4457 = vadd.f32 %v4368, %v4456
    %4458 = vmatmul.bf16.gmra.mxu0 %v3915
    %v4459 = vpop.f32.mrf.mxu0
    %v4460 = vadd.f32 %v4371, %v4459
    %v4461 = vpop.f32.mrf.mxu0
    %v4462 = vadd.f32 %v4373, %v4461
    %4463 = vdwg.mxu0
    %v4464 = vpack.c.bf16 %v4385, %v4207
    %v4465 = vpack.c.bf16 %v4387, %v4209
    %v4466 = vpack.c.bf16 %v4390, %v4212
    %v4467 = vpack.c.bf16 %v4392, %v4214
    %v4468 = vpack.c.bf16 %v4395, %v4217
    %v4469 = vpack.c.bf16 %v4397, %v4219
    %v4470 = vpack.c.bf16 %v4400, %v4222
    %v4471 = vpack.c.bf16 %v4402, %v4224
    %v4472 = vpack.c.bf16 %v4405, %v4227
    %v4473 = vpack.c.bf16 %v4407, %v4229
    %v4474 = vpack.c.bf16 %v4410, %v4232
    %v4475 = vpack.c.bf16 %v4412, %v4234
    %v4476 = vpack.c.bf16 %v4415, %v4237
    %v4477 = vpack.c.bf16 %v4417, %v4239
    %v4478 = vpack.c.bf16 %v4420, %v4242
    %v4479 = vpack.c.bf16 %v4422, %v4244
    %v4480 = vpack.c.bf16 %v4425, %v4247
    %v4481 = vpack.c.bf16 %v4427, %v4249
    %v4482 = vpack.c.bf16 %v4430, %v4252
    %v4483 = vpack.c.bf16 %v4432, %v4254
    %v4484 = vpack.c.bf16 %v4435, %v4257
    %v4485 = vpack.c.bf16 %v4437, %v4259
    %v4486 = vpack.c.bf16 %v4440, %v4262
    %v4487 = vpack.c.bf16 %v4442, %v4264
    %v4488 = vpack.c.bf16 %v4445, %v4267
    %v4489 = vpack.c.bf16 %v4447, %v4269
    %v4490 = vpack.c.bf16 %v4450, %v4272
    %v4491 = vpack.c.bf16 %v4452, %v4274
    %v4492 = vpack.c.bf16 %v4455, %v4277
    %v4493 = vpack.c.bf16 %v4457, %v4279
    %v4494 = vpack.c.bf16 %v4460, %v4282
    %v4495 = vpack.c.bf16 %v4462, %v4284
    %v4496 = vunpack.c.l.bf16 %v4464
    %v4497 = vunpack.c.h.bf16 %v4464
    %v4498 = vunpack.c.l.bf16 %v4465
    %v4499 = vunpack.c.h.bf16 %v4465
    %v4500 = vunpack.c.l.bf16 %v4466
    %v4501 = vunpack.c.h.bf16 %v4466
    %v4502 = vunpack.c.l.bf16 %v4467
    %v4503 = vunpack.c.h.bf16 %v4467
    %v4504 = vunpack.c.l.bf16 %v4468
    %v4505 = vunpack.c.h.bf16 %v4468
    %v4506 = vunpack.c.l.bf16 %v4469
    %v4507 = vunpack.c.h.bf16 %v4469
    %v4508 = vunpack.c.l.bf16 %v4470
    %v4509 = vunpack.c.h.bf16 %v4470
    %v4510 = vunpack.c.l.bf16 %v4471
    %v4511 = vunpack.c.h.bf16 %v4471
    %v4512 = vunpack.c.l.bf16 %v4472
    %v4513 = vunpack.c.h.bf16 %v4472
    %v4514 = vunpack.c.l.bf16 %v4473
    %v4515 = vunpack.c.h.bf16 %v4473
    %v4516 = vunpack.c.l.bf16 %v4474
    %v4517 = vunpack.c.h.bf16 %v4474
    %v4518 = vunpack.c.l.bf16 %v4475
    %v4519 = vunpack.c.h.bf16 %v4475
    %v4520 = vunpack.c.l.bf16 %v4476
    %v4521 = vunpack.c.h.bf16 %v4476
    %v4522 = vunpack.c.l.bf16 %v4477
    %v4523 = vunpack.c.h.bf16 %v4477
    %v4524 = vunpack.c.l.bf16 %v4478
    %v4525 = vunpack.c.h.bf16 %v4478
    %v4526 = vunpack.c.l.bf16 %v4479
    %v4527 = vunpack.c.h.bf16 %v4479
    %v4528 = vunpack.c.l.bf16 %v4480
    %v4529 = vunpack.c.h.bf16 %v4480
    %v4530 = vunpack.c.l.bf16 %v4481
    %v4531 = vunpack.c.h.bf16 %v4481
    %v4532 = vunpack.c.l.bf16 %v4482
    %v4533 = vunpack.c.h.bf16 %v4482
    %v4534 = vunpack.c.l.bf16 %v4483
    %v4535 = vunpack.c.h.bf16 %v4483
    %v4536 = vunpack.c.l.bf16 %v4484
    %v4537 = vunpack.c.h.bf16 %v4484
    %v4538 = vunpack.c.l.bf16 %v4485
    %v4539 = vunpack.c.h.bf16 %v4485
    %v4540 = vunpack.c.l.bf16 %v4486
    %v4541 = vunpack.c.h.bf16 %v4486
    %v4542 = vunpack.c.l.bf16 %v4487
    %v4543 = vunpack.c.h.bf16 %v4487
    %v4544 = vunpack.c.l.bf16 %v4488
    %v4545 = vunpack.c.h.bf16 %v4488
    %v4546 = vunpack.c.l.bf16 %v4489
    %v4547 = vunpack.c.h.bf16 %v4489
    %v4548 = vunpack.c.l.bf16 %v4490
    %v4549 = vunpack.c.h.bf16 %v4490
    %v4550 = vunpack.c.l.bf16 %v4491
    %v4551 = vunpack.c.h.bf16 %v4491
    %v4552 = vunpack.c.l.bf16 %v4492
    %v4553 = vunpack.c.h.bf16 %v4492
    %v4554 = vunpack.c.l.bf16 %v4493
    %v4555 = vunpack.c.h.bf16 %v4493
    %v4556 = vunpack.c.l.bf16 %v4494
    %v4557 = vunpack.c.h.bf16 %v4494
    %v4558 = vunpack.c.l.bf16 %v4495
    %v4559 = vunpack.c.h.bf16 %v4495
    %vm4560 = vcmp.gt.f32.partialorder %v4496, 0.0
    %vm4561 = vcmp.gt.f32.partialorder %v4497, 0.0
    %vm4562 = vcmp.gt.f32.partialorder %v4498, 0.0
    %vm4563 = vcmp.gt.f32.partialorder %v4499, 0.0
    %vm4564 = vcmp.gt.f32.partialorder %v4500, 0.0
    %vm4565 = vcmp.gt.f32.partialorder %v4501, 0.0
    %vm4566 = vcmp.gt.f32.partialorder %v4502, 0.0
    %vm4567 = vcmp.gt.f32.partialorder %v4503, 0.0
    %vm4568 = vcmp.gt.f32.partialorder %v4504, 0.0
    %vm4569 = vcmp.gt.f32.partialorder %v4505, 0.0
    %vm4570 = vcmp.gt.f32.partialorder %v4506, 0.0
    %vm4571 = vcmp.gt.f32.partialorder %v4507, 0.0
    %vm4572 = vcmp.gt.f32.partialorder %v4508, 0.0
    %vm4573 = vcmp.gt.f32.partialorder %v4509, 0.0
    %vm4574 = vcmp.gt.f32.partialorder %v4510, 0.0
    %vm4575 = vcmp.gt.f32.partialorder %v4511, 0.0
    %vm4576 = vcmp.gt.f32.partialorder %v4512, 0.0
    %vm4577 = vcmp.gt.f32.partialorder %v4513, 0.0
    %vm4578 = vcmp.gt.f32.partialorder %v4514, 0.0
    %vm4579 = vcmp.gt.f32.partialorder %v4515, 0.0
    %vm4580 = vcmp.gt.f32.partialorder %v4516, 0.0
    %vm4581 = vcmp.gt.f32.partialorder %v4517, 0.0
    %vm4582 = vcmp.gt.f32.partialorder %v4518, 0.0
    %vm4583 = vcmp.gt.f32.partialorder %v4519, 0.0
    %vm4584 = vcmp.gt.f32.partialorder %v4520, 0.0
    %vm4585 = vcmp.gt.f32.partialorder %v4521, 0.0
    %vm4586 = vcmp.gt.f32.partialorder %v4522, 0.0
    %vm4587 = vcmp.gt.f32.partialorder %v4523, 0.0
    %vm4588 = vcmp.gt.f32.partialorder %v4524, 0.0
    %vm4589 = vcmp.gt.f32.partialorder %v4525, 0.0
    %vm4590 = vcmp.gt.f32.partialorder %v4526, 0.0
    %vm4591 = vcmp.gt.f32.partialorder %v4527, 0.0
    %vm4592 = vcmp.gt.f32.partialorder %v4528, 0.0
    %vm4593 = vcmp.gt.f32.partialorder %v4529, 0.0
    %vm4594 = vcmp.gt.f32.partialorder %v4530, 0.0
    %vm4595 = vcmp.gt.f32.partialorder %v4531, 0.0
    %vm4596 = vcmp.gt.f32.partialorder %v4532, 0.0
    %vm4597 = vcmp.gt.f32.partialorder %v4533, 0.0
    %vm4598 = vcmp.gt.f32.partialorder %v4534, 0.0
    %vm4599 = vcmp.gt.f32.partialorder %v4535, 0.0
    %vm4600 = vcmp.gt.f32.partialorder %v4536, 0.0
    %vm4601 = vcmp.gt.f32.partialorder %v4537, 0.0
    %vm4602 = vcmp.gt.f32.partialorder %v4538, 0.0
    %vm4603 = vcmp.gt.f32.partialorder %v4539, 0.0
    %vm4604 = vcmp.gt.f32.partialorder %v4540, 0.0
    %vm4605 = vcmp.gt.f32.partialorder %v4541, 0.0
    %vm4606 = vcmp.gt.f32.partialorder %v4542, 0.0
    %vm4607 = vcmp.gt.f32.partialorder %v4543, 0.0
    %vm4608 = vcmp.gt.f32.partialorder %v4544, 0.0
    %vm4609 = vcmp.gt.f32.partialorder %v4545, 0.0
    %vm4610 = vcmp.gt.f32.partialorder %v4546, 0.0
    %vm4611 = vcmp.gt.f32.partialorder %v4547, 0.0
    %vm4612 = vcmp.gt.f32.partialorder %v4548, 0.0
    %vm4613 = vcmp.gt.f32.partialorder %v4549, 0.0
    %vm4614 = vcmp.gt.f32.partialorder %v4550, 0.0
    %vm4615 = vcmp.gt.f32.partialorder %v4551, 0.0
    %vm4616 = vcmp.gt.f32.partialorder %v4552, 0.0
    %vm4617 = vcmp.gt.f32.partialorder %v4553, 0.0
    %vm4618 = vcmp.gt.f32.partialorder %v4554, 0.0
    %vm4619 = vcmp.gt.f32.partialorder %v4555, 0.0
    %vm4620 = vcmp.gt.f32.partialorder %v4556, 0.0
    %vm4621 = vcmp.gt.f32.partialorder %v4557, 0.0
    %vm4622 = vcmp.gt.f32.partialorder %v4558, 0.0
    %vm4623 = vcmp.gt.f32.partialorder %v4559, 0.0
    %v4624 = vmul.f32 %v4496, 1.442695
    %v4625 = vpow.pop %v4624
    %v4626 = vmul.f32 %v4497, 1.442695
    %v4627 = vpow.pop %v4626
    %v4628 = vmul.f32 %v4498, 1.442695
    %v4629 = vpow.pop %v4628
    %v4630 = vmul.f32 %v4499, 1.442695
    %v4631 = vpow.pop %v4630
    %v4632 = vmul.f32 %v4500, 1.442695
    %v4633 = vpow.pop %v4632
    %v4634 = vmul.f32 %v4501, 1.442695
    %v4635 = vpow.pop %v4634
    %v4636 = vmul.f32 %v4502, 1.442695
    %v4637 = vpow.pop %v4636
    %v4638 = vmul.f32 %v4503, 1.442695
    %v4639 = vpow.pop %v4638
    %v4640 = vmul.f32 %v4504, 1.442695
    %v4641 = vpow.pop %v4640
    %v4642 = vmul.f32 %v4505, 1.442695
    %v4643 = vpow.pop %v4642
    %v4644 = vmul.f32 %v4506, 1.442695
    %v4645 = vpow.pop %v4644
    %v4646 = vmul.f32 %v4507, 1.442695
    %v4647 = vpow.pop %v4646
    %v4648 = vmul.f32 %v4508, 1.442695
    %v4649 = vpow.pop %v4648
    %v4650 = vmul.f32 %v4509, 1.442695
    %v4651 = vpow.pop %v4650
    %v4652 = vmul.f32 %v4510, 1.442695
    %v4653 = vpow.pop %v4652
    %v4654 = vmul.f32 %v4511, 1.442695
    %v4655 = vpow.pop %v4654
    %v4656 = vmul.f32 %v4512, 1.442695
    %v4657 = vpow.pop %v4656
    %v4658 = vmul.f32 %v4513, 1.442695
    %v4659 = vpow.pop %v4658
    %v4660 = vmul.f32 %v4514, 1.442695
    %v4661 = vpow.pop %v4660
    %v4662 = vmul.f32 %v4515, 1.442695
    %v4663 = vpow.pop %v4662
    %v4664 = vmul.f32 %v4516, 1.442695
    %v4665 = vpow.pop %v4664
    %v4666 = vmul.f32 %v4517, 1.442695
    %v4667 = vpow.pop %v4666
    %v4668 = vmul.f32 %v4518, 1.442695
    %v4669 = vpow.pop %v4668
    %v4670 = vmul.f32 %v4519, 1.442695
    %v4671 = vpow.pop %v4670
    %v4672 = vmul.f32 %v4520, 1.442695
    %v4673 = vpow.pop %v4672
    %v4674 = vmul.f32 %v4521, 1.442695
    %v4675 = vpow.pop %v4674
    %v4676 = vmul.f32 %v4522, 1.442695
    %v4677 = vpow.pop %v4676
    %v4678 = vmul.f32 %v4523, 1.442695
    %v4679 = vpow.pop %v4678
    %v4680 = vmul.f32 %v4524, 1.442695
    %v4681 = vpow.pop %v4680
    %v4682 = vmul.f32 %v4525, 1.442695
    %v4683 = vpow.pop %v4682
    %v4684 = vmul.f32 %v4526, 1.442695
    %v4685 = vpow.pop %v4684
    %v4686 = vmul.f32 %v4527, 1.442695
    %v4687 = vpow.pop %v4686
    %v4688 = vmul.f32 %v4528, 1.442695
    %v4689 = vpow.pop %v4688
    %v4690 = vmul.f32 %v4529, 1.442695
    %v4691 = vpow.pop %v4690
    %v4692 = vmul.f32 %v4530, 1.442695
    %v4693 = vpow.pop %v4692
    %v4694 = vmul.f32 %v4531, 1.442695
    %v4695 = vpow.pop %v4694
    %v4696 = vmul.f32 %v4532, 1.442695
    %v4697 = vpow.pop %v4696
    %v4698 = vmul.f32 %v4533, 1.442695
    %v4699 = vpow.pop %v4698
    %v4700 = vmul.f32 %v4534, 1.442695
    %v4701 = vpow.pop %v4700
    %v4702 = vmul.f32 %v4535, 1.442695
    %v4703 = vpow.pop %v4702
    %v4704 = vmul.f32 %v4536, 1.442695
    %v4705 = vpow.pop %v4704
    %v4706 = vmul.f32 %v4537, 1.442695
    %v4707 = vpow.pop %v4706
    %v4708 = vmul.f32 %v4538, 1.442695
    %v4709 = vpow.pop %v4708
    %v4710 = vmul.f32 %v4539, 1.442695
    %v4711 = vpow.pop %v4710
    %v4712 = vmul.f32 %v4540, 1.442695
    %v4713 = vpow.pop %v4712
    %v4714 = vmul.f32 %v4541, 1.442695
    %v4715 = vpow.pop %v4714
    %v4716 = vmul.f32 %v4542, 1.442695
    %v4717 = vpow.pop %v4716
    %v4718 = vmul.f32 %v4543, 1.442695
    %v4719 = vpow.pop %v4718
    %v4720 = vmul.f32 %v4544, 1.442695
    %v4721 = vpow.pop %v4720
    %v4722 = vmul.f32 %v4545, 1.442695
    %v4723 = vpow.pop %v4722
    %v4724 = vmul.f32 %v4546, 1.442695
    %v4725 = vpow.pop %v4724
    %v4726 = vmul.f32 %v4547, 1.442695
    %v4727 = vpow.pop %v4726
    %v4728 = vmul.f32 %v4548, 1.442695
    %v4729 = vpow.pop %v4728
    %v4730 = vmul.f32 %v4549, 1.442695
    %v4731 = vpow.pop %v4730
    %v4732 = vmul.f32 %v4550, 1.442695
    %v4733 = vpow.pop %v4732
    %v4734 = vmul.f32 %v4551, 1.442695
    %v4735 = vpow.pop %v4734
    %v4736 = vmul.f32 %v4552, 1.442695
    %v4737 = vpow.pop %v4736
    %v4738 = vmul.f32 %v4553, 1.442695
    %v4739 = vpow.pop %v4738
    %v4740 = vmul.f32 %v4554, 1.442695
    %v4741 = vpow.pop %v4740
    %v4742 = vmul.f32 %v4555, 1.442695
    %v4743 = vpow.pop %v4742
    %v4744 = vmul.f32 %v4556, 1.442695
    %v4745 = vpow.pop %v4744
    %v4746 = vmul.f32 %v4557, 1.442695
    %v4747 = vpow.pop %v4746
    %v4748 = vmul.f32 %v4558, 1.442695
    %v4749 = vpow.pop %v4748
    %v4750 = vmul.f32 %v4559, 1.442695
    %v4751 = vpow.pop %v4750
    %v4752 = vpack.c.bf16 %v4627, %v4625
    %v4753 = vpack.c.bf16 %v4631, %v4629
    %v4754 = vpack.c.bf16 %v4635, %v4633
    %v4755 = vpack.c.bf16 %v4639, %v4637
    %v4756 = vpack.c.bf16 %v4643, %v4641
    %v4757 = vpack.c.bf16 %v4647, %v4645
    %v4758 = vpack.c.bf16 %v4651, %v4649
    %v4759 = vpack.c.bf16 %v4655, %v4653
    %v4760 = vpack.c.bf16 %v4659, %v4657
    %v4761 = vpack.c.bf16 %v4663, %v4661
    %v4762 = vpack.c.bf16 %v4667, %v4665
    %v4763 = vpack.c.bf16 %v4671, %v4669
    %v4764 = vpack.c.bf16 %v4675, %v4673
    %v4765 = vpack.c.bf16 %v4679, %v4677
    %v4766 = vpack.c.bf16 %v4683, %v4681
    %v4767 = vpack.c.bf16 %v4687, %v4685
    %v4768 = vpack.c.bf16 %v4691, %v4689
    %v4769 = vpack.c.bf16 %v4695, %v4693
    %v4770 = vpack.c.bf16 %v4699, %v4697
    %v4771 = vpack.c.bf16 %v4703, %v4701
    %v4772 = vpack.c.bf16 %v4707, %v4705
    %v4773 = vpack.c.bf16 %v4711, %v4709
    %v4774 = vpack.c.bf16 %v4715, %v4713
    %v4775 = vpack.c.bf16 %v4719, %v4717
    %v4776 = vpack.c.bf16 %v4723, %v4721
    %v4777 = vpack.c.bf16 %v4727, %v4725
    %v4778 = vpack.c.bf16 %v4731, %v4729
    %v4779 = vpack.c.bf16 %v4735, %v4733
    %v4780 = vpack.c.bf16 %v4739, %v4737
    %v4781 = vpack.c.bf16 %v4743, %v4741
    %v4782 = vpack.c.bf16 %v4747, %v4745
    %v4783 = vpack.c.bf16 %v4751, %v4749
    %v4784 = vunpack.c.l.bf16 %v4752
    %v4785 = vunpack.c.h.bf16 %v4752
    %v4786 = vunpack.c.l.bf16 %v4753
    %v4787 = vunpack.c.h.bf16 %v4753
    %v4788 = vunpack.c.l.bf16 %v4754
    %v4789 = vunpack.c.h.bf16 %v4754
    %v4790 = vunpack.c.l.bf16 %v4755
    %v4791 = vunpack.c.h.bf16 %v4755
    %v4792 = vunpack.c.l.bf16 %v4756
    %v4793 = vunpack.c.h.bf16 %v4756
    %v4794 = vunpack.c.l.bf16 %v4757
    %v4795 = vunpack.c.h.bf16 %v4757
    %v4796 = vunpack.c.l.bf16 %v4758
    %v4797 = vunpack.c.h.bf16 %v4758
    %v4798 = vunpack.c.l.bf16 %v4759
    %v4799 = vunpack.c.h.bf16 %v4759
    %v4800 = vunpack.c.l.bf16 %v4760
    %v4801 = vunpack.c.h.bf16 %v4760
    %v4802 = vunpack.c.l.bf16 %v4761
    %v4803 = vunpack.c.h.bf16 %v4761
    %v4804 = vunpack.c.l.bf16 %v4762
    %v4805 = vunpack.c.h.bf16 %v4762
    %v4806 = vunpack.c.l.bf16 %v4763
    %v4807 = vunpack.c.h.bf16 %v4763
    %v4808 = vunpack.c.l.bf16 %v4764
    %v4809 = vunpack.c.h.bf16 %v4764
    %v4810 = vunpack.c.l.bf16 %v4765
    %v4811 = vunpack.c.h.bf16 %v4765
    %v4812 = vunpack.c.l.bf16 %v4766
    %v4813 = vunpack.c.h.bf16 %v4766
    %v4814 = vunpack.c.l.bf16 %v4767
    %v4815 = vunpack.c.h.bf16 %v4767
    %v4816 = vunpack.c.l.bf16 %v4768
    %v4817 = vunpack.c.h.bf16 %v4768
    %v4818 = vunpack.c.l.bf16 %v4769
    %v4819 = vunpack.c.h.bf16 %v4769
    %v4820 = vunpack.c.l.bf16 %v4770
    %v4821 = vunpack.c.h.bf16 %v4770
    %v4822 = vunpack.c.l.bf16 %v4771
    %v4823 = vunpack.c.h.bf16 %v4771
    %v4824 = vunpack.c.l.bf16 %v4772
    %v4825 = vunpack.c.h.bf16 %v4772
    %v4826 = vunpack.c.l.bf16 %v4773
    %v4827 = vunpack.c.h.bf16 %v4773
    %v4828 = vunpack.c.l.bf16 %v4774
    %v4829 = vunpack.c.h.bf16 %v4774
    %v4830 = vunpack.c.l.bf16 %v4775
    %v4831 = vunpack.c.h.bf16 %v4775
    %v4832 = vunpack.c.l.bf16 %v4776
    %v4833 = vunpack.c.h.bf16 %v4776
    %v4834 = vunpack.c.l.bf16 %v4777
    %v4835 = vunpack.c.h.bf16 %v4777
    %v4836 = vunpack.c.l.bf16 %v4778
    %v4837 = vunpack.c.h.bf16 %v4778
    %v4838 = vunpack.c.l.bf16 %v4779
    %v4839 = vunpack.c.h.bf16 %v4779
    %v4840 = vunpack.c.l.bf16 %v4780
    %v4841 = vunpack.c.h.bf16 %v4780
    %v4842 = vunpack.c.l.bf16 %v4781
    %v4843 = vunpack.c.h.bf16 %v4781
    %v4844 = vunpack.c.l.bf16 %v4782
    %v4845 = vunpack.c.h.bf16 %v4782
    %v4846 = vunpack.c.l.bf16 %v4783
    %v4847 = vunpack.c.h.bf16 %v4783
    %v4848 = vsub.f32 %v4784, 1.0
    %v4849 = vsub.f32 %v4785, 1.0
    %v4850 = vsub.f32 %v4786, 1.0
    %v4851 = vsub.f32 %v4787, 1.0
    %v4852 = vsub.f32 %v4788, 1.0
    %v4853 = vsub.f32 %v4789, 1.0
    %v4854 = vsub.f32 %v4790, 1.0
    %v4855 = vsub.f32 %v4791, 1.0
    %v4856 = vsub.f32 %v4792, 1.0
    %v4857 = vsub.f32 %v4793, 1.0
    %v4858 = vsub.f32 %v4794, 1.0
    %v4859 = vsub.f32 %v4795, 1.0
    %v4860 = vsub.f32 %v4796, 1.0
    %v4861 = vsub.f32 %v4797, 1.0
    %v4862 = vsub.f32 %v4798, 1.0
    %v4863 = vsub.f32 %v4799, 1.0
    %v4864 = vsub.f32 %v4800, 1.0
    %v4865 = vsub.f32 %v4801, 1.0
    %v4866 = vsub.f32 %v4802, 1.0
    %v4867 = vsub.f32 %v4803, 1.0
    %v4868 = vsub.f32 %v4804, 1.0
    %v4869 = vsub.f32 %v4805, 1.0
    %v4870 = vsub.f32 %v4806, 1.0
    %v4871 = vsub.f32 %v4807, 1.0
    %v4872 = vsub.f32 %v4808, 1.0
    %v4873 = vsub.f32 %v4809, 1.0
    %v4874 = vsub.f32 %v4810, 1.0
    %v4875 = vsub.f32 %v4811, 1.0
    %v4876 = vsub.f32 %v4812, 1.0
    %v4877 = vsub.f32 %v4813, 1.0
    %v4878 = vsub.f32 %v4814, 1.0
    %v4879 = vsub.f32 %v4815, 1.0
    %v4880 = vsub.f32 %v4816, 1.0
    %v4881 = vsub.f32 %v4817, 1.0
    %v4882 = vsub.f32 %v4818, 1.0
    %v4883 = vsub.f32 %v4819, 1.0
    %v4884 = vsub.f32 %v4820, 1.0
    %v4885 = vsub.f32 %v4821, 1.0
    %v4886 = vsub.f32 %v4822, 1.0
    %v4887 = vsub.f32 %v4823, 1.0
    %v4888 = vsub.f32 %v4824, 1.0
    %v4889 = vsub.f32 %v4825, 1.0
    %v4890 = vsub.f32 %v4826, 1.0
    %v4891 = vsub.f32 %v4827, 1.0
    %v4892 = vsub.f32 %v4828, 1.0
    %v4893 = vsub.f32 %v4829, 1.0
    %v4894 = vsub.f32 %v4830, 1.0
    %v4895 = vsub.f32 %v4831, 1.0
    %v4896 = vsub.f32 %v4832, 1.0
    %v4897 = vsub.f32 %v4833, 1.0
    %v4898 = vsub.f32 %v4834, 1.0
    %v4899 = vsub.f32 %v4835, 1.0
    %v4900 = vsub.f32 %v4836, 1.0
    %v4901 = vsub.f32 %v4837, 1.0
    %v4902 = vsub.f32 %v4838, 1.0
    %v4903 = vsub.f32 %v4839, 1.0
    %v4904 = vsub.f32 %v4840, 1.0
    %v4905 = vsub.f32 %v4841, 1.0
    %v4906 = vsub.f32 %v4842, 1.0
    %v4907 = vsub.f32 %v4843, 1.0
    %v4908 = vsub.f32 %v4844, 1.0
    %v4909 = vsub.f32 %v4845, 1.0
    %v4910 = vsub.f32 %v4846, 1.0
    %v4911 = vsub.f32 %v4847, 1.0
    %v4912 = vpack.c.bf16 %v4849, %v4848
    %v4913 = vpack.c.bf16 %v4851, %v4850
    %v4914 = vpack.c.bf16 %v4853, %v4852
    %v4915 = vpack.c.bf16 %v4855, %v4854
    %v4916 = vpack.c.bf16 %v4857, %v4856
    %v4917 = vpack.c.bf16 %v4859, %v4858
    %v4918 = vpack.c.bf16 %v4861, %v4860
    %v4919 = vpack.c.bf16 %v4863, %v4862
    %v4920 = vpack.c.bf16 %v4865, %v4864
    %v4921 = vpack.c.bf16 %v4867, %v4866
    %v4922 = vpack.c.bf16 %v4869, %v4868
    %v4923 = vpack.c.bf16 %v4871, %v4870
    %v4924 = vpack.c.bf16 %v4873, %v4872
    %v4925 = vpack.c.bf16 %v4875, %v4874
    %v4926 = vpack.c.bf16 %v4877, %v4876
    %v4927 = vpack.c.bf16 %v4879, %v4878
    %v4928 = vpack.c.bf16 %v4881, %v4880
    %v4929 = vpack.c.bf16 %v4883, %v4882
    %v4930 = vpack.c.bf16 %v4885, %v4884
    %v4931 = vpack.c.bf16 %v4887, %v4886
    %v4932 = vpack.c.bf16 %v4889, %v4888
    %v4933 = vpack.c.bf16 %v4891, %v4890
    %v4934 = vpack.c.bf16 %v4893, %v4892
    %v4935 = vpack.c.bf16 %v4895, %v4894
    %v4936 = vpack.c.bf16 %v4897, %v4896
    %v4937 = vpack.c.bf16 %v4899, %v4898
    %v4938 = vpack.c.bf16 %v4901, %v4900
    %v4939 = vpack.c.bf16 %v4903, %v4902
    %v4940 = vpack.c.bf16 %v4905, %v4904
    %v4941 = vpack.c.bf16 %v4907, %v4906
    %v4942 = vpack.c.bf16 %v4909, %v4908
    %v4943 = vpack.c.bf16 %v4911, %v4910
    %vm4944 = vmpackc.low %vm4561, %vm4560
    %vm4945 = vmpackc.low %vm4563, %vm4562
    %vm4946 = vmpackc.low %vm4565, %vm4564
    %vm4947 = vmpackc.low %vm4567, %vm4566
    %vm4948 = vmpackc.low %vm4569, %vm4568
    %vm4949 = vmpackc.low %vm4571, %vm4570
    %vm4950 = vmpackc.low %vm4573, %vm4572
    %vm4951 = vmpackc.low %vm4575, %vm4574
    %vm4952 = vmpackc.low %vm4577, %vm4576
    %vm4953 = vmpackc.low %vm4579, %vm4578
    %vm4954 = vmpackc.low %vm4581, %vm4580
    %vm4955 = vmpackc.low %vm4583, %vm4582
    %vm4956 = vmpackc.low %vm4585, %vm4584
    %vm4957 = vmpackc.low %vm4587, %vm4586
    %vm4958 = vmpackc.low %vm4589, %vm4588
    %vm4959 = vmpackc.low %vm4591, %vm4590
    %vm4960 = vmpackc.low %vm4593, %vm4592
    %vm4961 = vmpackc.low %vm4595, %vm4594
    %vm4962 = vmpackc.low %vm4597, %vm4596
    %vm4963 = vmpackc.low %vm4599, %vm4598
    %vm4964 = vmpackc.low %vm4601, %vm4600
    %vm4965 = vmpackc.low %vm4603, %vm4602
    %vm4966 = vmpackc.low %vm4605, %vm4604
    %vm4967 = vmpackc.low %vm4607, %vm4606
    %vm4968 = vmpackc.low %vm4609, %vm4608
    %vm4969 = vmpackc.low %vm4611, %vm4610
    %vm4970 = vmpackc.low %vm4613, %vm4612
    %vm4971 = vmpackc.low %vm4615, %vm4614
    %vm4972 = vmpackc.low %vm4617, %vm4616
    %vm4973 = vmpackc.low %vm4619, %vm4618
    %vm4974 = vmpackc.low %vm4621, %vm4620
    %vm4975 = vmpackc.low %vm4623, %vm4622
    %v4976 = vsel %vm4944, %v4464, %v4912
    %v4977 = vsel %vm4945, %v4465, %v4913
    %v4978 = vsel %vm4946, %v4466, %v4914
    %v4979 = vsel %vm4947, %v4467, %v4915
    %v4980 = vsel %vm4948, %v4468, %v4916
    %v4981 = vsel %vm4949, %v4469, %v4917
    %v4982 = vsel %vm4950, %v4470, %v4918
    %v4983 = vsel %vm4951, %v4471, %v4919
    %v4984 = vsel %vm4952, %v4472, %v4920
    %v4985 = vsel %vm4953, %v4473, %v4921
    %v4986 = vsel %vm4954, %v4474, %v4922
    %v4987 = vsel %vm4955, %v4475, %v4923
    %v4988 = vsel %vm4956, %v4476, %v4924
    %v4989 = vsel %vm4957, %v4477, %v4925
    %v4990 = vsel %vm4958, %v4478, %v4926
    %v4991 = vsel %vm4959, %v4479, %v4927
    %v4992 = vsel %vm4960, %v4480, %v4928
    %v4993 = vsel %vm4961, %v4481, %v4929
    %v4994 = vsel %vm4962, %v4482, %v4930
    %v4995 = vsel %vm4963, %v4483, %v4931
    %v4996 = vsel %vm4964, %v4484, %v4932
    %v4997 = vsel %vm4965, %v4485, %v4933
    %v4998 = vsel %vm4966, %v4486, %v4934
    %v4999 = vsel %vm4967, %v4487, %v4935
    %v5000 = vsel %vm4968, %v4488, %v4936
    %v5001 = vsel %vm4969, %v4489, %v4937
    %v5002 = vsel %vm4970, %v4490, %v4938
    %v5003 = vsel %vm4971, %v4491, %v4939
    %v5004 = vsel %vm4972, %v4492, %v4940
    %v5005 = vsel %vm4973, %v4493, %v4941
    %v5006 = vsel %vm4974, %v4494, %v4942
    %v5007 = vsel %vm4975, %v4495, %v4943
    %v5008 = vld [vmem:[#allocation6] sm:$0xf]
    %v5009 = vld [vmem:[#allocation6 + $0x4] sm:$0xf]
    %v5010 = vld [vmem:[#allocation6 + $0x8] sm:$0xf]
    %v5011 = vld [vmem:[#allocation6 + $0xc] sm:$0xf]
    %v5012 = vld [vmem:[#allocation6 + $0x10] sm:$0xf]
    %v5013 = vld [vmem:[#allocation6 + $0x14] sm:$0xf]
    %v5014 = vld [vmem:[#allocation6 + $0x18] sm:$0xf]
    %v5015 = vld [vmem:[#allocation6 + $0x1c] sm:$0xf]
    %v5016 = vld [vmem:[#allocation6 + $0x20] sm:$0xf]
    %v5017 = vld [vmem:[#allocation6 + $0x24] sm:$0xf]
    %v5018 = vld [vmem:[#allocation6 + $0x28] sm:$0xf]
    %v5019 = vld [vmem:[#allocation6 + $0x2c] sm:$0xf]
    %v5020 = vld [vmem:[#allocation6 + $0x30] sm:$0xf]
    %v5021 = vld [vmem:[#allocation6 + $0x34] sm:$0xf]
    %v5022 = vld [vmem:[#allocation6 + $0x38] sm:$0xf]
    %v5023 = vld [vmem:[#allocation6 + $0x3c] sm:$0xf]
    %v5024 = vld [vmem:[#allocation6 + $0x40] sm:$0xf]
    %v5025 = vld [vmem:[#allocation6 + $0x44] sm:$0xf]
    %v5026 = vld [vmem:[#allocation6 + $0x48] sm:$0xf]
    %v5027 = vld [vmem:[#allocation6 + $0x4c] sm:$0xf]
    %v5028 = vld [vmem:[#allocation6 + $0x50] sm:$0xf]
    %v5029 = vld [vmem:[#allocation6 + $0x54] sm:$0xf]
    %v5030 = vld [vmem:[#allocation6 + $0x58] sm:$0xf]
    %v5031 = vld [vmem:[#allocation6 + $0x5c] sm:$0xf]
    %v5032 = vld [vmem:[#allocation6 + $0x60] sm:$0xf]
    %v5033 = vld [vmem:[#allocation6 + $0x64] sm:$0xf]
    %v5034 = vld [vmem:[#allocation6 + $0x68] sm:$0xf]
    %v5035 = vld [vmem:[#allocation6 + $0x6c] sm:$0xf]
    %v5036 = vld [vmem:[#allocation6 + $0x70] sm:$0xf]
    %v5037 = vld [vmem:[#allocation6 + $0x74] sm:$0xf]
    %v5038 = vld [vmem:[#allocation6 + $0x78] sm:$0xf]
    %v5039 = vld [vmem:[#allocation6 + $0x7c] sm:$0xf]
    %v5040 = vld [vmem:[%s10] sm:$0x1]
    %v5042 = vperm.slane %v5040, 0
    %v5076 = vunpack.c.l.b16 %v4976
    %v5077 = vunpack.c.h.b16 %v4976
    %v5078 = vunpack.c.l.b16 %v4977
    %v5079 = vunpack.c.h.b16 %v4977
    %v5080 = vunpack.c.l.b16 %v4978
    %v5081 = vunpack.c.h.b16 %v4978
    %v5082 = vunpack.c.l.b16 %v4979
    %v5083 = vunpack.c.h.b16 %v4979
    %v5084 = vunpack.c.l.b16 %v4980
    %v5085 = vunpack.c.h.b16 %v4980
    %v5086 = vunpack.c.l.b16 %v4981
    %v5087 = vunpack.c.h.b16 %v4981
    %v5088 = vunpack.c.l.b16 %v4982
    %v5089 = vunpack.c.h.b16 %v4982
    %v5090 = vunpack.c.l.b16 %v4983
    %v5091 = vunpack.c.h.b16 %v4983
    %v5092 = vunpack.c.l.b16 %v4984
    %v5093 = vunpack.c.h.b16 %v4984
    %v5094 = vunpack.c.l.b16 %v4985
    %v5095 = vunpack.c.h.b16 %v4985
    %v5096 = vunpack.c.l.b16 %v4986
    %v5097 = vunpack.c.h.b16 %v4986
    %v5098 = vunpack.c.l.b16 %v4987
    %v5099 = vunpack.c.h.b16 %v4987
    %v5100 = vunpack.c.l.b16 %v4988
    %v5101 = vunpack.c.h.b16 %v4988
    %v5102 = vunpack.c.l.b16 %v4989
    %v5103 = vunpack.c.h.b16 %v4989
    %v5104 = vunpack.c.l.b16 %v4990
    %v5105 = vunpack.c.h.b16 %v4990
    %v5106 = vunpack.c.l.b16 %v4991
    %v5107 = vunpack.c.h.b16 %v4991
    %v5108 = vunpack.c.l.b16 %v4992
    %v5109 = vunpack.c.h.b16 %v4992
    %v5110 = vunpack.c.l.b16 %v4993
    %v5111 = vunpack.c.h.b16 %v4993
    %v5112 = vunpack.c.l.b16 %v4994
    %v5113 = vunpack.c.h.b16 %v4994
    %v5114 = vunpack.c.l.b16 %v4995
    %v5115 = vunpack.c.h.b16 %v4995
    %v5116 = vunpack.c.l.b16 %v4996
    %v5117 = vunpack.c.h.b16 %v4996
    %v5118 = vunpack.c.l.b16 %v4997
    %v5119 = vunpack.c.h.b16 %v4997
    %v5120 = vunpack.c.l.b16 %v4998
    %v5121 = vunpack.c.h.b16 %v4998
    %v5122 = vunpack.c.l.b16 %v4999
    %v5123 = vunpack.c.h.b16 %v4999
    %v5124 = vunpack.c.l.b16 %v5000
    %v5125 = vunpack.c.h.b16 %v5000
    %v5126 = vunpack.c.l.b16 %v5001
    %v5127 = vunpack.c.h.b16 %v5001
    %v5128 = vunpack.c.l.b16 %v5002
    %v5129 = vunpack.c.h.b16 %v5002
    %v5130 = vunpack.c.l.b16 %v5003
    %v5131 = vunpack.c.h.b16 %v5003
    %v5132 = vunpack.c.l.b16 %v5004
    %v5133 = vunpack.c.h.b16 %v5004
    %v5134 = vunpack.c.l.b16 %v5005
    %v5135 = vunpack.c.h.b16 %v5005
    %v5136 = vunpack.c.l.b16 %v5006
    %v5137 = vunpack.c.h.b16 %v5006
    %v5138 = vunpack.c.l.b16 %v5007
    %v5139 = vunpack.c.h.b16 %v5007
    %v5140 = vpack.c.b16 %v5078, %v5076
    %v5141 = vpack.c.b16 %v5079, %v5077
    %v5142 = vpack.c.b16 %v5082, %v5080
    %v5143 = vpack.c.b16 %v5083, %v5081
    %v5144 = vpack.c.b16 %v5086, %v5084
    %v5145 = vpack.c.b16 %v5087, %v5085
    %v5146 = vpack.c.b16 %v5090, %v5088
    %v5147 = vpack.c.b16 %v5091, %v5089
    %v5148 = vpack.c.b16 %v5094, %v5092
    %v5149 = vpack.c.b16 %v5095, %v5093
    %v5150 = vpack.c.b16 %v5098, %v5096
    %v5151 = vpack.c.b16 %v5099, %v5097
    %v5152 = vpack.c.b16 %v5102, %v5100
    %v5153 = vpack.c.b16 %v5103, %v5101
    %v5154 = vpack.c.b16 %v5106, %v5104
    %v5155 = vpack.c.b16 %v5107, %v5105
    %v5156 = vpack.c.b16 %v5110, %v5108
    %v5157 = vpack.c.b16 %v5111, %v5109
    %v5158 = vpack.c.b16 %v5114, %v5112
    %v5159 = vpack.c.b16 %v5115, %v5113
    %v5160 = vpack.c.b16 %v5118, %v5116
    %v5161 = vpack.c.b16 %v5119, %v5117
    %v5162 = vpack.c.b16 %v5122, %v5120
    %v5163 = vpack.c.b16 %v5123, %v5121
    %v5164 = vpack.c.b16 %v5126, %v5124
    %v5165 = vpack.c.b16 %v5127, %v5125
    %v5166 = vpack.c.b16 %v5130, %v5128
    %v5167 = vpack.c.b16 %v5131, %v5129
    %v5168 = vpack.c.b16 %v5134, %v5132
    %v5169 = vpack.c.b16 %v5135, %v5133
    %v5170 = vpack.c.b16 %v5138, %v5136
    %v5171 = vpack.c.b16 %v5139, %v5137
    %v5236 = vunpack.c.l.b16 %v5008
    %v5237 = vunpack.c.l.b16 %v5009
    %v5238 = vunpack.c.l.b16 %v5010
    %v5239 = vunpack.c.l.b16 %v5011
    %v5240 = vunpack.c.l.b16 %v5012
    %v5241 = vunpack.c.l.b16 %v5013
    %v5242 = vunpack.c.l.b16 %v5014
    %v5243 = vunpack.c.l.b16 %v5015
    %v5244 = vunpack.c.l.b16 %v5016
    %v5245 = vunpack.c.l.b16 %v5017
    %v5246 = vunpack.c.l.b16 %v5018
    %v5247 = vunpack.c.l.b16 %v5019
    %v5248 = vunpack.c.l.b16 %v5020
    %v5249 = vunpack.c.l.b16 %v5021
    %v5250 = vunpack.c.l.b16 %v5022
    %v5251 = vunpack.c.l.b16 %v5023
    %v5252 = vunpack.c.l.b16 %v5024
    %v5253 = vunpack.c.l.b16 %v5025
    %v5254 = vunpack.c.l.b16 %v5026
    %v5255 = vunpack.c.l.b16 %v5027
    %v5256 = vunpack.c.l.b16 %v5028
    %v5257 = vunpack.c.l.b16 %v5029
    %v5258 = vunpack.c.l.b16 %v5030
    %v5259 = vunpack.c.l.b16 %v5031
    %v5260 = vunpack.c.l.b16 %v5032
    %v5261 = vunpack.c.l.b16 %v5033
    %v5262 = vunpack.c.l.b16 %v5034
    %v5263 = vunpack.c.l.b16 %v5035
    %v5264 = vunpack.c.l.b16 %v5036
    %v5265 = vunpack.c.l.b16 %v5037
    %v5266 = vunpack.c.l.b16 %v5038
    %v5267 = vunpack.c.l.b16 %v5039
    %v5268 = vpack.c.b16 %v5237, %v5236
    %v5269 = vpack.c.b16 %v5239, %v5238
    %v5270 = vpack.c.b16 %v5241, %v5240
    %v5271 = vpack.c.b16 %v5243, %v5242
    %v5272 = vpack.c.b16 %v5245, %v5244
    %v5273 = vpack.c.b16 %v5247, %v5246
    %v5274 = vpack.c.b16 %v5249, %v5248
    %v5275 = vpack.c.b16 %v5251, %v5250
    %v5276 = vpack.c.b16 %v5253, %v5252
    %v5277 = vpack.c.b16 %v5255, %v5254
    %v5278 = vpack.c.b16 %v5257, %v5256
    %v5279 = vpack.c.b16 %v5259, %v5258
    %v5280 = vpack.c.b16 %v5261, %v5260
    %v5281 = vpack.c.b16 %v5263, %v5262
    %v5282 = vpack.c.b16 %v5265, %v5264
    %v5283 = vpack.c.b16 %v5267, %v5266
    %5300 = vmatpush.bf16.msra.mxu0 %v5275
    %5301 = vmatpush.bf16.msra.mxu0 %v5274
    %5302 = vmatpush.bf16.msra.mxu0 %v5273
    %5303 = vmatpush.bf16.msra.mxu0 %v5272
    %5304 = vmatpush.bf16.msra.mxu0 %v5271
    %5305 = vmatpush.bf16.msra.mxu0 %v5270
    %5306 = vmatpush.bf16.msra.mxu0 %v5269
    %5307 = vmatpush.bf16.msra.mxu0 %v5268
    %5308 = vmatmul.bf16.gmra.mxu0 %v5140
    %v5309 = vpop.f32.mrf.mxu0
    %v5310 = vadd.f32 %v5042, %v5309
    %v5311 = vpop.f32.mrf.mxu0
    %v5312 = vadd.f32 %v5042, %v5311
    %5313 = vmatmul.bf16.gmra.mxu0 %v5142
    %v5314 = vpop.f32.mrf.mxu0
    %v5315 = vadd.f32 %v5042, %v5314
    %v5316 = vpop.f32.mrf.mxu0
    %v5317 = vadd.f32 %v5042, %v5316
    %5318 = vmatmul.bf16.gmra.mxu0 %v5144
    %v5319 = vpop.f32.mrf.mxu0
    %v5320 = vadd.f32 %v5042, %v5319
    %v5321 = vpop.f32.mrf.mxu0
    %v5322 = vadd.f32 %v5042, %v5321
    %5323 = vmatmul.bf16.gmra.mxu0 %v5146
    %v5324 = vpop.f32.mrf.mxu0
    %v5325 = vadd.f32 %v5042, %v5324
    %v5326 = vpop.f32.mrf.mxu0
    %v5327 = vadd.f32 %v5042, %v5326
    %5328 = vmatmul.bf16.gmra.mxu0 %v5148
    %v5329 = vpop.f32.mrf.mxu0
    %v5330 = vadd.f32 %v5042, %v5329
    %v5331 = vpop.f32.mrf.mxu0
    %v5332 = vadd.f32 %v5042, %v5331
    %5333 = vmatmul.bf16.gmra.mxu0 %v5150
    %v5334 = vpop.f32.mrf.mxu0
    %v5335 = vadd.f32 %v5042, %v5334
    %v5336 = vpop.f32.mrf.mxu0
    %v5337 = vadd.f32 %v5042, %v5336
    %5338 = vmatmul.bf16.gmra.mxu0 %v5152
    %v5339 = vpop.f32.mrf.mxu0
    %v5340 = vadd.f32 %v5042, %v5339
    %v5341 = vpop.f32.mrf.mxu0
    %v5342 = vadd.f32 %v5042, %v5341
    %5343 = vmatmul.bf16.gmra.mxu0 %v5154
    %v5344 = vpop.f32.mrf.mxu0
    %v5345 = vadd.f32 %v5042, %v5344
    %v5346 = vpop.f32.mrf.mxu0
    %v5347 = vadd.f32 %v5042, %v5346
    %5348 = vmatmul.bf16.gmra.mxu0 %v5156
    %v5349 = vpop.f32.mrf.mxu0
    %v5350 = vadd.f32 %v5042, %v5349
    %v5351 = vpop.f32.mrf.mxu0
    %v5352 = vadd.f32 %v5042, %v5351
    %5353 = vmatmul.bf16.gmra.mxu0 %v5158
    %v5354 = vpop.f32.mrf.mxu0
    %v5355 = vadd.f32 %v5042, %v5354
    %v5356 = vpop.f32.mrf.mxu0
    %v5357 = vadd.f32 %v5042, %v5356
    %5358 = vmatmul.bf16.gmra.mxu0 %v5160
    %v5359 = vpop.f32.mrf.mxu0
    %v5360 = vadd.f32 %v5042, %v5359
    %v5361 = vpop.f32.mrf.mxu0
    %v5362 = vadd.f32 %v5042, %v5361
    %5363 = vmatmul.bf16.gmra.mxu0 %v5162
    %v5364 = vpop.f32.mrf.mxu0
    %v5365 = vadd.f32 %v5042, %v5364
    %v5366 = vpop.f32.mrf.mxu0
    %v5367 = vadd.f32 %v5042, %v5366
    %5368 = vmatmul.bf16.gmra.mxu0 %v5164
    %v5369 = vpop.f32.mrf.mxu0
    %v5370 = vadd.f32 %v5042, %v5369
    %v5371 = vpop.f32.mrf.mxu0
    %v5372 = vadd.f32 %v5042, %v5371
    %5373 = vmatmul.bf16.gmra.mxu0 %v5166
    %v5374 = vpop.f32.mrf.mxu0
    %v5375 = vadd.f32 %v5042, %v5374
    %v5376 = vpop.f32.mrf.mxu0
    %v5377 = vadd.f32 %v5042, %v5376
    %5378 = vmatmul.bf16.gmra.mxu0 %v5168
    %v5379 = vpop.f32.mrf.mxu0
    %v5380 = vadd.f32 %v5042, %v5379
    %v5381 = vpop.f32.mrf.mxu0
    %v5382 = vadd.f32 %v5042, %v5381
    %5383 = vmatmul.bf16.gmra.mxu0 %v5170
    %v5384 = vpop.f32.mrf.mxu0
    %v5385 = vadd.f32 %v5042, %v5384
    %v5386 = vpop.f32.mrf.mxu0
    %v5387 = vadd.f32 %v5042, %v5386
    %5388 = vdwg.mxu0
    %5389 = vmatpush.bf16.msra.mxu0 %v5283
    %5390 = vmatpush.bf16.msra.mxu0 %v5282
    %5391 = vmatpush.bf16.msra.mxu0 %v5281
    %5392 = vmatpush.bf16.msra.mxu0 %v5280
    %5393 = vmatpush.bf16.msra.mxu0 %v5279
    %5394 = vmatpush.bf16.msra.mxu0 %v5278
    %5395 = vmatpush.bf16.msra.mxu0 %v5277
    %5396 = vmatpush.bf16.msra.mxu0 %v5276
    %5397 = vmatmul.bf16.gmra.mxu0 %v5141
    %v5398 = vpop.f32.mrf.mxu0
    %v5399 = vadd.f32 %v5310, %v5398
    %v5400 = vpop.f32.mrf.mxu0
    %v5401 = vadd.f32 %v5312, %v5400
    %5402 = vmatmul.bf16.gmra.mxu0 %v5143
    %v5403 = vpop.f32.mrf.mxu0
    %v5404 = vadd.f32 %v5315, %v5403
    %v5405 = vpop.f32.mrf.mxu0
    %v5406 = vadd.f32 %v5317, %v5405
    %5407 = vmatmul.bf16.gmra.mxu0 %v5145
    %v5408 = vpop.f32.mrf.mxu0
    %v5409 = vadd.f32 %v5320, %v5408
    %v5410 = vpop.f32.mrf.mxu0
    %v5411 = vadd.f32 %v5322, %v5410
    %5412 = vmatmul.bf16.gmra.mxu0 %v5147
    %v5413 = vpop.f32.mrf.mxu0
    %v5414 = vadd.f32 %v5325, %v5413
    %v5415 = vpop.f32.mrf.mxu0
    %v5416 = vadd.f32 %v5327, %v5415
    %5417 = vmatmul.bf16.gmra.mxu0 %v5149
    %v5418 = vpop.f32.mrf.mxu0
    %v5419 = vadd.f32 %v5330, %v5418
    %v5420 = vpop.f32.mrf.mxu0
    %v5421 = vadd.f32 %v5332, %v5420
    %5422 = vmatmul.bf16.gmra.mxu0 %v5151
    %v5423 = vpop.f32.mrf.mxu0
    %v5424 = vadd.f32 %v5335, %v5423
    %v5425 = vpop.f32.mrf.mxu0
    %v5426 = vadd.f32 %v5337, %v5425
    %5427 = vmatmul.bf16.gmra.mxu0 %v5153
    %v5428 = vpop.f32.mrf.mxu0
    %v5429 = vadd.f32 %v5340, %v5428
    %v5430 = vpop.f32.mrf.mxu0
    %v5431 = vadd.f32 %v5342, %v5430
    %5432 = vmatmul.bf16.gmra.mxu0 %v5155
    %v5433 = vpop.f32.mrf.mxu0
    %v5434 = vadd.f32 %v5345, %v5433
    %v5435 = vpop.f32.mrf.mxu0
    %v5436 = vadd.f32 %v5347, %v5435
    %5437 = vmatmul.bf16.gmra.mxu0 %v5157
    %v5438 = vpop.f32.mrf.mxu0
    %v5439 = vadd.f32 %v5350, %v5438
    %v5440 = vpop.f32.mrf.mxu0
    %v5441 = vadd.f32 %v5352, %v5440
    %5442 = vmatmul.bf16.gmra.mxu0 %v5159
    %v5443 = vpop.f32.mrf.mxu0
    %v5444 = vadd.f32 %v5355, %v5443
    %v5445 = vpop.f32.mrf.mxu0
    %v5446 = vadd.f32 %v5357, %v5445
    %5447 = vmatmul.bf16.gmra.mxu0 %v5161
    %v5448 = vpop.f32.mrf.mxu0
    %v5449 = vadd.f32 %v5360, %v5448
    %v5450 = vpop.f32.mrf.mxu0
    %v5451 = vadd.f32 %v5362, %v5450
    %5452 = vmatmul.bf16.gmra.mxu0 %v5163
    %v5453 = vpop.f32.mrf.mxu0
    %v5454 = vadd.f32 %v5365, %v5453
    %v5455 = vpop.f32.mrf.mxu0
    %v5456 = vadd.f32 %v5367, %v5455
    %5457 = vmatmul.bf16.gmra.mxu0 %v5165
    %v5458 = vpop.f32.mrf.mxu0
    %v5459 = vadd.f32 %v5370, %v5458
    %v5460 = vpop.f32.mrf.mxu0
    %v5461 = vadd.f32 %v5372, %v5460
    %5462 = vmatmul.bf16.gmra.mxu0 %v5167
    %v5463 = vpop.f32.mrf.mxu0
    %v5464 = vadd.f32 %v5375, %v5463
    %v5465 = vpop.f32.mrf.mxu0
    %v5466 = vadd.f32 %v5377, %v5465
    %5467 = vmatmul.bf16.gmra.mxu0 %v5169
    %v5468 = vpop.f32.mrf.mxu0
    %v5469 = vadd.f32 %v5380, %v5468
    %v5470 = vpop.f32.mrf.mxu0
    %v5471 = vadd.f32 %v5382, %v5470
    %5472 = vmatmul.bf16.gmra.mxu0 %v5171
    %v5473 = vpop.f32.mrf.mxu0
    %v5474 = vadd.f32 %v5385, %v5473
    %v5475 = vpop.f32.mrf.mxu0
    %v5476 = vadd.f32 %v5387, %v5475
    %5477 = vdwg.mxu0
    %v5478 = vlaneseq
    %v5479 = vand.u32 %v5478, 127
    %vm5480 = vcmp.ge.s32.totalorder %v5479, 8
    %vm5481 = vcmp.lt.s32.totalorder %v5479, 16
    %vm5482 = vmand %vm5480, %vm5481
    %vm5483 = vcmp.ge.s32.totalorder %v5479, 19
    %vm5484 = vcmp.lt.s32.totalorder %v5479, 22
    %vm5485 = vmand %vm5483, %vm5484
    %vm5486 = vmor %vm5482, %vm5485
    %v5487 = vmax.f32 %v5399, -32767.0
    %v5488 = vmax.f32 %v5401, -32767.0
    %v5489 = vmax.f32 %v5404, -32767.0
    %v5490 = vmax.f32 %v5406, -32767.0
    %v5491 = vmax.f32 %v5409, -32767.0
    %v5492 = vmax.f32 %v5411, -32767.0
    %v5493 = vmax.f32 %v5414, -32767.0
    %v5494 = vmax.f32 %v5416, -32767.0
    %v5495 = vmax.f32 %v5419, -32767.0
    %v5496 = vmax.f32 %v5421, -32767.0
    %v5497 = vmax.f32 %v5424, -32767.0
    %v5498 = vmax.f32 %v5426, -32767.0
    %v5499 = vmax.f32 %v5429, -32767.0
    %v5500 = vmax.f32 %v5431, -32767.0
    %v5501 = vmax.f32 %v5434, -32767.0
    %v5502 = vmax.f32 %v5436, -32767.0
    %v5503 = vmax.f32 %v5439, -32767.0
    %v5504 = vmax.f32 %v5441, -32767.0
    %v5505 = vmax.f32 %v5444, -32767.0
    %v5506 = vmax.f32 %v5446, -32767.0
    %v5507 = vmax.f32 %v5449, -32767.0
    %v5508 = vmax.f32 %v5451, -32767.0
    %v5509 = vmax.f32 %v5454, -32767.0
    %v5510 = vmax.f32 %v5456, -32767.0
    %v5511 = vmax.f32 %v5459, -32767.0
    %v5512 = vmax.f32 %v5461, -32767.0
    %v5513 = vmax.f32 %v5464, -32767.0
    %v5514 = vmax.f32 %v5466, -32767.0
    %v5515 = vmax.f32 %v5469, -32767.0
    %v5516 = vmax.f32 %v5471, -32767.0
    %v5517 = vmax.f32 %v5474, -32767.0
    %v5518 = vmax.f32 %v5476, -32767.0
    %v5519 = vmin.f32 %v5487, 5.0
    %v5520 = vmin.f32 %v5488, 5.0
    %v5521 = vmin.f32 %v5489, 5.0
    %v5522 = vmin.f32 %v5490, 5.0
    %v5523 = vmin.f32 %v5491, 5.0
    %v5524 = vmin.f32 %v5492, 5.0
    %v5525 = vmin.f32 %v5493, 5.0
    %v5526 = vmin.f32 %v5494, 5.0
    %v5527 = vmin.f32 %v5495, 5.0
    %v5528 = vmin.f32 %v5496, 5.0
    %v5529 = vmin.f32 %v5497, 5.0
    %v5530 = vmin.f32 %v5498, 5.0
    %v5531 = vmin.f32 %v5499, 5.0
    %v5532 = vmin.f32 %v5500, 5.0
    %v5533 = vmin.f32 %v5501, 5.0
    %v5534 = vmin.f32 %v5502, 5.0
    %v5535 = vmin.f32 %v5503, 5.0
    %v5536 = vmin.f32 %v5504, 5.0
    %v5537 = vmin.f32 %v5505, 5.0
    %v5538 = vmin.f32 %v5506, 5.0
    %v5539 = vmin.f32 %v5507, 5.0
    %v5540 = vmin.f32 %v5508, 5.0
    %v5541 = vmin.f32 %v5509, 5.0
    %v5542 = vmin.f32 %v5510, 5.0
    %v5543 = vmin.f32 %v5511, 5.0
    %v5544 = vmin.f32 %v5512, 5.0
    %v5545 = vmin.f32 %v5513, 5.0
    %v5546 = vmin.f32 %v5514, 5.0
    %v5547 = vmin.f32 %v5515, 5.0
    %v5548 = vmin.f32 %v5516, 5.0
    %v5549 = vmin.f32 %v5517, 5.0
    %v5550 = vmin.f32 %v5518, 5.0
    %v5551 = vsel %vm5486, 1, 0
    %vm5552 = vcmp.eq.s32.totalorder %v5551, 1
    %v5553 = vsel %vm5552, %v5519, %v5399
    %v5554 = vsel %vm5552, %v5520, %v5401
    %v5555 = vsel %vm5552, %v5521, %v5404
    %v5556 = vsel %vm5552, %v5522, %v5406
    %v5557 = vsel %vm5552, %v5523, %v5409
    %v5558 = vsel %vm5552, %v5524, %v5411
    %v5559 = vsel %vm5552, %v5525, %v5414
    %v5560 = vsel %vm5552, %v5526, %v5416
    %v5561 = vsel %vm5552, %v5527, %v5419
    %v5562 = vsel %vm5552, %v5528, %v5421
    %v5563 = vsel %vm5552, %v5529, %v5424
    %v5564 = vsel %vm5552, %v5530, %v5426
    %v5565 = vsel %vm5552, %v5531, %v5429
    %v5566 = vsel %vm5552, %v5532, %v5431
    %v5567 = vsel %vm5552, %v5533, %v5434
    %v5568 = vsel %vm5552, %v5534, %v5436
    %v5569 = vsel %vm5552, %v5535, %v5439
    %v5570 = vsel %vm5552, %v5536, %v5441
    %v5571 = vsel %vm5552, %v5537, %v5444
    %v5572 = vsel %vm5552, %v5538, %v5446
    %v5573 = vsel %vm5552, %v5539, %v5449
    %v5574 = vsel %vm5552, %v5540, %v5451
    %v5575 = vsel %vm5552, %v5541, %v5454
    %v5576 = vsel %vm5552, %v5542, %v5456
    %v5577 = vsel %vm5552, %v5543, %v5459
    %v5578 = vsel %vm5552, %v5544, %v5461
    %v5579 = vsel %vm5552, %v5545, %v5464
    %v5580 = vsel %vm5552, %v5546, %v5466
    %v5581 = vsel %vm5552, %v5547, %v5469
    %v5582 = vsel %vm5552, %v5548, %v5471
    %v5583 = vsel %vm5552, %v5549, %v5474
    %v5584 = vsel %vm5552, %v5550, %v5476
    %5585 = vst [vmem:[#allocation8] sm:$0xff] %v5553
    %5586 = vst [vmem:[#allocation8 + $0x10] sm:$0xff] %v5554
    %5587 = vst [vmem:[#allocation8 + $0x20] sm:$0xff] %v5555
    %5588 = vst [vmem:[#allocation8 + $0x30] sm:$0xff] %v5556
    %5589 = vst [vmem:[#allocation8 + $0x40] sm:$0xff] %v5557
    %5590 = vst [vmem:[#allocation8 + $0x50] sm:$0xff] %v5558
    %5591 = vst [vmem:[#allocation8 + $0x60] sm:$0xff] %v5559
    %5592 = vst [vmem:[#allocation8 + $0x70] sm:$0xff] %v5560
    %5593 = vst [vmem:[#allocation8 + $0x80] sm:$0xff] %v5561
    %5594 = vst [vmem:[#allocation8 + $0x90] sm:$0xff] %v5562
    %5595 = vst [vmem:[#allocation8 + $0xa0] sm:$0xff] %v5563
    %5596 = vst [vmem:[#allocation8 + $0xb0] sm:$0xff] %v5564
    %5597 = vst [vmem:[#allocation8 + $0xc0] sm:$0xff] %v5565
    %5598 = vst [vmem:[#allocation8 + $0xd0] sm:$0xff] %v5566
    %5599 = vst [vmem:[#allocation8 + $0xe0] sm:$0xff] %v5567
    %5600 = vst [vmem:[#allocation8 + $0xf0] sm:$0xff] %v5568
    %5601 = vst [vmem:[#allocation8 + $0x100] sm:$0xff] %v5569
    %5602 = vst [vmem:[#allocation8 + $0x110] sm:$0xff] %v5570
    %5603 = vst [vmem:[#allocation8 + $0x120] sm:$0xff] %v5571
    %5604 = vst [vmem:[#allocation8 + $0x130] sm:$0xff] %v5572
    %5605 = vst [vmem:[#allocation8 + $0x140] sm:$0xff] %v5573
    %5606 = vst [vmem:[#allocation8 + $0x150] sm:$0xff] %v5574
    %5607 = vst [vmem:[#allocation8 + $0x160] sm:$0xff] %v5575
    %5608 = vst [vmem:[#allocation8 + $0x170] sm:$0xff] %v5576
    %5609 = vst [vmem:[#allocation8 + $0x180] sm:$0xff] %v5577
    %5610 = vst [vmem:[#allocation8 + $0x190] sm:$0xff] %v5578
    %5611 = vst [vmem:[#allocation8 + $0x1a0] sm:$0xff] %v5579
    %5612 = vst [vmem:[#allocation8 + $0x1b0] sm:$0xff] %v5580
    %5613 = vst [vmem:[#allocation8 + $0x1c0] sm:$0xff] %v5581
    %5614 = vst [vmem:[#allocation8 + $0x1d0] sm:$0xff] %v5582
    %5615 = vst [vmem:[#allocation8 + $0x1e0] sm:$0xff] %v5583
    %5616 = vst [vmem:[#allocation8 + $0x1f0] sm:$0xff] %v5584
    %s5617 = sld [smem:[#allocation2]]
    %v5618 = vmul.f32 %v5553, 0.5
    %v5619 = vmul.f32 %v5554, 0.5
    %v5620 = vmul.f32 %v5555, 0.5
    %v5621 = vmul.f32 %v5556, 0.5
    %v5622 = vmul.f32 %v5557, 0.5
    %v5623 = vmul.f32 %v5558, 0.5
    %v5624 = vmul.f32 %v5559, 0.5
    %v5625 = vmul.f32 %v5560, 0.5
    %v5626 = vmul.f32 %v5561, 0.5
    %v5627 = vmul.f32 %v5562, 0.5
    %v5628 = vmul.f32 %v5563, 0.5
    %v5629 = vmul.f32 %v5564, 0.5
    %v5630 = vmul.f32 %v5565, 0.5
    %v5631 = vmul.f32 %v5566, 0.5
    %v5632 = vmul.f32 %v5567, 0.5
    %v5633 = vmul.f32 %v5568, 0.5
    %v5634 = vmul.f32 %v5569, 0.5
    %v5635 = vmul.f32 %v5570, 0.5
    %v5636 = vmul.f32 %v5571, 0.5
    %v5637 = vmul.f32 %v5572, 0.5
    %v5638 = vmul.f32 %v5573, 0.5
    %v5639 = vmul.f32 %v5574, 0.5
    %v5640 = vmul.f32 %v5575, 0.5
    %v5641 = vmul.f32 %v5576, 0.5
    %v5642 = vmul.f32 %v5577, 0.5
    %v5643 = vmul.f32 %v5578, 0.5
    %v5644 = vmul.f32 %v5579, 0.5
    %v5645 = vmul.f32 %v5580, 0.5
    %v5646 = vmul.f32 %v5581, 0.5
    %v5647 = vmul.f32 %v5582, 0.5
    %v5648 = vmul.f32 %v5583, 0.5
    %v5649 = vmul.f32 %v5584, 0.5
    %v5650 = vmul.f32 %v5618, 1.442695
    %v5651 = vpow.pop %v5650
    %v5652 = vmul.f32 %v5619, 1.442695
    %v5653 = vpow.pop %v5652
    %v5654 = vmul.f32 %v5620, 1.442695
    %v5655 = vpow.pop %v5654
    %v5656 = vmul.f32 %v5621, 1.442695
    %v5657 = vpow.pop %v5656
    %v5658 = vmul.f32 %v5622, 1.442695
    %v5659 = vpow.pop %v5658
    %v5660 = vmul.f32 %v5623, 1.442695
    %v5661 = vpow.pop %v5660
    %v5662 = vmul.f32 %v5624, 1.442695
    %v5663 = vpow.pop %v5662
    %v5664 = vmul.f32 %v5625, 1.442695
    %v5665 = vpow.pop %v5664
    %v5666 = vmul.f32 %v5626, 1.442695
    %v5667 = vpow.pop %v5666
    %v5668 = vmul.f32 %v5627, 1.442695
    %v5669 = vpow.pop %v5668
    %v5670 = vmul.f32 %v5628, 1.442695
    %v5671 = vpow.pop %v5670
    %v5672 = vmul.f32 %v5629, 1.442695
    %v5673 = vpow.pop %v5672
    %v5674 = vmul.f32 %v5630, 1.442695
    %v5675 = vpow.pop %v5674
    %v5676 = vmul.f32 %v5631, 1.442695
    %v5677 = vpow.pop %v5676
    %v5678 = vmul.f32 %v5632, 1.442695
    %v5679 = vpow.pop %v5678
    %v5680 = vmul.f32 %v5633, 1.442695
    %v5681 = vpow.pop %v5680
    %v5682 = vmul.f32 %v5634, 1.442695
    %v5683 = vpow.pop %v5682
    %v5684 = vmul.f32 %v5635, 1.442695
    %v5685 = vpow.pop %v5684
    %v5686 = vmul.f32 %v5636, 1.442695
    %v5687 = vpow.pop %v5686
    %v5688 = vmul.f32 %v5637, 1.442695
    %v5689 = vpow.pop %v5688
    %v5690 = vmul.f32 %v5638, 1.442695
    %v5691 = vpow.pop %v5690
    %v5692 = vmul.f32 %v5639, 1.442695
    %v5693 = vpow.pop %v5692
    %v5694 = vmul.f32 %v5640, 1.442695
    %v5695 = vpow.pop %v5694
    %v5696 = vmul.f32 %v5641, 1.442695
    %v5697 = vpow.pop %v5696
    %v5698 = vmul.f32 %v5642, 1.442695
    %v5699 = vpow.pop %v5698
    %v5700 = vmul.f32 %v5643, 1.442695
    %v5701 = vpow.pop %v5700
    %v5702 = vmul.f32 %v5644, 1.442695
    %v5703 = vpow.pop %v5702
    %v5704 = vmul.f32 %v5645, 1.442695
    %v5705 = vpow.pop %v5704
    %v5706 = vmul.f32 %v5646, 1.442695
    %v5707 = vpow.pop %v5706
    %v5708 = vmul.f32 %v5647, 1.442695
    %v5709 = vpow.pop %v5708
    %v5710 = vmul.f32 %v5648, 1.442695
    %v5711 = vpow.pop %v5710
    %v5712 = vmul.f32 %v5649, 1.442695
    %v5713 = vpow.pop %v5712
    %v5714 = vstv %s5617
    %v5715 = vmul.f32 %v5651, %v5714
    %v5716 = vmul.f32 %v5653, %v5714
    %v5717 = vmul.f32 %v5655, %v5714
    %v5718 = vmul.f32 %v5657, %v5714
    %v5719 = vmul.f32 %v5659, %v5714
    %v5720 = vmul.f32 %v5661, %v5714
    %v5721 = vmul.f32 %v5663, %v5714
    %v5722 = vmul.f32 %v5665, %v5714
    %v5723 = vmul.f32 %v5667, %v5714
    %v5724 = vmul.f32 %v5669, %v5714
    %v5725 = vmul.f32 %v5671, %v5714
    %v5726 = vmul.f32 %v5673, %v5714
    %v5727 = vmul.f32 %v5675, %v5714
    %v5728 = vmul.f32 %v5677, %v5714
    %v5729 = vmul.f32 %v5679, %v5714
    %v5730 = vmul.f32 %v5681, %v5714
    %v5731 = vmul.f32 %v5683, %v5714
    %v5732 = vmul.f32 %v5685, %v5714
    %v5733 = vmul.f32 %v5687, %v5714
    %v5734 = vmul.f32 %v5689, %v5714
    %v5735 = vmul.f32 %v5691, %v5714
    %v5736 = vmul.f32 %v5693, %v5714
    %v5737 = vmul.f32 %v5695, %v5714
    %v5738 = vmul.f32 %v5697, %v5714
    %v5739 = vmul.f32 %v5699, %v5714
    %v5740 = vmul.f32 %v5701, %v5714
    %v5741 = vmul.f32 %v5703, %v5714
    %v5742 = vmul.f32 %v5705, %v5714
    %v5743 = vmul.f32 %v5707, %v5714
    %v5744 = vmul.f32 %v5709, %v5714
    %v5745 = vmul.f32 %v5711, %v5714
    %v5746 = vmul.f32 %v5713, %v5714
    %v5747 = vld [vmem:[%s2] sm:$0xff]
    %v5748 = vld [vmem:[%s2 + $0x8] sm:$0xff]
    %v5749 = vld [vmem:[%s2 + $0x10] sm:$0xff]
    %v5750 = vld [vmem:[%s2 + $0x18] sm:$0xff]
    %v5751 = vld [vmem:[%s2 + $0x20] sm:$0xff]
    %v5752 = vld [vmem:[%s2 + $0x28] sm:$0xff]
    %v5753 = vld [vmem:[%s2 + $0x30] sm:$0xff]
    %v5754 = vld [vmem:[%s2 + $0x38] sm:$0xff]
    %v5755 = vld [vmem:[%s2 + $0x40] sm:$0xff]
    %v5756 = vld [vmem:[%s2 + $0x48] sm:$0xff]
    %v5757 = vld [vmem:[%s2 + $0x50] sm:$0xff]
    %v5758 = vld [vmem:[%s2 + $0x58] sm:$0xff]
    %v5759 = vld [vmem:[%s2 + $0x60] sm:$0xff]
    %v5760 = vld [vmem:[%s2 + $0x68] sm:$0xff]
    %v5761 = vld [vmem:[%s2 + $0x70] sm:$0xff]
    %v5762 = vld [vmem:[%s2 + $0x78] sm:$0xff]
    %v5763 = vld [vmem:[%s2 + $0x80] sm:$0xff]
    %v5764 = vld [vmem:[%s2 + $0x88] sm:$0xff]
    %v5765 = vld [vmem:[%s2 + $0x90] sm:$0xff]
    %v5766 = vld [vmem:[%s2 + $0x98] sm:$0xff]
    %v5767 = vld [vmem:[%s2 + $0xa0] sm:$0xff]
    %v5768 = vld [vmem:[%s2 + $0xa8] sm:$0xff]
    %v5769 = vld [vmem:[%s2 + $0xb0] sm:$0xff]
    %v5770 = vld [vmem:[%s2 + $0xb8] sm:$0xff]
    %v5771 = vld [vmem:[%s2 + $0xc0] sm:$0xff]
    %v5772 = vld [vmem:[%s2 + $0xc8] sm:$0xff]
    %v5773 = vld [vmem:[%s2 + $0xd0] sm:$0xff]
    %v5774 = vld [vmem:[%s2 + $0xd8] sm:$0xff]
    %v5775 = vld [vmem:[%s2 + $0xe0] sm:$0xff]
    %v5776 = vld [vmem:[%s2 + $0xe8] sm:$0xff]
    %v5777 = vld [vmem:[%s2 + $0xf0] sm:$0xff]
    %v5778 = vld [vmem:[%s2 + $0xf8] sm:$0xff]
    %5811 = vrot.lane.b32.xlu0 %v5715, 120
    %v5812 = vpop.permute.xlu0 %5811
    %5813 = vrot.lane.b32.xlu0 %v5716, 120
    %v5814 = vpop.permute.xlu0 %5813
    %5815 = vrot.lane.b32.xlu0 %v5717, 120
    %v5816 = vpop.permute.xlu0 %5815
    %5817 = vrot.lane.b32.xlu0 %v5718, 120
    %v5818 = vpop.permute.xlu0 %5817
    %5819 = vrot.lane.b32.xlu0 %v5719, 120
    %v5820 = vpop.permute.xlu0 %5819
    %5821 = vrot.lane.b32.xlu0 %v5720, 120
    %v5822 = vpop.permute.xlu0 %5821
    %5823 = vrot.lane.b32.xlu0 %v5721, 120
    %v5824 = vpop.permute.xlu0 %5823
    %5825 = vrot.lane.b32.xlu0 %v5722, 120
    %v5826 = vpop.permute.xlu0 %5825
    %5827 = vrot.lane.b32.xlu0 %v5723, 120
    %v5828 = vpop.permute.xlu0 %5827
    %5829 = vrot.lane.b32.xlu0 %v5724, 120
    %v5830 = vpop.permute.xlu0 %5829
    %5831 = vrot.lane.b32.xlu0 %v5725, 120
    %v5832 = vpop.permute.xlu0 %5831
    %5833 = vrot.lane.b32.xlu0 %v5726, 120
    %v5834 = vpop.permute.xlu0 %5833
    %5835 = vrot.lane.b32.xlu0 %v5727, 120
    %v5836 = vpop.permute.xlu0 %5835
    %5837 = vrot.lane.b32.xlu0 %v5728, 120
    %v5838 = vpop.permute.xlu0 %5837
    %5839 = vrot.lane.b32.xlu0 %v5729, 120
    %v5840 = vpop.permute.xlu0 %5839
    %5841 = vrot.lane.b32.xlu0 %v5730, 120
    %v5842 = vpop.permute.xlu0 %5841
    %5843 = vrot.lane.b32.xlu0 %v5731, 120
    %v5844 = vpop.permute.xlu0 %5843
    %5845 = vrot.lane.b32.xlu0 %v5732, 120
    %v5846 = vpop.permute.xlu0 %5845
    %5847 = vrot.lane.b32.xlu0 %v5733, 120
    %v5848 = vpop.permute.xlu0 %5847
    %5849 = vrot.lane.b32.xlu0 %v5734, 120
    %v5850 = vpop.permute.xlu0 %5849
    %5851 = vrot.lane.b32.xlu0 %v5735, 120
    %v5852 = vpop.permute.xlu0 %5851
    %5853 = vrot.lane.b32.xlu0 %v5736, 120
    %v5854 = vpop.permute.xlu0 %5853
    %5855 = vrot.lane.b32.xlu0 %v5737, 120
    %v5856 = vpop.permute.xlu0 %5855
    %5857 = vrot.lane.b32.xlu0 %v5738, 120
    %v5858 = vpop.permute.xlu0 %5857
    %5859 = vrot.lane.b32.xlu0 %v5739, 120
    %v5860 = vpop.permute.xlu0 %5859
    %5861 = vrot.lane.b32.xlu0 %v5740, 120
    %v5862 = vpop.permute.xlu0 %5861
    %5863 = vrot.lane.b32.xlu0 %v5741, 120
    %v5864 = vpop.permute.xlu0 %5863
    %5865 = vrot.lane.b32.xlu0 %v5742, 120
    %v5866 = vpop.permute.xlu0 %5865
    %5867 = vrot.lane.b32.xlu0 %v5743, 120
    %v5868 = vpop.permute.xlu0 %5867
    %5869 = vrot.lane.b32.xlu0 %v5744, 120
    %v5870 = vpop.permute.xlu0 %5869
    %5871 = vrot.lane.b32.xlu0 %v5745, 120
    %v5872 = vpop.permute.xlu0 %5871
    %5873 = vrot.lane.b32.xlu0 %v5746, 120
    %v5874 = vpop.permute.xlu0 %5873
    %v5907 = vmul.f32 %v5747, %v5812
    %v5908 = vmul.f32 %v5748, %v5814
    %v5909 = vmul.f32 %v5749, %v5816
    %v5910 = vmul.f32 %v5750, %v5818
    %v5911 = vmul.f32 %v5751, %v5820
    %v5912 = vmul.f32 %v5752, %v5822
    %v5913 = vmul.f32 %v5753, %v5824
    %v5914 = vmul.f32 %v5754, %v5826
    %v5915 = vmul.f32 %v5755, %v5828
    %v5916 = vmul.f32 %v5756, %v5830
    %v5917 = vmul.f32 %v5757, %v5832
    %v5918 = vmul.f32 %v5758, %v5834
    %v5919 = vmul.f32 %v5759, %v5836
    %v5920 = vmul.f32 %v5760, %v5838
    %v5921 = vmul.f32 %v5761, %v5840
    %v5922 = vmul.f32 %v5762, %v5842
    %v5923 = vmul.f32 %v5763, %v5844
    %v5924 = vmul.f32 %v5764, %v5846
    %v5925 = vmul.f32 %v5765, %v5848
    %v5926 = vmul.f32 %v5766, %v5850
    %v5927 = vmul.f32 %v5767, %v5852
    %v5928 = vmul.f32 %v5768, %v5854
    %v5929 = vmul.f32 %v5769, %v5856
    %v5930 = vmul.f32 %v5770, %v5858
    %v5931 = vmul.f32 %v5771, %v5860
    %v5932 = vmul.f32 %v5772, %v5862
    %v5933 = vmul.f32 %v5773, %v5864
    %v5934 = vmul.f32 %v5774, %v5866
    %v5935 = vmul.f32 %v5775, %v5868
    %v5936 = vmul.f32 %v5776, %v5870
    %v5937 = vmul.f32 %v5777, %v5872
    %v5938 = vmul.f32 %v5778, %v5874
    %v5939 = vadd.f32 %v5907, %v5553
    %v5940 = vadd.f32 %v5908, %v5554
    %v5941 = vadd.f32 %v5909, %v5555
    %v5942 = vadd.f32 %v5910, %v5556
    %v5943 = vadd.f32 %v5911, %v5557
    %v5944 = vadd.f32 %v5912, %v5558
    %v5945 = vadd.f32 %v5913, %v5559
    %v5946 = vadd.f32 %v5914, %v5560
    %v5947 = vadd.f32 %v5915, %v5561
    %v5948 = vadd.f32 %v5916, %v5562
    %v5949 = vadd.f32 %v5917, %v5563
    %v5950 = vadd.f32 %v5918, %v5564
    %v5951 = vadd.f32 %v5919, %v5565
    %v5952 = vadd.f32 %v5920, %v5566
    %v5953 = vadd.f32 %v5921, %v5567
    %v5954 = vadd.f32 %v5922, %v5568
    %v5955 = vadd.f32 %v5923, %v5569
    %v5956 = vadd.f32 %v5924, %v5570
    %v5957 = vadd.f32 %v5925, %v5571
    %v5958 = vadd.f32 %v5926, %v5572
    %v5959 = vadd.f32 %v5927, %v5573
    %v5960 = vadd.f32 %v5928, %v5574
    %v5961 = vadd.f32 %v5929, %v5575
    %v5962 = vadd.f32 %v5930, %v5576
    %v5963 = vadd.f32 %v5931, %v5577
    %v5964 = vadd.f32 %v5932, %v5578
    %v5965 = vadd.f32 %v5933, %v5579
    %v5966 = vadd.f32 %v5934, %v5580
    %v5967 = vadd.f32 %v5935, %v5581
    %v5968 = vadd.f32 %v5936, %v5582
    %v5969 = vadd.f32 %v5937, %v5583
    %v5970 = vadd.f32 %v5938, %v5584
    %vm5971 = vcmask 64512
    %5972 = vst.msk [vmem:[#allocation8 + $0x8] sm:$0xff] %vm5971, %v5939
    %5973 = vst.msk [vmem:[#allocation8 + $0x18] sm:$0xff] %vm5971, %v5940
    %5974 = vst.msk [vmem:[#allocation8 + $0x28] sm:$0xff] %vm5971, %v5941
    %5975 = vst.msk [vmem:[#allocation8 + $0x38] sm:$0xff] %vm5971, %v5942
    %5976 = vst.msk [vmem:[#allocation8 + $0x48] sm:$0xff] %vm5971, %v5943
    %5977 = vst.msk [vmem:[#allocation8 + $0x58] sm:$0xff] %vm5971, %v5944
    %5978 = vst.msk [vmem:[#allocation8 + $0x68] sm:$0xff] %vm5971, %v5945
    %5979 = vst.msk [vmem:[#allocation8 + $0x78] sm:$0xff] %vm5971, %v5946
    %5980 = vst.msk [vmem:[#allocation8 + $0x88] sm:$0xff] %vm5971, %v5947
    %5981 = vst.msk [vmem:[#allocation8 + $0x98] sm:$0xff] %vm5971, %v5948
    %5982 = vst.msk [vmem:[#allocation8 + $0xa8] sm:$0xff] %vm5971, %v5949
    %5983 = vst.msk [vmem:[#allocation8 + $0xb8] sm:$0xff] %vm5971, %v5950
    %5984 = vst.msk [vmem:[#allocation8 + $0xc8] sm:$0xff] %vm5971, %v5951
    %5985 = vst.msk [vmem:[#allocation8 + $0xd8] sm:$0xff] %vm5971, %v5952
    %5986 = vst.msk [vmem:[#allocation8 + $0xe8] sm:$0xff] %vm5971, %v5953
    %5987 = vst.msk [vmem:[#allocation8 + $0xf8] sm:$0xff] %vm5971, %v5954
    %5988 = vst.msk [vmem:[#allocation8 + $0x108] sm:$0xff] %vm5971, %v5955
    %5989 = vst.msk [vmem:[#allocation8 + $0x118] sm:$0xff] %vm5971, %v5956
    %5990 = vst.msk [vmem:[#allocation8 + $0x128] sm:$0xff] %vm5971, %v5957
    %5991 = vst.msk [vmem:[#allocation8 + $0x138] sm:$0xff] %vm5971, %v5958
    %5992 = vst.msk [vmem:[#allocation8 + $0x148] sm:$0xff] %vm5971, %v5959
    %5993 = vst.msk [vmem:[#allocation8 + $0x158] sm:$0xff] %vm5971, %v5960
    %5994 = vst.msk [vmem:[#allocation8 + $0x168] sm:$0xff] %vm5971, %v5961
    %5995 = vst.msk [vmem:[#allocation8 + $0x178] sm:$0xff] %vm5971, %v5962
    %5996 = vst.msk [vmem:[#allocation8 + $0x188] sm:$0xff] %vm5971, %v5963
    %5997 = vst.msk [vmem:[#allocation8 + $0x198] sm:$0xff] %vm5971, %v5964
    %5998 = vst.msk [vmem:[#allocation8 + $0x1a8] sm:$0xff] %vm5971, %v5965
    %5999 = vst.msk [vmem:[#allocation8 + $0x1b8] sm:$0xff] %vm5971, %v5966
    %6000 = vst.msk [vmem:[#allocation8 + $0x1c8] sm:$0xff] %vm5971, %v5967
    %6001 = vst.msk [vmem:[#allocation8 + $0x1d8] sm:$0xff] %vm5971, %v5968
    %6002 = vst.msk [vmem:[#allocation8 + $0x1e8] sm:$0xff] %vm5971, %v5969
    %6003 = vst.msk [vmem:[#allocation8 + $0x1f8] sm:$0xff] %vm5971, %v5970
    // Predicated region
    $region54: #{tpu_custom_call.1} parent=1 // pred_check
      _
    $region55: #{tpu_custom_call.1} parent=1 // pred_check_branch
      %6005 = sbr.rel (0) target = $region57
    $region56: #{tpu_custom_call.1} parent=1 // pred_region
      %6007 = vsyncadd [#allocation5], 0
      %s6008 = sshll.u32 [#allocation8], 4
      %s6009 = int_to_ptr.vmem [resolvable:$true] %s6008
      %s6010 = sshll.u32 %s11, 4
      %s6011 = int_to_ptr.hbm [resolvable:$true] %s6010
      %6016 = dma.vmem_to_hbm [thread:$0]  %s6009, 8192, %s6011, [#allocation5], 256, 256, 16
    $region57: #{tpu_custom_call.1} parent=1 // pred_fallthru
      _
    // Predicated region
    $region58: #{tpu_custom_call.1} parent=1 // pred_check
      _
    $region59: #{tpu_custom_call.1} parent=1 // pred_check_branch
      %6018 = sbr.rel (0) target = $region61
    $region60: #{tpu_custom_call.1} parent=1 // pred_region
      %6020 = dma.done [#allocation5], 8192
    $region61: #{tpu_custom_call.1} parent=1 // pred_fallthru
      _
    %6021 = vsyncpa [#allocation4], 1
    %6022 = vsyncpa [#allocation7], 1
    %6023 = vsyncpa [#allocation5], 1

</llo_original>
